<compile_context>
chip_gen: v7x
topology: tpu7x:2x2x1
jax: 0.10.0
libtpu: 0.0.40
codegen_flags: <defaults>
</compile_context>

<pallas_src>
import math
import functools

import jax
import jax.numpy as jnp
from jax.experimental import pallas as pl
from jax.experimental.pallas import tpu as pltpu

LN_EPS = 1e-5  # PyTorch LayerNorm default eps


# ----------------------------------------------------------------------------
# Fused kernel: concat -> LN1 -> MHA(q=embedding, k=v=LN1(cat)) -> LN2 -> MLP + residual
# ----------------------------------------------------------------------------
def _delta_block_kernel(delta_ref, emb_ref,
                        ln1w_ref, ln1b_ref,
                        wq_ref, bq_ref, wk_ref, bk_ref, wv_ref, bv_ref,
                        wo_ref, bo_ref,
                        ln2w_ref, ln2b_ref,
                        w1_ref, b1_ref, w2_ref, b2_ref,
                        out_ref,
                        xkv_ref,                    # VMEM scratch (Bt, S, D) f32
                        *, num_heads, compute_dtype):
    Bt, Sd, D = delta_ref.shape
    Se = emb_ref.shape[1]
    S = Sd + Se
    dh = D // num_heads
    cd = compute_dtype

    delta = delta_ref[...].astype(jnp.float32)       # (Bt, Sd, D)
    emb = emb_ref[...].astype(jnp.float32)           # (Bt, Se, D)

    # --- torch.cat([delta, embedding], dim=1), assembled in VMEM scratch ----
    xkv_ref[:, 0:Sd, :] = delta
    xkv_ref[:, Sd:Sd + Se, :] = emb
    xkv2 = xkv_ref[...].reshape(Bt * S, D)           # leading-dim merge: layout free

    # --- LayerNorm1 (f32) ----------------------------------------------------
    mu = jnp.mean(xkv2, axis=-1, keepdims=True)
    xc = xkv2 - mu
    var = jnp.mean(xc * xc, axis=-1, keepdims=True)
    xn = xc * jax.lax.rsqrt(var + LN_EPS)
    xn = xn * ln1w_ref[...] + ln1b_ref[...]          # (Bt*S, D)

    # --- Q/K/V projections: bf16 operands, f32 accumulation ------------------
    q2 = emb.reshape(Bt * Se, D)                     # query = raw embedding
    xn_c = xn.astype(cd)
    Q = jnp.dot(q2.astype(cd), wq_ref[...],
                preferred_element_type=jnp.float32) + bq_ref[...]     # (Bt*Se, D)
    K = jnp.dot(xn_c, wk_ref[...],
                preferred_element_type=jnp.float32) + bk_ref[...]     # (Bt*S,  D)
    V = jnp.dot(xn_c, wv_ref[...],
                preferred_element_type=jnp.float32) + bv_ref[...]     # (Bt*S,  D)

    # --- multi-head attention: Bt-batched contraction per head ---------------
    scale = 1.0 / math.sqrt(dh)
    Qc = (Q * scale).astype(cd).reshape(Bt, Se, D)
    Kc = K.astype(cd).reshape(Bt, S, D)
    Vc = V.astype(cd).reshape(Bt, S, D)

    ctx_heads = []
    for h in range(num_heads):                       # static loop; dh=128 at real size
        sl = slice(h * dh, (h + 1) * dh)
        s = jnp.einsum('bqd,bkd->bqk', Qc[:, :, sl], Kc[:, :, sl],
                       preferred_element_type=jnp.float32)            # (Bt, Se, S)
        s = s - jnp.max(s, axis=-1, keepdims=True)
        p = jnp.exp(s)
        p = p * pl.reciprocal(jnp.sum(p, axis=-1, keepdims=True), approx=True)
        ctx = jnp.einsum('bqk,bkd->bqd', p.astype(cd), Vc[:, :, sl],
                         preferred_element_type=jnp.float32)          # (Bt, Se, dh)
        ctx_heads.append(ctx.reshape(Bt * Se, dh))
    ctx_all = jnp.concatenate(ctx_heads, axis=-1)                     # (Bt*Se, D)

    attn = jnp.dot(ctx_all.astype(cd), wo_ref[...],
                   preferred_element_type=jnp.float32) + bo_ref[...]  # (Bt*Se, D)

    # --- LayerNorm2 (f32) -----------------------------------------------------
    mu2 = jnp.mean(attn, axis=-1, keepdims=True)
    ac = attn - mu2
    var2 = jnp.mean(ac * ac, axis=-1, keepdims=True)
    an = ac * jax.lax.rsqrt(var2 + LN_EPS)
    an = an * ln2w_ref[...] + ln2b_ref[...]

    # --- MLP (exact erf GELU, matching nn.GELU default) + residual -----------
    h1 = jnp.dot(an.astype(cd), w1_ref[...],
                 preferred_element_type=jnp.float32) + b1_ref[...]
    h1 = 0.5 * h1 * (1.0 + jax.lax.erf(h1 * (1.0 / math.sqrt(2.0))))
    y = jnp.dot(h1.astype(cd), w2_ref[...],
                preferred_element_type=jnp.float32) + b2_ref[...]

    out_ref[...] = (y + attn).reshape(Bt, Se, D).astype(out_ref.dtype)


# ----------------------------------------------------------------------------
# Wrapper
# ----------------------------------------------------------------------------
def delta_cross_cat_block(delta, embedding, params, *, num_heads=8,
                          compute_dtype=jnp.bfloat16, batch_tile=None):
    B, Sd, D = delta.shape
    _, Se, De = embedding.shape
    assert De == D and embedding.shape[0] == B
    assert D % num_heads == 0, "feat_dim must be divisible by num_heads"
    S = Sd + Se

    if batch_tile is None:
        batch_tile = min(B, 8)
    batch_tile = max(1, min(batch_tile, B))
    while B % batch_tile != 0:          # keep it a divisor of B (simple, no masking)
        batch_tile -= 1
    Bt = batch_tile

    (ln1w, ln1b, wq, bq, wk, bk, wv, bv, wo, bo,
     ln2w, ln2b, w1, b1, w2, b2) = params
    Dh = w1.shape[1]

    # Pre-cast the large weight matrices to the MXU compute dtype (halves DMA bytes);
    # biases / LN params stay f32 (added in the f32 accumulator domain).
    wq_c, wk_c, wv_c, wo_c, w1_c, w2_c = (
        w.astype(compute_dtype) for w in (wq, wk, wv, wo, w1, w2))

    def const_spec(shape):
        nd = len(shape)
        return pl.BlockSpec(shape, lambda b, _nd=nd: (0,) * _nd)

    in_specs = [
        pl.BlockSpec((Bt, Sd, D), lambda b: (b, 0, 0)),   # delta
        pl.BlockSpec((Bt, Se, D), lambda b: (b, 0, 0)),   # embedding (query)
        const_spec((1, D)), const_spec((1, D)),           # ln1 w, b
        const_spec((D, D)), const_spec((1, D)),           # wq, bq
        const_spec((D, D)), const_spec((1, D)),           # wk, bk
        const_spec((D, D)), const_spec((1, D)),           # wv, bv
        const_spec((D, D)), const_spec((1, D)),           # wo, bo
        const_spec((1, D)), const_spec((1, D)),           # ln2 w, b
        const_spec((D, Dh)), const_spec((1, Dh)),         # mlp fc1
        const_spec((Dh, D)), const_spec((1, D)),          # mlp fc2
    ]

    out = pl.pallas_call(
        functools.partial(_delta_block_kernel,
                          num_heads=num_heads, compute_dtype=compute_dtype),
        out_shape=jax.ShapeDtypeStruct((B, Se, D), embedding.dtype),
        grid=(B // Bt,),
        in_specs=in_specs,
        out_specs=pl.BlockSpec((Bt, Se, D), lambda b: (b, 0, 0)),
        scratch_shapes=[pltpu.VMEM((Bt, S, D), jnp.float32)],
        compiler_params=pltpu.CompilerParams(
            dimension_semantics=("parallel",),            # batch blocks are independent
            vmem_limit_bytes=64 * 1024 * 1024,
        ),
    )(delta, embedding, ln1w, ln1b, wq_c, bq, wk_c, bk, wv_c, bv, wo_c, bo,
      ln2w, ln2b, w1_c, b1, w2_c, b2)
    return out, embedding


# ----------------------------------------------------------------------------
# Deterministic parameter init (shapes implied by the module __init__)
# ----------------------------------------------------------------------------
def init_params(key, feat_dim):
    D = feat_dim
    Dh = 2 * D
    keys = jax.random.split(key, 16)

    def n(k, shape, s):
        return jax.random.normal(k, shape, jnp.float32) * s

    ln1w = jnp.ones((1, D), jnp.float32) + n(keys[0], (1, D), 0.01)
    ln1b = n(keys[1], (1, D), 0.01)
    wq = n(keys[2], (D, D), 0.05); bq = n(keys[3], (1, D), 0.01)
    wk = n(keys[4], (D, D), 0.05); bk = n(keys[5], (1, D), 0.01)
    wv = n(keys[6], (D, D), 0.05); bv = n(keys[7], (1, D), 0.01)
    wo = n(keys[8], (D, D), 0.05); bo = n(keys[9], (1, D), 0.01)
    ln2w = jnp.ones((1, D), jnp.float32) + n(keys[10], (1, D), 0.01)
    ln2b = n(keys[11], (1, D), 0.01)
    w1 = n(keys[12], (D, Dh), 0.05); b1 = n(keys[13], (1, Dh), 0.01)
    w2 = n(keys[14], (Dh, D), 0.05); b2 = n(keys[15], (1, D), 0.01)
    return (ln1w, ln1b, wq, bq, wk, bk, wv, bv, wo, bo,
            ln2w, ln2b, w1, b1, w2, b2)


# ----------------------------------------------------------------------------
# Pure-JAX reference (mirrors the PyTorch forward) for verification
# ----------------------------------------------------------------------------
def reference(delta, embedding, params, num_heads):
    (ln1w, ln1b, wq, bq, wk, bk, wv, bv, wo, bo,
     ln2w, ln2b, w1, b1, w2, b2) = params
    B, Sd, D = delta.shape
    Se = embedding.shape[1]
    S = Sd + Se
    dh = D // num_heads

    def ln(x, w, b):
        mu = x.mean(-1, keepdims=True)
        var = ((x - mu) ** 2).mean(-1, keepdims=True)
        return (x - mu) / jnp.sqrt(var + LN_EPS) * w + b

    x1 = jnp.concatenate([delta, embedding], axis=1)          # (B, S, D)
    nx = ln(x1, ln1w, ln1b)
    Q = embedding @ wq + bq
    K = nx @ wk + bk
    V = nx @ wv + bv
    Qh = Q.reshape(B, Se, num_heads, dh).transpose(0, 2, 1, 3)
    Kh = K.reshape(B, S, num_heads, dh).transpose(0, 2, 1, 3)
    Vh = V.reshape(B, S, num_heads, dh).transpose(0, 2, 1, 3)
    s = jnp.einsum('bhqd,bhkd->bhqk', Qh, Kh) / math.sqrt(dh)
    p = jax.nn.softmax(s, axis=-1)
    o = jnp.einsum('bhqk,bhkd->bhqd', p, Vh).transpose(0, 2, 1, 3).reshape(B, Se, D)
    attn = o @ wo + bo
    an = ln(attn, ln2w, ln2b)
    h1 = jax.nn.gelu(an @ w1 + b1, approximate=False)
    return h1 @ w2 + b2 + attn, embedding


if __name__ == "__main__":
    key = jax.random.PRNGKey(0)
    B, Sd, Se, D = 4, 16, 16, 128       # feat_dim=128 (8 heads -> dh=16), small test
    num_heads = 8
    k1, k2, kp = jax.random.split(key, 3)
    delta = jax.random.normal(k1, (B, Sd, D), jnp.float32)
    embedding = jax.random.normal(k2, (B, Se, D), jnp.float32)
    params = init_params(kp, D)

    # f32 MXU path: validates the math tightly (only approx-reciprocal softmax differs).
    out_f32, emb_out = delta_cross_cat_block(
        delta, embedding, params, num_heads=num_heads,
        compute_dtype=jnp.float32, batch_tile=2)
    # bf16 MXU path: the performance configuration (f32 accumulation).
    out_bf16, _ = delta_cross_cat_block(
        delta, embedding, params, num_heads=num_heads,
        compute_dtype=jnp.bfloat16, batch_tile=2)
    jax.block_until_ready((out_f32, out_bf16, emb_out))

    ref_out, _ = reference(delta, embedding, params, num_heads)
    assert out_f32.shape == (B, Se, D)
    assert out_bf16.shape == (B, Se, D)
    assert jnp.allclose(out_f32, ref_out, atol=2e-3, rtol=2e-3)
    assert jnp.allclose(out_bf16, ref_out, atol=5e-2, rtol=5e-2)
    assert jnp.array_equal(emb_out, embedding)
    print("KERNEL_OK")
</pallas_src>

<mosaic_0001>
module attributes {stable_mosaic.version = 11 : i64} {
  func.func @_delta_block_kernel(%arg0: i32, %arg1: memref<2x16x128xf32, #tpu.memory_space<vmem>>, %arg2: memref<2x16x128xf32, #tpu.memory_space<vmem>>, %arg3: memref<1x128xf32, #tpu.memory_space<vmem>>, %arg4: memref<1x128xf32, #tpu.memory_space<vmem>>, %arg5: memref<128x128xf32, #tpu.memory_space<vmem>>, %arg6: memref<1x128xf32, #tpu.memory_space<vmem>>, %arg7: memref<128x128xf32, #tpu.memory_space<vmem>>, %arg8: memref<1x128xf32, #tpu.memory_space<vmem>>, %arg9: memref<128x128xf32, #tpu.memory_space<vmem>>, %arg10: memref<1x128xf32, #tpu.memory_space<vmem>>, %arg11: memref<128x128xf32, #tpu.memory_space<vmem>>, %arg12: memref<1x128xf32, #tpu.memory_space<vmem>>, %arg13: memref<1x128xf32, #tpu.memory_space<vmem>>, %arg14: memref<1x128xf32, #tpu.memory_space<vmem>>, %arg15: memref<128x256xf32, #tpu.memory_space<vmem>>, %arg16: memref<1x256xf32, #tpu.memory_space<vmem>>, %arg17: memref<256x128xf32, #tpu.memory_space<vmem>>, %arg18: memref<1x128xf32, #tpu.memory_space<vmem>>, %arg19: memref<2x16x128xf32, #tpu.memory_space<vmem>>, %arg20: memref<2x32x128xf32, #tpu.memory_space<vmem>>) attributes {dimension_semantics = [#tpu.dimension_semantics<parallel>], iteration_bounds = array<i64: 2>, scalar_prefetch = 0 : i64, scratch_operands = 1 : i64, tpu.core_type = #tpu.core_type<tc>, window_params = [{transform_indices = @transform_0, window_bounds = array<i64: 2, 16, 128>}, {transform_indices = @transform_1, window_bounds = array<i64: 2, 16, 128>}, {pipeline_mode = #tpu.pipeline_mode<synchronous>, transform_indices = @transform_2, window_bounds = array<i64: 1, 128>}, {pipeline_mode = #tpu.pipeline_mode<synchronous>, transform_indices = @transform_3, window_bounds = array<i64: 1, 128>}, {pipeline_mode = #tpu.pipeline_mode<synchronous>, transform_indices = @transform_4, window_bounds = array<i64: 128, 128>}, {pipeline_mode = #tpu.pipeline_mode<synchronous>, transform_indices = @transform_5, window_bounds = array<i64: 1, 128>}, {pipeline_mode = #tpu.pipeline_mode<synchronous>, transform_indices = @transform_6, window_bounds = array<i64: 128, 128>}, {pipeline_mode = #tpu.pipeline_mode<synchronous>, transform_indices = @transform_7, window_bounds = array<i64: 1, 128>}, {pipeline_mode = #tpu.pipeline_mode<synchronous>, transform_indices = @transform_8, window_bounds = array<i64: 128, 128>}, {pipeline_mode = #tpu.pipeline_mode<synchronous>, transform_indices = @transform_9, window_bounds = array<i64: 1, 128>}, {pipeline_mode = #tpu.pipeline_mode<synchronous>, transform_indices = @transform_10, window_bounds = array<i64: 128, 128>}, {pipeline_mode = #tpu.pipeline_mode<synchronous>, transform_indices = @transform_11, window_bounds = array<i64: 1, 128>}, {pipeline_mode = #tpu.pipeline_mode<synchronous>, transform_indices = @transform_12, window_bounds = array<i64: 1, 128>}, {pipeline_mode = #tpu.pipeline_mode<synchronous>, transform_indices = @transform_13, window_bounds = array<i64: 1, 128>}, {pipeline_mode = #tpu.pipeline_mode<synchronous>, transform_indices = @transform_14, window_bounds = array<i64: 128, 256>}, {pipeline_mode = #tpu.pipeline_mode<synchronous>, transform_indices = @transform_15, window_bounds = array<i64: 1, 256>}, {pipeline_mode = #tpu.pipeline_mode<synchronous>, transform_indices = @transform_16, window_bounds = array<i64: 256, 128>}, {pipeline_mode = #tpu.pipeline_mode<synchronous>, transform_indices = @transform_17, window_bounds = array<i64: 1, 128>}, {transform_indices = @transform_18, window_bounds = array<i64: 2, 16, 128>}]} {
    %c0 = arith.constant 0 : index
    %c0_0 = arith.constant 0 : index
    %c0_1 = arith.constant 0 : index
    %0 = vector.load %arg1[%c0, %c0_0, %c0_1] : memref<2x16x128xf32, #tpu.memory_space<vmem>>, vector<2x16x128xf32>
    %c0_2 = arith.constant 0 : index
    %c0_3 = arith.constant 0 : index
    %c0_4 = arith.constant 0 : index
    %1 = vector.load %arg2[%c0_2, %c0_3, %c0_4] : memref<2x16x128xf32, #tpu.memory_space<vmem>>, vector<2x16x128xf32>
    %c0_5 = arith.constant 0 : index
    %c0_6 = arith.constant 0 : index
    %c0_7 = arith.constant 0 : index
    %2 = vector.load %arg20[%c0_5, %c0_6, %c0_7] : memref<2x32x128xf32, #tpu.memory_space<vmem>>, vector<2x16x128xf32>
    tpu.vector_store %arg20[%c0_5, %c0_6, %c0_7], %0 {strides = array<i32>} : memref<2x32x128xf32, #tpu.memory_space<vmem>>, vector<2x16x128xf32>,
    %c0_8 = arith.constant 0 : index
    %c16 = arith.constant 16 : index
    %c0_9 = arith.constant 0 : index
    %3 = vector.load %arg20[%c0_8, %c16, %c0_9] : memref<2x32x128xf32, #tpu.memory_space<vmem>>, vector<2x16x128xf32>
    tpu.vector_store %arg20[%c0_8, %c16, %c0_9], %1 {strides = array<i32>} : memref<2x32x128xf32, #tpu.memory_space<vmem>>, vector<2x16x128xf32>,
    %c0_10 = arith.constant 0 : index
    %c0_11 = arith.constant 0 : index
    %c0_12 = arith.constant 0 : index
    %4 = vector.load %arg20[%c0_10, %c0_11, %c0_12] : memref<2x32x128xf32, #tpu.memory_space<vmem>>, vector<2x32x128xf32>
    %5 = vector.shape_cast %4 : vector<2x32x128xf32> to vector<64x128xf32>
    %cst = arith.constant dense<0.000000e+00> : vector<64xf32>
    %6 = vector.multi_reduction <add>, %5, %cst [1] : vector<64x128xf32> to vector<64xf32>
    %7 = vector.shape_cast %6 : vector<64xf32> to vector<64x1xf32>
    %cst_13 = arith.constant 1.280000e+02 : f32
    %8 = vector.broadcast %cst_13 : f32 to vector<64x1xf32>
    %9 = arith.divf %7, %8 : vector<64x1xf32>
    %10 = vector.broadcast %9 : vector<64x1xf32> to vector<64x128xf32>
    %11 = arith.subf %5, %10 : vector<64x128xf32>
    %12 = arith.mulf %11, %11 : vector<64x128xf32>
    %cst_14 = arith.constant dense<0.000000e+00> : vector<64xf32>
    %13 = vector.multi_reduction <add>, %12, %cst_14 [1] : vector<64x128xf32> to vector<64xf32>
    %14 = vector.shape_cast %13 : vector<64xf32> to vector<64x1xf32>
    %cst_15 = arith.constant 1.280000e+02 : f32
    %15 = vector.broadcast %cst_15 : f32 to vector<64x1xf32>
    %16 = arith.divf %14, %15 : vector<64x1xf32>
    %cst_16 = arith.constant 9.99999974E-6 : f32
    %17 = vector.broadcast %cst_16 : f32 to vector<64x1xf32>
    %18 = arith.addf %16, %17 : vector<64x1xf32>
    %19 = math.rsqrt %18 : vector<64x1xf32>
    %20 = vector.broadcast %19 : vector<64x1xf32> to vector<64x128xf32>
    %21 = arith.mulf %11, %20 : vector<64x128xf32>
    %c0_17 = arith.constant 0 : index
    %c0_18 = arith.constant 0 : index
    %22 = vector.load %arg3[%c0_17, %c0_18] : memref<1x128xf32, #tpu.memory_space<vmem>>, vector<1x128xf32>
    %23 = vector.broadcast %22 : vector<1x128xf32> to vector<64x128xf32>
    %24 = arith.mulf %21, %23 : vector<64x128xf32>
    %c0_19 = arith.constant 0 : index
    %c0_20 = arith.constant 0 : index
    %25 = vector.load %arg4[%c0_19, %c0_20] : memref<1x128xf32, #tpu.memory_space<vmem>>, vector<1x128xf32>
    %26 = vector.broadcast %25 : vector<1x128xf32> to vector<64x128xf32>
    %27 = arith.addf %24, %26 : vector<64x128xf32>
    %28 = vector.shape_cast %1 : vector<2x16x128xf32> to vector<32x128xf32>
    %c0_21 = arith.constant 0 : index
    %c0_22 = arith.constant 0 : index
    %29 = vector.load %arg5[%c0_21, %c0_22] : memref<128x128xf32, #tpu.memory_space<vmem>>, vector<128x128xf32>
    %cst_23 = arith.constant dense<0.000000e+00> : vector<32x128xf32>
    %30 = tpu.matmul %28, %29, %cst_23 {dimension_numbers = #tpu.dot_dimension_numbers<[1], [0], [0], [1], [0, 0, 1, 1], [], []>} : vector<32x128xf32>, vector<128x128xf32>, vector<32x128xf32> -> vector<32x128xf32>
    %c0_24 = arith.constant 0 : index
    %c0_25 = arith.constant 0 : index
    %31 = vector.load %arg6[%c0_24, %c0_25] : memref<1x128xf32, #tpu.memory_space<vmem>>, vector<1x128xf32>
    %32 = vector.broadcast %31 : vector<1x128xf32> to vector<32x128xf32>
    %33 = arith.addf %30, %32 : vector<32x128xf32>
    %c0_26 = arith.constant 0 : index
    %c0_27 = arith.constant 0 : index
    %34 = vector.load %arg7[%c0_26, %c0_27] : memref<128x128xf32, #tpu.memory_space<vmem>>, vector<128x128xf32>
    %cst_28 = arith.constant dense<0.000000e+00> : vector<64x128xf32>
    %35 = tpu.matmul %27, %34, %cst_28 {dimension_numbers = #tpu.dot_dimension_numbers<[1], [0], [0], [1], [0, 0, 1, 1], [], []>} : vector<64x128xf32>, vector<128x128xf32>, vector<64x128xf32> -> vector<64x128xf32>
    %c0_29 = arith.constant 0 : index
    %c0_30 = arith.constant 0 : index
    %36 = vector.load %arg8[%c0_29, %c0_30] : memref<1x128xf32, #tpu.memory_space<vmem>>, vector<1x128xf32>
    %37 = vector.broadcast %36 : vector<1x128xf32> to vector<64x128xf32>
    %38 = arith.addf %35, %37 : vector<64x128xf32>
    %c0_31 = arith.constant 0 : index
    %c0_32 = arith.constant 0 : index
    %39 = vector.load %arg9[%c0_31, %c0_32] : memref<128x128xf32, #tpu.memory_space<vmem>>, vector<128x128xf32>
    %cst_33 = arith.constant dense<0.000000e+00> : vector<64x128xf32>
    %40 = tpu.matmul %27, %39, %cst_33 {dimension_numbers = #tpu.dot_dimension_numbers<[1], [0], [0], [1], [0, 0, 1, 1], [], []>} : vector<64x128xf32>, vector<128x128xf32>, vector<64x128xf32> -> vector<64x128xf32>
    %c0_34 = arith.constant 0 : index
    %c0_35 = arith.constant 0 : index
    %41 = vector.load %arg10[%c0_34, %c0_35] : memref<1x128xf32, #tpu.memory_space<vmem>>, vector<1x128xf32>
    %42 = vector.broadcast %41 : vector<1x128xf32> to vector<64x128xf32>
    %43 = arith.addf %40, %42 : vector<64x128xf32>
    %cst_36 = arith.constant 2.500000e-01 : f32
    %44 = vector.broadcast %cst_36 : f32 to vector<32x128xf32>
    %45 = arith.mulf %33, %44 : vector<32x128xf32>
    %46 = vector.shape_cast %45 : vector<32x128xf32> to vector<2x16x128xf32>
    %47 = vector.shape_cast %38 : vector<64x128xf32> to vector<2x32x128xf32>
    %48 = vector.shape_cast %43 : vector<64x128xf32> to vector<2x32x128xf32>
    %49 = vector.extract_strided_slice %46 {offsets = [0, 0, 0], sizes = [2, 16, 16], strides = [1, 1, 1]} : vector<2x16x128xf32> to vector<2x16x16xf32>
    %50 = vector.extract_strided_slice %47 {offsets = [0, 0, 0], sizes = [2, 32, 16], strides = [1, 1, 1]} : vector<2x32x128xf32> to vector<2x32x16xf32>
    "tpu.trace_start"() <{level = 10 : i32, message = "bqd,bkd->bqk"}> : () -> ()
    %cst_37 = arith.constant dense<0.000000e+00> : vector<2x16x32xf32>
    %51 = tpu.matmul %49, %50, %cst_37 {dimension_numbers = #tpu.dot_dimension_numbers<[2], [2], [1], [1], [0, 0, 0, 1, 1, 1], [0], [0]>} : vector<2x16x16xf32>, vector<2x32x16xf32>, vector<2x16x32xf32> -> vector<2x16x32xf32>
    "tpu.trace_stop"() : () -> ()
    %cst_38 = arith.constant dense<0xFF800000> : vector<2x16xf32>
    %52 = vector.multi_reduction <maximumf>, %51, %cst_38 [2] : vector<2x16x32xf32> to vector<2x16xf32>
    %53 = vector.shape_cast %52 : vector<2x16xf32> to vector<2x16x1xf32>
    %54 = vector.broadcast %53 : vector<2x16x1xf32> to vector<2x16x32xf32>
    %55 = arith.subf %51, %54 : vector<2x16x32xf32>
    %56 = math.exp %55 : vector<2x16x32xf32>
    %cst_39 = arith.constant dense<0.000000e+00> : vector<2x16xf32>
    %57 = vector.multi_reduction <add>, %56, %cst_39 [2] : vector<2x16x32xf32> to vector<2x16xf32>
    %58 = vector.shape_cast %57 : vector<2x16xf32> to vector<2x16x1xf32>
    %59 = tpu.reciprocal %58 {approx = true} : vector<2x16x1xf32> -> vector<2x16x1xf32>
    %60 = vector.broadcast %59 : vector<2x16x1xf32> to vector<2x16x32xf32>
    %61 = arith.mulf %56, %60 : vector<2x16x32xf32>
    %62 = vector.extract_strided_slice %48 {offsets = [0, 0, 0], sizes = [2, 32, 16], strides = [1, 1, 1]} : vector<2x32x128xf32> to vector<2x32x16xf32>
    "tpu.trace_start"() <{level = 10 : i32, message = "bqk,bkd->bqd"}> : () -> ()
    %cst_40 = arith.constant dense<0.000000e+00> : vector<2x16x16xf32>
    %63 = tpu.matmul %61, %62, %cst_40 {dimension_numbers = #tpu.dot_dimension_numbers<[2], [1], [1], [2], [0, 0, 0, 1, 1, 2], [0], [0]>} : vector<2x16x32xf32>, vector<2x32x16xf32>, vector<2x16x16xf32> -> vector<2x16x16xf32>
    "tpu.trace_stop"() : () -> ()
    %64 = vector.shape_cast %63 : vector<2x16x16xf32> to vector<32x16xf32>
    %65 = vector.extract_strided_slice %46 {offsets = [0, 0, 16], sizes = [2, 16, 16], strides = [1, 1, 1]} : vector<2x16x128xf32> to vector<2x16x16xf32>
    %66 = vector.extract_strided_slice %47 {offsets = [0, 0, 16], sizes = [2, 32, 16], strides = [1, 1, 1]} : vector<2x32x128xf32> to vector<2x32x16xf32>
    "tpu.trace_start"() <{level = 10 : i32, message = "bqd,bkd->bqk"}> : () -> ()
    %cst_41 = arith.constant dense<0.000000e+00> : vector<2x16x32xf32>
    %67 = tpu.matmul %65, %66, %cst_41 {dimension_numbers = #tpu.dot_dimension_numbers<[2], [2], [1], [1], [0, 0, 0, 1, 1, 1], [0], [0]>} : vector<2x16x16xf32>, vector<2x32x16xf32>, vector<2x16x32xf32> -> vector<2x16x32xf32>
    "tpu.trace_stop"() : () -> ()
    %cst_42 = arith.constant dense<0xFF800000> : vector<2x16xf32>
    %68 = vector.multi_reduction <maximumf>, %67, %cst_42 [2] : vector<2x16x32xf32> to vector<2x16xf32>
    %69 = vector.shape_cast %68 : vector<2x16xf32> to vector<2x16x1xf32>
    %70 = vector.broadcast %69 : vector<2x16x1xf32> to vector<2x16x32xf32>
    %71 = arith.subf %67, %70 : vector<2x16x32xf32>
    %72 = math.exp %71 : vector<2x16x32xf32>
    %cst_43 = arith.constant dense<0.000000e+00> : vector<2x16xf32>
    %73 = vector.multi_reduction <add>, %72, %cst_43 [2] : vector<2x16x32xf32> to vector<2x16xf32>
    %74 = vector.shape_cast %73 : vector<2x16xf32> to vector<2x16x1xf32>
    %75 = tpu.reciprocal %74 {approx = true} : vector<2x16x1xf32> -> vector<2x16x1xf32>
    %76 = vector.broadcast %75 : vector<2x16x1xf32> to vector<2x16x32xf32>
    %77 = arith.mulf %72, %76 : vector<2x16x32xf32>
    %78 = vector.extract_strided_slice %48 {offsets = [0, 0, 16], sizes = [2, 32, 16], strides = [1, 1, 1]} : vector<2x32x128xf32> to vector<2x32x16xf32>
    "tpu.trace_start"() <{level = 10 : i32, message = "bqk,bkd->bqd"}> : () -> ()
    %cst_44 = arith.constant dense<0.000000e+00> : vector<2x16x16xf32>
    %79 = tpu.matmul %77, %78, %cst_44 {dimension_numbers = #tpu.dot_dimension_numbers<[2], [1], [1], [2], [0, 0, 0, 1, 1, 2], [0], [0]>} : vector<2x16x32xf32>, vector<2x32x16xf32>, vector<2x16x16xf32> -> vector<2x16x16xf32>
    "tpu.trace_stop"() : () -> ()
    %80 = vector.shape_cast %79 : vector<2x16x16xf32> to vector<32x16xf32>
    %81 = vector.extract_strided_slice %46 {offsets = [0, 0, 32], sizes = [2, 16, 16], strides = [1, 1, 1]} : vector<2x16x128xf32> to vector<2x16x16xf32>
    %82 = vector.extract_strided_slice %47 {offsets = [0, 0, 32], sizes = [2, 32, 16], strides = [1, 1, 1]} : vector<2x32x128xf32> to vector<2x32x16xf32>
    "tpu.trace_start"() <{level = 10 : i32, message = "bqd,bkd->bqk"}> : () -> ()
    %cst_45 = arith.constant dense<0.000000e+00> : vector<2x16x32xf32>
    %83 = tpu.matmul %81, %82, %cst_45 {dimension_numbers = #tpu.dot_dimension_numbers<[2], [2], [1], [1], [0, 0, 0, 1, 1, 1], [0], [0]>} : vector<2x16x16xf32>, vector<2x32x16xf32>, vector<2x16x32xf32> -> vector<2x16x32xf32>
    "tpu.trace_stop"() : () -> ()
    %cst_46 = arith.constant dense<0xFF800000> : vector<2x16xf32>
    %84 = vector.multi_reduction <maximumf>, %83, %cst_46 [2] : vector<2x16x32xf32> to vector<2x16xf32>
    %85 = vector.shape_cast %84 : vector<2x16xf32> to vector<2x16x1xf32>
    %86 = vector.broadcast %85 : vector<2x16x1xf32> to vector<2x16x32xf32>
    %87 = arith.subf %83, %86 : vector<2x16x32xf32>
    %88 = math.exp %87 : vector<2x16x32xf32>
    %cst_47 = arith.constant dense<0.000000e+00> : vector<2x16xf32>
    %89 = vector.multi_reduction <add>, %88, %cst_47 [2] : vector<2x16x32xf32> to vector<2x16xf32>
    %90 = vector.shape_cast %89 : vector<2x16xf32> to vector<2x16x1xf32>
    %91 = tpu.reciprocal %90 {approx = true} : vector<2x16x1xf32> -> vector<2x16x1xf32>
    %92 = vector.broadcast %91 : vector<2x16x1xf32> to vector<2x16x32xf32>
    %93 = arith.mulf %88, %92 : vector<2x16x32xf32>
    %94 = vector.extract_strided_slice %48 {offsets = [0, 0, 32], sizes = [2, 32, 16], strides = [1, 1, 1]} : vector<2x32x128xf32> to vector<2x32x16xf32>
    "tpu.trace_start"() <{level = 10 : i32, message = "bqk,bkd->bqd"}> : () -> ()
    %cst_48 = arith.constant dense<0.000000e+00> : vector<2x16x16xf32>
    %95 = tpu.matmul %93, %94, %cst_48 {dimension_numbers = #tpu.dot_dimension_numbers<[2], [1], [1], [2], [0, 0, 0, 1, 1, 2], [0], [0]>} : vector<2x16x32xf32>, vector<2x32x16xf32>, vector<2x16x16xf32> -> vector<2x16x16xf32>
    "tpu.trace_stop"() : () -> ()
    %96 = vector.shape_cast %95 : vector<2x16x16xf32> to vector<32x16xf32>
    %97 = vector.extract_strided_slice %46 {offsets = [0, 0, 48], sizes = [2, 16, 16], strides = [1, 1, 1]} : vector<2x16x128xf32> to vector<2x16x16xf32>
    %98 = vector.extract_strided_slice %47 {offsets = [0, 0, 48], sizes = [2, 32, 16], strides = [1, 1, 1]} : vector<2x32x128xf32> to vector<2x32x16xf32>
    "tpu.trace_start"() <{level = 10 : i32, message = "bqd,bkd->bqk"}> : () -> ()
    %cst_49 = arith.constant dense<0.000000e+00> : vector<2x16x32xf32>
    %99 = tpu.matmul %97, %98, %cst_49 {dimension_numbers = #tpu.dot_dimension_numbers<[2], [2], [1], [1], [0, 0, 0, 1, 1, 1], [0], [0]>} : vector<2x16x16xf32>, vector<2x32x16xf32>, vector<2x16x32xf32> -> vector<2x16x32xf32>
    "tpu.trace_stop"() : () -> ()
    %cst_50 = arith.constant dense<0xFF800000> : vector<2x16xf32>
    %100 = vector.multi_reduction <maximumf>, %99, %cst_50 [2] : vector<2x16x32xf32> to vector<2x16xf32>
    %101 = vector.shape_cast %100 : vector<2x16xf32> to vector<2x16x1xf32>
    %102 = vector.broadcast %101 : vector<2x16x1xf32> to vector<2x16x32xf32>
    %103 = arith.subf %99, %102 : vector<2x16x32xf32>
    %104 = math.exp %103 : vector<2x16x32xf32>
    %cst_51 = arith.constant dense<0.000000e+00> : vector<2x16xf32>
    %105 = vector.multi_reduction <add>, %104, %cst_51 [2] : vector<2x16x32xf32> to vector<2x16xf32>
    %106 = vector.shape_cast %105 : vector<2x16xf32> to vector<2x16x1xf32>
    %107 = tpu.reciprocal %106 {approx = true} : vector<2x16x1xf32> -> vector<2x16x1xf32>
    %108 = vector.broadcast %107 : vector<2x16x1xf32> to vector<2x16x32xf32>
    %109 = arith.mulf %104, %108 : vector<2x16x32xf32>
    %110 = vector.extract_strided_slice %48 {offsets = [0, 0, 48], sizes = [2, 32, 16], strides = [1, 1, 1]} : vector<2x32x128xf32> to vector<2x32x16xf32>
    "tpu.trace_start"() <{level = 10 : i32, message = "bqk,bkd->bqd"}> : () -> ()
    %cst_52 = arith.constant dense<0.000000e+00> : vector<2x16x16xf32>
    %111 = tpu.matmul %109, %110, %cst_52 {dimension_numbers = #tpu.dot_dimension_numbers<[2], [1], [1], [2], [0, 0, 0, 1, 1, 2], [0], [0]>} : vector<2x16x32xf32>, vector<2x32x16xf32>, vector<2x16x16xf32> -> vector<2x16x16xf32>
    "tpu.trace_stop"() : () -> ()
    %112 = vector.shape_cast %111 : vector<2x16x16xf32> to vector<32x16xf32>
    %113 = vector.extract_strided_slice %46 {offsets = [0, 0, 64], sizes = [2, 16, 16], strides = [1, 1, 1]} : vector<2x16x128xf32> to vector<2x16x16xf32>
    %114 = vector.extract_strided_slice %47 {offsets = [0, 0, 64], sizes = [2, 32, 16], strides = [1, 1, 1]} : vector<2x32x128xf32> to vector<2x32x16xf32>
    "tpu.trace_start"() <{level = 10 : i32, message = "bqd,bkd->bqk"}> : () -> ()
    %cst_53 = arith.constant dense<0.000000e+00> : vector<2x16x32xf32>
    %115 = tpu.matmul %113, %114, %cst_53 {dimension_numbers = #tpu.dot_dimension_numbers<[2], [2], [1], [1], [0, 0, 0, 1, 1, 1], [0], [0]>} : vector<2x16x16xf32>, vector<2x32x16xf32>, vector<2x16x32xf32> -> vector<2x16x32xf32>
    "tpu.trace_stop"() : () -> ()
    %cst_54 = arith.constant dense<0xFF800000> : vector<2x16xf32>
    %116 = vector.multi_reduction <maximumf>, %115, %cst_54 [2] : vector<2x16x32xf32> to vector<2x16xf32>
    %117 = vector.shape_cast %116 : vector<2x16xf32> to vector<2x16x1xf32>
    %118 = vector.broadcast %117 : vector<2x16x1xf32> to vector<2x16x32xf32>
    %119 = arith.subf %115, %118 : vector<2x16x32xf32>
    %120 = math.exp %119 : vector<2x16x32xf32>
    %cst_55 = arith.constant dense<0.000000e+00> : vector<2x16xf32>
    %121 = vector.multi_reduction <add>, %120, %cst_55 [2] : vector<2x16x32xf32> to vector<2x16xf32>
    %122 = vector.shape_cast %121 : vector<2x16xf32> to vector<2x16x1xf32>
    %123 = tpu.reciprocal %122 {approx = true} : vector<2x16x1xf32> -> vector<2x16x1xf32>
    %124 = vector.broadcast %123 : vector<2x16x1xf32> to vector<2x16x32xf32>
    %125 = arith.mulf %120, %124 : vector<2x16x32xf32>
    %126 = vector.extract_strided_slice %48 {offsets = [0, 0, 64], sizes = [2, 32, 16], strides = [1, 1, 1]} : vector<2x32x128xf32> to vector<2x32x16xf32>
    "tpu.trace_start"() <{level = 10 : i32, message = "bqk,bkd->bqd"}> : () -> ()
    %cst_56 = arith.constant dense<0.000000e+00> : vector<2x16x16xf32>
    %127 = tpu.matmul %125, %126, %cst_56 {dimension_numbers = #tpu.dot_dimension_numbers<[2], [1], [1], [2], [0, 0, 0, 1, 1, 2], [0], [0]>} : vector<2x16x32xf32>, vector<2x32x16xf32>, vector<2x16x16xf32> -> vector<2x16x16xf32>
    "tpu.trace_stop"() : () -> ()
    %128 = vector.shape_cast %127 : vector<2x16x16xf32> to vector<32x16xf32>
    %129 = vector.extract_strided_slice %46 {offsets = [0, 0, 80], sizes = [2, 16, 16], strides = [1, 1, 1]} : vector<2x16x128xf32> to vector<2x16x16xf32>
    %130 = vector.extract_strided_slice %47 {offsets = [0, 0, 80], sizes = [2, 32, 16], strides = [1, 1, 1]} : vector<2x32x128xf32> to vector<2x32x16xf32>
    "tpu.trace_start"() <{level = 10 : i32, message = "bqd,bkd->bqk"}> : () -> ()
    %cst_57 = arith.constant dense<0.000000e+00> : vector<2x16x32xf32>
    %131 = tpu.matmul %129, %130, %cst_57 {dimension_numbers = #tpu.dot_dimension_numbers<[2], [2], [1], [1], [0, 0, 0, 1, 1, 1], [0], [0]>} : vector<2x16x16xf32>, vector<2x32x16xf32>, vector<2x16x32xf32> -> vector<2x16x32xf32>
    "tpu.trace_stop"() : () -> ()
    %cst_58 = arith.constant dense<0xFF800000> : vector<2x16xf32>
    %132 = vector.multi_reduction <maximumf>, %131, %cst_58 [2] : vector<2x16x32xf32> to vector<2x16xf32>
    %133 = vector.shape_cast %132 : vector<2x16xf32> to vector<2x16x1xf32>
    %134 = vector.broadcast %133 : vector<2x16x1xf32> to vector<2x16x32xf32>
    %135 = arith.subf %131, %134 : vector<2x16x32xf32>
    %136 = math.exp %135 : vector<2x16x32xf32>
    %cst_59 = arith.constant dense<0.000000e+00> : vector<2x16xf32>
    %137 = vector.multi_reduction <add>, %136, %cst_59 [2] : vector<2x16x32xf32> to vector<2x16xf32>
    %138 = vector.shape_cast %137 : vector<2x16xf32> to vector<2x16x1xf32>
    %139 = tpu.reciprocal %138 {approx = true} : vector<2x16x1xf32> -> vector<2x16x1xf32>
    %140 = vector.broadcast %139 : vector<2x16x1xf32> to vector<2x16x32xf32>
    %141 = arith.mulf %136, %140 : vector<2x16x32xf32>
    %142 = vector.extract_strided_slice %48 {offsets = [0, 0, 80], sizes = [2, 32, 16], strides = [1, 1, 1]} : vector<2x32x128xf32> to vector<2x32x16xf32>
    "tpu.trace_start"() <{level = 10 : i32, message = "bqk,bkd->bqd"}> : () -> ()
    %cst_60 = arith.constant dense<0.000000e+00> : vector<2x16x16xf32>
    %143 = tpu.matmul %141, %142, %cst_60 {dimension_numbers = #tpu.dot_dimension_numbers<[2], [1], [1], [2], [0, 0, 0, 1, 1, 2], [0], [0]>} : vector<2x16x32xf32>, vector<2x32x16xf32>, vector<2x16x16xf32> -> vector<2x16x16xf32>
    "tpu.trace_stop"() : () -> ()
    %144 = vector.shape_cast %143 : vector<2x16x16xf32> to vector<32x16xf32>
    %145 = vector.extract_strided_slice %46 {offsets = [0, 0, 96], sizes = [2, 16, 16], strides = [1, 1, 1]} : vector<2x16x128xf32> to vector<2x16x16xf32>
    %146 = vector.extract_strided_slice %47 {offsets = [0, 0, 96], sizes = [2, 32, 16], strides = [1, 1, 1]} : vector<2x32x128xf32> to vector<2x32x16xf32>
    "tpu.trace_start"() <{level = 10 : i32, message = "bqd,bkd->bqk"}> : () -> ()
    %cst_61 = arith.constant dense<0.000000e+00> : vector<2x16x32xf32>
    %147 = tpu.matmul %145, %146, %cst_61 {dimension_numbers = #tpu.dot_dimension_numbers<[2], [2], [1], [1], [0, 0, 0, 1, 1, 1], [0], [0]>} : vector<2x16x16xf32>, vector<2x32x16xf32>, vector<2x16x32xf32> -> vector<2x16x32xf32>
    "tpu.trace_stop"() : () -> ()
    %cst_62 = arith.constant dense<0xFF800000> : vector<2x16xf32>
    %148 = vector.multi_reduction <maximumf>, %147, %cst_62 [2] : vector<2x16x32xf32> to vector<2x16xf32>
    %149 = vector.shape_cast %148 : vector<2x16xf32> to vector<2x16x1xf32>
    %150 = vector.broadcast %149 : vector<2x16x1xf32> to vector<2x16x32xf32>
    %151 = arith.subf %147, %150 : vector<2x16x32xf32>
    %152 = math.exp %151 : vector<2x16x32xf32>
    %cst_63 = arith.constant dense<0.000000e+00> : vector<2x16xf32>
    %153 = vector.multi_reduction <add>, %152, %cst_63 [2] : vector<2x16x32xf32> to vector<2x16xf32>
    %154 = vector.shape_cast %153 : vector<2x16xf32> to vector<2x16x1xf32>
    %155 = tpu.reciprocal %154 {approx = true} : vector<2x16x1xf32> -> vector<2x16x1xf32>
    %156 = vector.broadcast %155 : vector<2x16x1xf32> to vector<2x16x32xf32>
    %157 = arith.mulf %152, %156 : vector<2x16x32xf32>
    %158 = vector.extract_strided_slice %48 {offsets = [0, 0, 96], sizes = [2, 32, 16], strides = [1, 1, 1]} : vector<2x32x128xf32> to vector<2x32x16xf32>
    "tpu.trace_start"() <{level = 10 : i32, message = "bqk,bkd->bqd"}> : () -> ()
    %cst_64 = arith.constant dense<0.000000e+00> : vector<2x16x16xf32>
    %159 = tpu.matmul %157, %158, %cst_64 {dimension_numbers = #tpu.dot_dimension_numbers<[2], [1], [1], [2], [0, 0, 0, 1, 1, 2], [0], [0]>} : vector<2x16x32xf32>, vector<2x32x16xf32>, vector<2x16x16xf32> -> vector<2x16x16xf32>
    "tpu.trace_stop"() : () -> ()
    %160 = vector.shape_cast %159 : vector<2x16x16xf32> to vector<32x16xf32>
    %161 = vector.extract_strided_slice %46 {offsets = [0, 0, 112], sizes = [2, 16, 16], strides = [1, 1, 1]} : vector<2x16x128xf32> to vector<2x16x16xf32>
    %162 = vector.extract_strided_slice %47 {offsets = [0, 0, 112], sizes = [2, 32, 16], strides = [1, 1, 1]} : vector<2x32x128xf32> to vector<2x32x16xf32>
    "tpu.trace_start"() <{level = 10 : i32, message = "bqd,bkd->bqk"}> : () -> ()
    %cst_65 = arith.constant dense<0.000000e+00> : vector<2x16x32xf32>
    %163 = tpu.matmul %161, %162, %cst_65 {dimension_numbers = #tpu.dot_dimension_numbers<[2], [2], [1], [1], [0, 0, 0, 1, 1, 1], [0], [0]>} : vector<2x16x16xf32>, vector<2x32x16xf32>, vector<2x16x32xf32> -> vector<2x16x32xf32>
    "tpu.trace_stop"() : () -> ()
    %cst_66 = arith.constant dense<0xFF800000> : vector<2x16xf32>
    %164 = vector.multi_reduction <maximumf>, %163, %cst_66 [2] : vector<2x16x32xf32> to vector<2x16xf32>
    %165 = vector.shape_cast %164 : vector<2x16xf32> to vector<2x16x1xf32>
    %166 = vector.broadcast %165 : vector<2x16x1xf32> to vector<2x16x32xf32>
    %167 = arith.subf %163, %166 : vector<2x16x32xf32>
    %168 = math.exp %167 : vector<2x16x32xf32>
    %cst_67 = arith.constant dense<0.000000e+00> : vector<2x16xf32>
    %169 = vector.multi_reduction <add>, %168, %cst_67 [2] : vector<2x16x32xf32> to vector<2x16xf32>
    %170 = vector.shape_cast %169 : vector<2x16xf32> to vector<2x16x1xf32>
    %171 = tpu.reciprocal %170 {approx = true} : vector<2x16x1xf32> -> vector<2x16x1xf32>
    %172 = vector.broadcast %171 : vector<2x16x1xf32> to vector<2x16x32xf32>
    %173 = arith.mulf %168, %172 : vector<2x16x32xf32>
    %174 = vector.extract_strided_slice %48 {offsets = [0, 0, 112], sizes = [2, 32, 16], strides = [1, 1, 1]} : vector<2x32x128xf32> to vector<2x32x16xf32>
    "tpu.trace_start"() <{level = 10 : i32, message = "bqk,bkd->bqd"}> : () -> ()
    %cst_68 = arith.constant dense<0.000000e+00> : vector<2x16x16xf32>
    %175 = tpu.matmul %173, %174, %cst_68 {dimension_numbers = #tpu.dot_dimension_numbers<[2], [1], [1], [2], [0, 0, 0, 1, 1, 2], [0], [0]>} : vector<2x16x32xf32>, vector<2x32x16xf32>, vector<2x16x16xf32> -> vector<2x16x16xf32>
    "tpu.trace_stop"() : () -> ()
    %176 = vector.shape_cast %175 : vector<2x16x16xf32> to vector<32x16xf32>
    %177 = tpu.concatenate %64, %80, %96, %112, %128, %144, %160, %176 in 1 : vector<32x16xf32>, vector<32x16xf32>, vector<32x16xf32>, vector<32x16xf32>, vector<32x16xf32>, vector<32x16xf32>, vector<32x16xf32>, vector<32x16xf32> -> vector<32x128xf32>
    %c0_69 = arith.constant 0 : index
    %c0_70 = arith.constant 0 : index
    %178 = vector.load %arg11[%c0_69, %c0_70] : memref<128x128xf32, #tpu.memory_space<vmem>>, vector<128x128xf32>
    %cst_71 = arith.constant dense<0.000000e+00> : vector<32x128xf32>
    %179 = tpu.matmul %177, %178, %cst_71 {dimension_numbers = #tpu.dot_dimension_numbers<[1], [0], [0], [1], [0, 0, 1, 1], [], []>} : vector<32x128xf32>, vector<128x128xf32>, vector<32x128xf32> -> vector<32x128xf32>
    %c0_72 = arith.constant 0 : index
    %c0_73 = arith.constant 0 : index
    %180 = vector.load %arg12[%c0_72, %c0_73] : memref<1x128xf32, #tpu.memory_space<vmem>>, vector<1x128xf32>
    %181 = vector.broadcast %180 : vector<1x128xf32> to vector<32x128xf32>
    %182 = arith.addf %179, %181 : vector<32x128xf32>
    %cst_74 = arith.constant dense<0.000000e+00> : vector<32xf32>
    %183 = vector.multi_reduction <add>, %182, %cst_74 [1] : vector<32x128xf32> to vector<32xf32>
    %184 = vector.shape_cast %183 : vector<32xf32> to vector<32x1xf32>
    %cst_75 = arith.constant 1.280000e+02 : f32
    %185 = vector.broadcast %cst_75 : f32 to vector<32x1xf32>
    %186 = arith.divf %184, %185 : vector<32x1xf32>
    %187 = vector.broadcast %186 : vector<32x1xf32> to vector<32x128xf32>
    %188 = arith.subf %182, %187 : vector<32x128xf32>
    %189 = arith.mulf %188, %188 : vector<32x128xf32>
    %cst_76 = arith.constant dense<0.000000e+00> : vector<32xf32>
    %190 = vector.multi_reduction <add>, %189, %cst_76 [1] : vector<32x128xf32> to vector<32xf32>
    %191 = vector.shape_cast %190 : vector<32xf32> to vector<32x1xf32>
    %cst_77 = arith.constant 1.280000e+02 : f32
    %192 = vector.broadcast %cst_77 : f32 to vector<32x1xf32>
    %193 = arith.divf %191, %192 : vector<32x1xf32>
    %cst_78 = arith.constant 9.99999974E-6 : f32
    %194 = vector.broadcast %cst_78 : f32 to vector<32x1xf32>
    %195 = arith.addf %193, %194 : vector<32x1xf32>
    %196 = math.rsqrt %195 : vector<32x1xf32>
    %197 = vector.broadcast %196 : vector<32x1xf32> to vector<32x128xf32>
    %198 = arith.mulf %188, %197 : vector<32x128xf32>
    %c0_79 = arith.constant 0 : index
    %c0_80 = arith.constant 0 : index
    %199 = vector.load %arg13[%c0_79, %c0_80] : memref<1x128xf32, #tpu.memory_space<vmem>>, vector<1x128xf32>
    %200 = vector.broadcast %199 : vector<1x128xf32> to vector<32x128xf32>
    %201 = arith.mulf %198, %200 : vector<32x128xf32>
    %c0_81 = arith.constant 0 : index
    %c0_82 = arith.constant 0 : index
    %202 = vector.load %arg14[%c0_81, %c0_82] : memref<1x128xf32, #tpu.memory_space<vmem>>, vector<1x128xf32>
    %203 = vector.broadcast %202 : vector<1x128xf32> to vector<32x128xf32>
    %204 = arith.addf %201, %203 : vector<32x128xf32>
    %c0_83 = arith.constant 0 : index
    %c0_84 = arith.constant 0 : index
    %205 = vector.load %arg15[%c0_83, %c0_84] : memref<128x256xf32, #tpu.memory_space<vmem>>, vector<128x256xf32>
    %cst_85 = arith.constant dense<0.000000e+00> : vector<32x256xf32>
    %206 = tpu.matmul %204, %205, %cst_85 {dimension_numbers = #tpu.dot_dimension_numbers<[1], [0], [0], [1], [0, 0, 1, 1], [], []>} : vector<32x128xf32>, vector<128x256xf32>, vector<32x256xf32> -> vector<32x256xf32>
    %c0_86 = arith.constant 0 : index
    %c0_87 = arith.constant 0 : index
    %207 = vector.load %arg16[%c0_86, %c0_87] : memref<1x256xf32, #tpu.memory_space<vmem>>, vector<1x256xf32>
    %208 = vector.broadcast %207 : vector<1x256xf32> to vector<32x256xf32>
    %209 = arith.addf %206, %208 : vector<32x256xf32>
    %cst_88 = arith.constant 5.000000e-01 : f32
    %210 = vector.broadcast %cst_88 : f32 to vector<32x256xf32>
    %211 = arith.mulf %210, %209 : vector<32x256xf32>
    %cst_89 = arith.constant 0.707106769 : f32
    %212 = vector.broadcast %cst_89 : f32 to vector<32x256xf32>
    %213 = arith.mulf %209, %212 : vector<32x256xf32>
    %214 = math.erf %213 : vector<32x256xf32>
    %cst_90 = arith.constant 1.000000e+00 : f32
    %215 = vector.broadcast %cst_90 : f32 to vector<32x256xf32>
    %216 = arith.addf %215, %214 : vector<32x256xf32>
    %217 = arith.mulf %211, %216 : vector<32x256xf32>
    %c0_91 = arith.constant 0 : index
    %c0_92 = arith.constant 0 : index
    %218 = vector.load %arg17[%c0_91, %c0_92] : memref<256x128xf32, #tpu.memory_space<vmem>>, vector<256x128xf32>
    %cst_93 = arith.constant dense<0.000000e+00> : vector<32x128xf32>
    %219 = tpu.matmul %217, %218, %cst_93 {dimension_numbers = #tpu.dot_dimension_numbers<[1], [0], [0], [1], [0, 0, 1, 1], [], []>} : vector<32x256xf32>, vector<256x128xf32>, vector<32x128xf32> -> vector<32x128xf32>
    %c0_94 = arith.constant 0 : index
    %c0_95 = arith.constant 0 : index
    %220 = vector.load %arg18[%c0_94, %c0_95] : memref<1x128xf32, #tpu.memory_space<vmem>>, vector<1x128xf32>
    %221 = vector.broadcast %220 : vector<1x128xf32> to vector<32x128xf32>
    %222 = arith.addf %219, %221 : vector<32x128xf32>
    %223 = arith.addf %222, %182 : vector<32x128xf32>
    %224 = vector.shape_cast %223 : vector<32x128xf32> to vector<2x16x128xf32>
    %c0_96 = arith.constant 0 : index
    %c0_97 = arith.constant 0 : index
    %c0_98 = arith.constant 0 : index
    %225 = vector.load %arg19[%c0_96, %c0_97, %c0_98] : memref<2x16x128xf32, #tpu.memory_space<vmem>>, vector<2x16x128xf32>
    tpu.vector_store %arg19[%c0_96, %c0_97, %c0_98], %224 {strides = array<i32>} : memref<2x16x128xf32, #tpu.memory_space<vmem>>, vector<2x16x128xf32>,
    return
  }
  func.func @transform_0(%arg0: i32) -> (i32, i32, i32) {
    %c0_i32 = arith.constant 0 : i32
    %c0_i32_0 = arith.constant 0 : i32
    %c0_i32_1 = arith.constant 0 : i32
    return %arg0, %c0_i32, %c0_i32_0 : i32, i32, i32
  }
  func.func @transform_1(%arg0: i32) -> (i32, i32, i32) {
    %c0_i32 = arith.constant 0 : i32
    %c0_i32_0 = arith.constant 0 : i32
    %c0_i32_1 = arith.constant 0 : i32
    return %arg0, %c0_i32, %c0_i32_0 : i32, i32, i32
  }
  func.func @transform_2(%arg0: i32) -> (i32, i32) {
    %c0_i32 = arith.constant 0 : i32
    %c0_i32_0 = arith.constant 0 : i32
    %c0_i32_1 = arith.constant 0 : i32
    return %c0_i32, %c0_i32_0 : i32, i32
  }
  func.func @transform_3(%arg0: i32) -> (i32, i32) {
    %c0_i32 = arith.constant 0 : i32
    %c0_i32_0 = arith.constant 0 : i32
    %c0_i32_1 = arith.constant 0 : i32
    return %c0_i32, %c0_i32_0 : i32, i32
  }
  func.func @transform_4(%arg0: i32) -> (i32, i32) {
    %c0_i32 = arith.constant 0 : i32
    %c0_i32_0 = arith.constant 0 : i32
    %c0_i32_1 = arith.constant 0 : i32
    return %c0_i32, %c0_i32_0 : i32, i32
  }
  func.func @transform_5(%arg0: i32) -> (i32, i32) {
    %c0_i32 = arith.constant 0 : i32
    %c0_i32_0 = arith.constant 0 : i32
    %c0_i32_1 = arith.constant 0 : i32
    return %c0_i32, %c0_i32_0 : i32, i32
  }
  func.func @transform_6(%arg0: i32) -> (i32, i32) {
    %c0_i32 = arith.constant 0 : i32
    %c0_i32_0 = arith.constant 0 : i32
    %c0_i32_1 = arith.constant 0 : i32
    return %c0_i32, %c0_i32_0 : i32, i32
  }
  func.func @transform_7(%arg0: i32) -> (i32, i32) {
    %c0_i32 = arith.constant 0 : i32
    %c0_i32_0 = arith.constant 0 : i32
    %c0_i32_1 = arith.constant 0 : i32
    return %c0_i32, %c0_i32_0 : i32, i32
  }
  func.func @transform_8(%arg0: i32) -> (i32, i32) {
    %c0_i32 = arith.constant 0 : i32
    %c0_i32_0 = arith.constant 0 : i32
    %c0_i32_1 = arith.constant 0 : i32
    return %c0_i32, %c0_i32_0 : i32, i32
  }
  func.func @transform_9(%arg0: i32) -> (i32, i32) {
    %c0_i32 = arith.constant 0 : i32
    %c0_i32_0 = arith.constant 0 : i32
    %c0_i32_1 = arith.constant 0 : i32
    return %c0_i32, %c0_i32_0 : i32, i32
  }
  func.func @transform_10(%arg0: i32) -> (i32, i32) {
    %c0_i32 = arith.constant 0 : i32
    %c0_i32_0 = arith.constant 0 : i32
    %c0_i32_1 = arith.constant 0 : i32
    return %c0_i32, %c0_i32_0 : i32, i32
  }
  func.func @transform_11(%arg0: i32) -> (i32, i32) {
    %c0_i32 = arith.constant 0 : i32
    %c0_i32_0 = arith.constant 0 : i32
    %c0_i32_1 = arith.constant 0 : i32
    return %c0_i32, %c0_i32_0 : i32, i32
  }
  func.func @transform_12(%arg0: i32) -> (i32, i32) {
    %c0_i32 = arith.constant 0 : i32
    %c0_i32_0 = arith.constant 0 : i32
    %c0_i32_1 = arith.constant 0 : i32
    return %c0_i32, %c0_i32_0 : i32, i32
  }
  func.func @transform_13(%arg0: i32) -> (i32, i32) {
    %c0_i32 = arith.constant 0 : i32
    %c0_i32_0 = arith.constant 0 : i32
    %c0_i32_1 = arith.constant 0 : i32
    return %c0_i32, %c0_i32_0 : i32, i32
  }
  func.func @transform_14(%arg0: i32) -> (i32, i32) {
    %c0_i32 = arith.constant 0 : i32
    %c0_i32_0 = arith.constant 0 : i32
    %c0_i32_1 = arith.constant 0 : i32
    return %c0_i32, %c0_i32_0 : i32, i32
  }
  func.func @transform_15(%arg0: i32) -> (i32, i32) {
    %c0_i32 = arith.constant 0 : i32
    %c0_i32_0 = arith.constant 0 : i32
    %c0_i32_1 = arith.constant 0 : i32
    return %c0_i32, %c0_i32_0 : i32, i32
  }
  func.func @transform_16(%arg0: i32) -> (i32, i32) {
    %c0_i32 = arith.constant 0 : i32
    %c0_i32_0 = arith.constant 0 : i32
    %c0_i32_1 = arith.constant 0 : i32
    return %c0_i32, %c0_i32_0 : i32, i32
  }
  func.func @transform_17(%arg0: i32) -> (i32, i32) {
    %c0_i32 = arith.constant 0 : i32
    %c0_i32_0 = arith.constant 0 : i32
    %c0_i32_1 = arith.constant 0 : i32
    return %c0_i32, %c0_i32_0 : i32, i32
  }
  func.func @transform_18(%arg0: i32) -> (i32, i32, i32) {
    %c0_i32 = arith.constant 0 : i32
    %c0_i32_0 = arith.constant 0 : i32
    %c0_i32_1 = arith.constant 0 : i32
    return %arg0, %c0_i32, %c0_i32_0 : i32, i32, i32
  }
}

</mosaic_0001>

<llo_original>
// kernel: tpu_custom_call.1
$region0: #{tpu_custom_call.1}
  #allocation0 [shape = 'u32[]', space=smem, size = 0x4, offset = 0x4, fixed_abs, tag = 'smem constant byte address 0x4 - core index']
  #allocation1 [shape = 'u32[144,128]{1,0:T(1,128)}', space=vmem, size = 0x12000, scoped, tag = 'internal scratch']
  #allocation2 [shape = 'f32[2,32,128]{2,1,0:T(8,128)}', space=vmem, size = 0x8000, scoped, tag = 'scratch operand']
  %s0 = inlined_call_operand.hbm [shape: f32[4,16,128], index: 0, kind: input, shape index: {}]
  %s1 = inlined_call_operand.hbm [shape: f32[4,16,128], index: 1, kind: input, shape index: {}]
  %s2 = inlined_call_operand.hbm [shape: f32[1,128], index: 2, kind: input, shape index: {}]
  %s3 = inlined_call_operand.hbm [shape: f32[1,128], index: 3, kind: input, shape index: {}]
  %s4 = inlined_call_operand.hbm [shape: f32[128,128], index: 4, kind: input, shape index: {}]
  %s5 = inlined_call_operand.hbm [shape: f32[1,128], index: 5, kind: input, shape index: {}]
  %s6 = inlined_call_operand.hbm [shape: f32[128,128], index: 6, kind: input, shape index: {}]
  %s7 = inlined_call_operand.hbm [shape: f32[1,128], index: 7, kind: input, shape index: {}]
  %s8 = inlined_call_operand.hbm [shape: f32[128,128], index: 8, kind: input, shape index: {}]
  %s9 = inlined_call_operand.hbm [shape: f32[1,128], index: 9, kind: input, shape index: {}]
  %s10 = inlined_call_operand.hbm [shape: f32[128,128], index: 10, kind: input, shape index: {}]
  %s11 = inlined_call_operand.hbm [shape: f32[1,128], index: 11, kind: input, shape index: {}]
  %s12 = inlined_call_operand.hbm [shape: f32[1,128], index: 12, kind: input, shape index: {}]
  %s13 = inlined_call_operand.hbm [shape: f32[1,128], index: 13, kind: input, shape index: {}]
  %s14 = inlined_call_operand.hbm [shape: f32[128,256], index: 14, kind: input, shape index: {}]
  %s15 = inlined_call_operand.hbm [shape: f32[1,256], index: 15, kind: input, shape index: {}]
  %s16 = inlined_call_operand.hbm [shape: f32[256,128], index: 16, kind: input, shape index: {}]
  %s17 = inlined_call_operand.hbm [shape: f32[1,128], index: 17, kind: input, shape index: {}]
  %s18 = inlined_call_operand.hbm [shape: f32[4,16,128], index: 18, kind: output, shape index: {}]
  %s19 = sld [smem:[#allocation0]]
  $region177: #{tpu_custom_call.1} parent=0
    _
  %s21 = ssub.s32 1, %s19
  %s22 = scalar_select 0, %s21, %s19
  $region1: #{tpu_custom_call.1} parent=0
    #allocation3 [shape = 'u8[32768]{0}', space=vmem, size = 0x8000, scoped, tag = 'input window, operand 0']
    #allocation4 [shape = 's32[2]{0}', space=sflag, size = 0x8, scoped, tag = 'scoped memory for tpu_custom_call.1']
    #allocation5 [shape = 's32[2]{0}', space=sflag, size = 0x8, scoped, tag = 'scoped memory for tpu_custom_call.1']
    #allocation6 [shape = 'u8[32768]{0}', space=vmem, size = 0x8000, scoped, tag = 'input window, operand 1']
    #allocation7 [shape = 's32[2]{0}', space=sflag, size = 0x8, scoped, tag = 'scoped memory for tpu_custom_call.1']
    #allocation8 [shape = 'u8[512]{0}', space=vmem, size = 0x400, scoped, tag = 'input window, operand 2, single buffered']
    #allocation9 [shape = 'u8[512]{0}', space=vmem, size = 0x400, scoped, tag = 'input window, operand 3, single buffered']
    #allocation10 [shape = 's32[1]{0}', space=sflag, size = 0x4, scoped, tag = 'scoped memory for tpu_custom_call.1']
    #allocation11 [shape = 'u8[65536]{0}', space=vmem, size = 0x10000, scoped, tag = 'input window, operand 4, single buffered']
    #allocation12 [shape = 'u8[512]{0}', space=vmem, size = 0x400, scoped, tag = 'input window, operand 5, single buffered']
    #allocation13 [shape = 's32[1]{0}', space=sflag, size = 0x4, scoped, tag = 'scoped memory for tpu_custom_call.1']
    #allocation14 [shape = 'u8[65536]{0}', space=vmem, size = 0x10000, scoped, tag = 'input window, operand 6, single buffered']
    #allocation15 [shape = 'u8[512]{0}', space=vmem, size = 0x400, scoped, tag = 'input window, operand 7, single buffered']
    #allocation16 [shape = 's32[1]{0}', space=sflag, size = 0x4, scoped, tag = 'scoped memory for tpu_custom_call.1']
    #allocation17 [shape = 'u8[65536]{0}', space=vmem, size = 0x10000, scoped, tag = 'input window, operand 8, single buffered']
    #allocation18 [shape = 'u8[512]{0}', space=vmem, size = 0x400, scoped, tag = 'input window, operand 9, single buffered']
    #allocation19 [shape = 's32[1]{0}', space=sflag, size = 0x4, scoped, tag = 'scoped memory for tpu_custom_call.1']
    #allocation20 [shape = 'u8[65536]{0}', space=vmem, size = 0x10000, scoped, tag = 'input window, operand 10, single buffered']
    #allocation21 [shape = 'u8[512]{0}', space=vmem, size = 0x400, scoped, tag = 'input window, operand 11, single buffered']
    #allocation22 [shape = 's32[1]{0}', space=sflag, size = 0x4, scoped, tag = 'scoped memory for tpu_custom_call.1']
    #allocation23 [shape = 'u8[512]{0}', space=vmem, size = 0x400, scoped, tag = 'input window, operand 12, single buffered']
    #allocation24 [shape = 'u8[512]{0}', space=vmem, size = 0x400, scoped, tag = 'input window, operand 13, single buffered']
    #allocation25 [shape = 's32[1]{0}', space=sflag, size = 0x4, scoped, tag = 'scoped memory for tpu_custom_call.1']
    #allocation26 [shape = 'u8[131072]{0}', space=vmem, size = 0x20000, scoped, tag = 'input window, operand 14, single buffered']
    #allocation27 [shape = 'u8[1024]{0}', space=vmem, size = 0x400, scoped, tag = 'input window, operand 15, single buffered']
    #allocation28 [shape = 's32[1]{0}', space=sflag, size = 0x4, scoped, tag = 'scoped memory for tpu_custom_call.1']
    #allocation29 [shape = 'u8[131072]{0}', space=vmem, size = 0x20000, scoped, tag = 'input window, operand 16, single buffered']
    #allocation30 [shape = 'u8[512]{0}', space=vmem, size = 0x400, scoped, tag = 'input window, operand 17, single buffered']
    #allocation31 [shape = 's32[1]{0}', space=sflag, size = 0x4, scoped, tag = 'scoped memory for tpu_custom_call.1']
    #allocation32 [shape = 'u8[32768]{0}', space=vmem, size = 0x8000, scoped, tag = 'output window, operand 0']
    %23 = vsyncpa [#allocation4], 0
    %s24 = scalar_lea.sflag [#allocation4], 1
    %25 = vsyncpa %s24, 0
    %26 = vsyncpa [#allocation7], 0
    %s27 = scalar_lea.sflag [#allocation7], 1
    %28 = vsyncpa %s27, 0
    %29 = vsyncpa [#allocation10], 0
    %30 = vsyncpa [#allocation13], 0
    %31 = vsyncpa [#allocation16], 0
    %32 = vsyncpa [#allocation19], 0
    %33 = vsyncpa [#allocation22], 0
    %34 = vsyncpa [#allocation25], 0
    %35 = vsyncpa [#allocation28], 0
    %36 = vsyncpa [#allocation31], 0
    %37 = vsyncpa [#allocation5], 0
    %s38 = scalar_lea.sflag [#allocation5], 1
    %39 = vsyncpa %s38, 0
    loop: start=0, step=1, limit=4
    $region2: #{tpu_custom_call.1} parent=1 // loop_pre_header
      _
    $region3: #{tpu_custom_call.1} parent=1 // loop_header
      %s41 = sphi 0, %s45
      %p42 = scmp.ge.s32.totalorder %s41, 4
      %s51 = sphi 0, %s53
      %s54 = sphi 0, %s51
      %s55 = sphi 0, %s54
      %s71 = sphi 0, %s55
      %s77 = sphi 0, %s79
      %s80 = sphi 0, %s77
      %s81 = sphi 0, %s80
      %s97 = sphi 0, %s81
      %s101 = sphi 0, %s101
      %s103 = sphi 0, %s101
      %s104 = sphi 0, %s103
      %s118 = sphi 0, %s104
      %s122 = sphi 0, %s122
      %s124 = sphi 0, %s122
      %s125 = sphi 0, %s124
      %s139 = sphi 0, %s125
      %s143 = sphi 0, %s143
      %s145 = sphi 0, %s143
      %s146 = sphi 0, %s145
      %s160 = sphi 0, %s146
      %s164 = sphi 0, %s164
      %s166 = sphi 0, %s164
      %s167 = sphi 0, %s166
      %s181 = sphi 0, %s167
      %s185 = sphi 0, %s185
      %s187 = sphi 0, %s185
      %s188 = sphi 0, %s187
      %s202 = sphi 0, %s188
      %s206 = sphi 0, %s206
      %s208 = sphi 0, %s206
      %s209 = sphi 0, %s208
      %s223 = sphi 0, %s209
      %s227 = sphi 0, %s227
      %s229 = sphi 0, %s227
      %s230 = sphi 0, %s229
      %s244 = sphi 0, %s230
      %s248 = sphi 0, %s248
      %s250 = sphi 0, %s248
      %s251 = sphi 0, %s250
      %s265 = sphi 0, %s251
      %s269 = sphi 0, %s269
      %s271 = sphi 0, %s269
      %s272 = sphi 0, %s271
      %s286 = sphi 0, %s272
      %s290 = sphi 0, %s290
      %s292 = sphi 0, %s290
      %s293 = sphi 0, %s292
      %s307 = sphi 0, %s293
      %s311 = sphi 0, %s311
      %s313 = sphi 0, %s311
      %s314 = sphi 0, %s313
      %s328 = sphi 0, %s314
      %s332 = sphi 0, %s332
      %s334 = sphi 0, %s332
      %s335 = sphi 0, %s334
      %s349 = sphi 0, %s335
      %s353 = sphi 0, %s353
      %s355 = sphi 0, %s353
      %s356 = sphi 0, %s355
      %s370 = sphi 0, %s356
      %s374 = sphi 0, %s374
      %s376 = sphi 0, %s374
      %s377 = sphi 0, %s376
      %s391 = sphi 0, %s377
      %s395 = sphi 0, %s395
      %s397 = sphi 0, %s395
      %s398 = sphi 0, %s397
      %s412 = sphi 0, %s398
      %s416 = sphi 0, %s416
      %s418 = sphi 0, %s416
      %s419 = sphi 0, %s418
      %s433 = sphi 0, %s419
      %s439 = sphi 0, %s441
      %s442 = sphi 0, %s439
      %s443 = sphi 0, %s442
      %s459 = sphi 0, %s443
    $region4: #{tpu_custom_call.1} parent=1 // loop_header_branch
      %44 = sbr.rel (%p42) target = $region8
    $region5: #{tpu_custom_call.1} parent=1 // loop_body
      %s46 = ssub.s32 %s41, 1
      %s47 = ssub.s32 %s41, 2
      %s48 = sadd.s32 %s41, 1
      %s49 = ssub.s32 %s41, %s48
      %p50 = scmp.eq.s32.totalorder %s49, 0
      %s52 = sadd.s32 %s51, 1
      %s53 = scalar_select %p50, %s51, %s52
      %p56 = pneg %p50
      %p57 = scmp.eq.s32.totalorder %s41, 1
      %p58 = por %p56, %p57
      %p59 = scmp.ne.s32.totalorder %s51, %s54
      %p60 = scmp.eq.s32.totalorder %s41, 0
      %p61 = por %p59, %p60
      %p62 = scmp.ne.s32.totalorder %s51, %s54
      %p63 = scmp.eq.s32.totalorder %s46, 1
      %p64 = por %p62, %p63
      %p65 = scmp.ne.s32.totalorder %s54, %s55
      %p66 = scmp.eq.s32.totalorder %s46, 0
      %p67 = por %p65, %p66
      %p68 = scmp.ne.s32.totalorder %s54, %s55
      %p69 = scmp.eq.s32.totalorder %s47, 1
      %p70 = por %p68, %p69
      %p72 = scmp.ne.s32.totalorder %s55, %s71
      %p73 = scmp.eq.s32.totalorder %s47, 0
      %p74 = por %p72, %p73
      %s75 = ssub.s32 %s41, %s48
      %p76 = scmp.eq.s32.totalorder %s75, 0
      %s78 = sadd.s32 %s77, 1
      %s79 = scalar_select %p76, %s77, %s78
      %p82 = pneg %p76
      %p83 = scmp.eq.s32.totalorder %s41, 1
      %p84 = por %p82, %p83
      %p85 = scmp.ne.s32.totalorder %s77, %s80
      %p86 = scmp.eq.s32.totalorder %s41, 0
      %p87 = por %p85, %p86
      %p88 = scmp.ne.s32.totalorder %s77, %s80
      %p89 = scmp.eq.s32.totalorder %s46, 1
      %p90 = por %p88, %p89
      %p91 = scmp.ne.s32.totalorder %s80, %s81
      %p92 = scmp.eq.s32.totalorder %s46, 0
      %p93 = por %p91, %p92
      %p94 = scmp.ne.s32.totalorder %s80, %s81
      %p95 = scmp.eq.s32.totalorder %s47, 1
      %p96 = por %p94, %p95
      %p98 = scmp.ne.s32.totalorder %s81, %s97
      %p99 = scmp.eq.s32.totalorder %s47, 0
      %p100 = por %p98, %p99
      %s102 = sadd.s32 %s101, 1
      %p105 = scmp.eq.s32.totalorder %s41, 1
      %p106 = scmp.ne.s32.totalorder %s101, %s103
      %p107 = scmp.eq.s32.totalorder %s41, 0
      %p108 = por %p106, %p107
      %p109 = scmp.ne.s32.totalorder %s101, %s103
      %p110 = scmp.eq.s32.totalorder %s46, 1
      %p111 = por %p109, %p110
      %p112 = scmp.ne.s32.totalorder %s103, %s104
      %p113 = scmp.eq.s32.totalorder %s46, 0
      %p114 = por %p112, %p113
      %p115 = scmp.ne.s32.totalorder %s103, %s104
      %p116 = scmp.eq.s32.totalorder %s47, 1
      %p117 = por %p115, %p116
      %p119 = scmp.ne.s32.totalorder %s104, %s118
      %p120 = scmp.eq.s32.totalorder %s47, 0
      %p121 = por %p119, %p120
      %s123 = sadd.s32 %s122, 1
      %p126 = scmp.eq.s32.totalorder %s41, 1
      %p127 = scmp.ne.s32.totalorder %s122, %s124
      %p128 = scmp.eq.s32.totalorder %s41, 0
      %p129 = por %p127, %p128
      %p130 = scmp.ne.s32.totalorder %s122, %s124
      %p131 = scmp.eq.s32.totalorder %s46, 1
      %p132 = por %p130, %p131
      %p133 = scmp.ne.s32.totalorder %s124, %s125
      %p134 = scmp.eq.s32.totalorder %s46, 0
      %p135 = por %p133, %p134
      %p136 = scmp.ne.s32.totalorder %s124, %s125
      %p137 = scmp.eq.s32.totalorder %s47, 1
      %p138 = por %p136, %p137
      %p140 = scmp.ne.s32.totalorder %s125, %s139
      %p141 = scmp.eq.s32.totalorder %s47, 0
      %p142 = por %p140, %p141
      %s144 = sadd.s32 %s143, 1
      %p147 = scmp.eq.s32.totalorder %s41, 1
      %p148 = scmp.ne.s32.totalorder %s143, %s145
      %p149 = scmp.eq.s32.totalorder %s41, 0
      %p150 = por %p148, %p149
      %p151 = scmp.ne.s32.totalorder %s143, %s145
      %p152 = scmp.eq.s32.totalorder %s46, 1
      %p153 = por %p151, %p152
      %p154 = scmp.ne.s32.totalorder %s145, %s146
      %p155 = scmp.eq.s32.totalorder %s46, 0
      %p156 = por %p154, %p155
      %p157 = scmp.ne.s32.totalorder %s145, %s146
      %p158 = scmp.eq.s32.totalorder %s47, 1
      %p159 = por %p157, %p158
      %p161 = scmp.ne.s32.totalorder %s146, %s160
      %p162 = scmp.eq.s32.totalorder %s47, 0
      %p163 = por %p161, %p162
      %s165 = sadd.s32 %s164, 1
      %p168 = scmp.eq.s32.totalorder %s41, 1
      %p169 = scmp.ne.s32.totalorder %s164, %s166
      %p170 = scmp.eq.s32.totalorder %s41, 0
      %p171 = por %p169, %p170
      %p172 = scmp.ne.s32.totalorder %s164, %s166
      %p173 = scmp.eq.s32.totalorder %s46, 1
      %p174 = por %p172, %p173
      %p175 = scmp.ne.s32.totalorder %s166, %s167
      %p176 = scmp.eq.s32.totalorder %s46, 0
      %p177 = por %p175, %p176
      %p178 = scmp.ne.s32.totalorder %s166, %s167
      %p179 = scmp.eq.s32.totalorder %s47, 1
      %p180 = por %p178, %p179
      %p182 = scmp.ne.s32.totalorder %s167, %s181
      %p183 = scmp.eq.s32.totalorder %s47, 0
      %p184 = por %p182, %p183
      %s186 = sadd.s32 %s185, 1
      %p189 = scmp.eq.s32.totalorder %s41, 1
      %p190 = scmp.ne.s32.totalorder %s185, %s187
      %p191 = scmp.eq.s32.totalorder %s41, 0
      %p192 = por %p190, %p191
      %p193 = scmp.ne.s32.totalorder %s185, %s187
      %p194 = scmp.eq.s32.totalorder %s46, 1
      %p195 = por %p193, %p194
      %p196 = scmp.ne.s32.totalorder %s187, %s188
      %p197 = scmp.eq.s32.totalorder %s46, 0
      %p198 = por %p196, %p197
      %p199 = scmp.ne.s32.totalorder %s187, %s188
      %p200 = scmp.eq.s32.totalorder %s47, 1
      %p201 = por %p199, %p200
      %p203 = scmp.ne.s32.totalorder %s188, %s202
      %p204 = scmp.eq.s32.totalorder %s47, 0
      %p205 = por %p203, %p204
      %s207 = sadd.s32 %s206, 1
      %p210 = scmp.eq.s32.totalorder %s41, 1
      %p211 = scmp.ne.s32.totalorder %s206, %s208
      %p212 = scmp.eq.s32.totalorder %s41, 0
      %p213 = por %p211, %p212
      %p214 = scmp.ne.s32.totalorder %s206, %s208
      %p215 = scmp.eq.s32.totalorder %s46, 1
      %p216 = por %p214, %p215
      %p217 = scmp.ne.s32.totalorder %s208, %s209
      %p218 = scmp.eq.s32.totalorder %s46, 0
      %p219 = por %p217, %p218
      %p220 = scmp.ne.s32.totalorder %s208, %s209
      %p221 = scmp.eq.s32.totalorder %s47, 1
      %p222 = por %p220, %p221
      %p224 = scmp.ne.s32.totalorder %s209, %s223
      %p225 = scmp.eq.s32.totalorder %s47, 0
      %p226 = por %p224, %p225
      %s228 = sadd.s32 %s227, 1
      %p231 = scmp.eq.s32.totalorder %s41, 1
      %p232 = scmp.ne.s32.totalorder %s227, %s229
      %p233 = scmp.eq.s32.totalorder %s41, 0
      %p234 = por %p232, %p233
      %p235 = scmp.ne.s32.totalorder %s227, %s229
      %p236 = scmp.eq.s32.totalorder %s46, 1
      %p237 = por %p235, %p236
      %p238 = scmp.ne.s32.totalorder %s229, %s230
      %p239 = scmp.eq.s32.totalorder %s46, 0
      %p240 = por %p238, %p239
      %p241 = scmp.ne.s32.totalorder %s229, %s230
      %p242 = scmp.eq.s32.totalorder %s47, 1
      %p243 = por %p241, %p242
      %p245 = scmp.ne.s32.totalorder %s230, %s244
      %p246 = scmp.eq.s32.totalorder %s47, 0
      %p247 = por %p245, %p246
      %s249 = sadd.s32 %s248, 1
      %p252 = scmp.eq.s32.totalorder %s41, 1
      %p253 = scmp.ne.s32.totalorder %s248, %s250
      %p254 = scmp.eq.s32.totalorder %s41, 0
      %p255 = por %p253, %p254
      %p256 = scmp.ne.s32.totalorder %s248, %s250
      %p257 = scmp.eq.s32.totalorder %s46, 1
      %p258 = por %p256, %p257
      %p259 = scmp.ne.s32.totalorder %s250, %s251
      %p260 = scmp.eq.s32.totalorder %s46, 0
      %p261 = por %p259, %p260
      %p262 = scmp.ne.s32.totalorder %s250, %s251
      %p263 = scmp.eq.s32.totalorder %s47, 1
      %p264 = por %p262, %p263
      %p266 = scmp.ne.s32.totalorder %s251, %s265
      %p267 = scmp.eq.s32.totalorder %s47, 0
      %p268 = por %p266, %p267
      %s270 = sadd.s32 %s269, 1
      %p273 = scmp.eq.s32.totalorder %s41, 1
      %p274 = scmp.ne.s32.totalorder %s269, %s271
      %p275 = scmp.eq.s32.totalorder %s41, 0
      %p276 = por %p274, %p275
      %p277 = scmp.ne.s32.totalorder %s269, %s271
      %p278 = scmp.eq.s32.totalorder %s46, 1
      %p279 = por %p277, %p278
      %p280 = scmp.ne.s32.totalorder %s271, %s272
      %p281 = scmp.eq.s32.totalorder %s46, 0
      %p282 = por %p280, %p281
      %p283 = scmp.ne.s32.totalorder %s271, %s272
      %p284 = scmp.eq.s32.totalorder %s47, 1
      %p285 = por %p283, %p284
      %p287 = scmp.ne.s32.totalorder %s272, %s286
      %p288 = scmp.eq.s32.totalorder %s47, 0
      %p289 = por %p287, %p288
      %s291 = sadd.s32 %s290, 1
      %p294 = scmp.eq.s32.totalorder %s41, 1
      %p295 = scmp.ne.s32.totalorder %s290, %s292
      %p296 = scmp.eq.s32.totalorder %s41, 0
      %p297 = por %p295, %p296
      %p298 = scmp.ne.s32.totalorder %s290, %s292
      %p299 = scmp.eq.s32.totalorder %s46, 1
      %p300 = por %p298, %p299
      %p301 = scmp.ne.s32.totalorder %s292, %s293
      %p302 = scmp.eq.s32.totalorder %s46, 0
      %p303 = por %p301, %p302
      %p304 = scmp.ne.s32.totalorder %s292, %s293
      %p305 = scmp.eq.s32.totalorder %s47, 1
      %p306 = por %p304, %p305
      %p308 = scmp.ne.s32.totalorder %s293, %s307
      %p309 = scmp.eq.s32.totalorder %s47, 0
      %p310 = por %p308, %p309
      %s312 = sadd.s32 %s311, 1
      %p315 = scmp.eq.s32.totalorder %s41, 1
      %p316 = scmp.ne.s32.totalorder %s311, %s313
      %p317 = scmp.eq.s32.totalorder %s41, 0
      %p318 = por %p316, %p317
      %p319 = scmp.ne.s32.totalorder %s311, %s313
      %p320 = scmp.eq.s32.totalorder %s46, 1
      %p321 = por %p319, %p320
      %p322 = scmp.ne.s32.totalorder %s313, %s314
      %p323 = scmp.eq.s32.totalorder %s46, 0
      %p324 = por %p322, %p323
      %p325 = scmp.ne.s32.totalorder %s313, %s314
      %p326 = scmp.eq.s32.totalorder %s47, 1
      %p327 = por %p325, %p326
      %p329 = scmp.ne.s32.totalorder %s314, %s328
      %p330 = scmp.eq.s32.totalorder %s47, 0
      %p331 = por %p329, %p330
      %s333 = sadd.s32 %s332, 1
      %p336 = scmp.eq.s32.totalorder %s41, 1
      %p337 = scmp.ne.s32.totalorder %s332, %s334
      %p338 = scmp.eq.s32.totalorder %s41, 0
      %p339 = por %p337, %p338
      %p340 = scmp.ne.s32.totalorder %s332, %s334
      %p341 = scmp.eq.s32.totalorder %s46, 1
      %p342 = por %p340, %p341
      %p343 = scmp.ne.s32.totalorder %s334, %s335
      %p344 = scmp.eq.s32.totalorder %s46, 0
      %p345 = por %p343, %p344
      %p346 = scmp.ne.s32.totalorder %s334, %s335
      %p347 = scmp.eq.s32.totalorder %s47, 1
      %p348 = por %p346, %p347
      %p350 = scmp.ne.s32.totalorder %s335, %s349
      %p351 = scmp.eq.s32.totalorder %s47, 0
      %p352 = por %p350, %p351
      %s354 = sadd.s32 %s353, 1
      %p357 = scmp.eq.s32.totalorder %s41, 1
      %p358 = scmp.ne.s32.totalorder %s353, %s355
      %p359 = scmp.eq.s32.totalorder %s41, 0
      %p360 = por %p358, %p359
      %p361 = scmp.ne.s32.totalorder %s353, %s355
      %p362 = scmp.eq.s32.totalorder %s46, 1
      %p363 = por %p361, %p362
      %p364 = scmp.ne.s32.totalorder %s355, %s356
      %p365 = scmp.eq.s32.totalorder %s46, 0
      %p366 = por %p364, %p365
      %p367 = scmp.ne.s32.totalorder %s355, %s356
      %p368 = scmp.eq.s32.totalorder %s47, 1
      %p369 = por %p367, %p368
      %p371 = scmp.ne.s32.totalorder %s356, %s370
      %p372 = scmp.eq.s32.totalorder %s47, 0
      %p373 = por %p371, %p372
      %s375 = sadd.s32 %s374, 1
      %p378 = scmp.eq.s32.totalorder %s41, 1
      %p379 = scmp.ne.s32.totalorder %s374, %s376
      %p380 = scmp.eq.s32.totalorder %s41, 0
      %p381 = por %p379, %p380
      %p382 = scmp.ne.s32.totalorder %s374, %s376
      %p383 = scmp.eq.s32.totalorder %s46, 1
      %p384 = por %p382, %p383
      %p385 = scmp.ne.s32.totalorder %s376, %s377
      %p386 = scmp.eq.s32.totalorder %s46, 0
      %p387 = por %p385, %p386
      %p388 = scmp.ne.s32.totalorder %s376, %s377
      %p389 = scmp.eq.s32.totalorder %s47, 1
      %p390 = por %p388, %p389
      %p392 = scmp.ne.s32.totalorder %s377, %s391
      %p393 = scmp.eq.s32.totalorder %s47, 0
      %p394 = por %p392, %p393
      %s396 = sadd.s32 %s395, 1
      %p399 = scmp.eq.s32.totalorder %s41, 1
      %p400 = scmp.ne.s32.totalorder %s395, %s397
      %p401 = scmp.eq.s32.totalorder %s41, 0
      %p402 = por %p400, %p401
      %p403 = scmp.ne.s32.totalorder %s395, %s397
      %p404 = scmp.eq.s32.totalorder %s46, 1
      %p405 = por %p403, %p404
      %p406 = scmp.ne.s32.totalorder %s397, %s398
      %p407 = scmp.eq.s32.totalorder %s46, 0
      %p408 = por %p406, %p407
      %p409 = scmp.ne.s32.totalorder %s397, %s398
      %p410 = scmp.eq.s32.totalorder %s47, 1
      %p411 = por %p409, %p410
      %p413 = scmp.ne.s32.totalorder %s398, %s412
      %p414 = scmp.eq.s32.totalorder %s47, 0
      %p415 = por %p413, %p414
      %s417 = sadd.s32 %s416, 1
      %p420 = scmp.eq.s32.totalorder %s41, 1
      %p421 = scmp.ne.s32.totalorder %s416, %s418
      %p422 = scmp.eq.s32.totalorder %s41, 0
      %p423 = por %p421, %p422
      %p424 = scmp.ne.s32.totalorder %s416, %s418
      %p425 = scmp.eq.s32.totalorder %s46, 1
      %p426 = por %p424, %p425
      %p427 = scmp.ne.s32.totalorder %s418, %s419
      %p428 = scmp.eq.s32.totalorder %s46, 0
      %p429 = por %p427, %p428
      %p430 = scmp.ne.s32.totalorder %s418, %s419
      %p431 = scmp.eq.s32.totalorder %s47, 1
      %p432 = por %p430, %p431
      %p434 = scmp.ne.s32.totalorder %s419, %s433
      %p435 = scmp.eq.s32.totalorder %s47, 0
      %p436 = por %p434, %p435
      %s437 = ssub.s32 %s41, %s48
      %p438 = scmp.eq.s32.totalorder %s437, 0
      %s440 = sadd.s32 %s439, 1
      %s441 = scalar_select %p438, %s439, %s440
      %p444 = pneg %p438
      %p445 = scmp.eq.s32.totalorder %s41, 1
      %p446 = por %p444, %p445
      %p447 = scmp.ne.s32.totalorder %s439, %s442
      %p448 = scmp.eq.s32.totalorder %s41, 0
      %p449 = por %p447, %p448
      %p450 = scmp.ne.s32.totalorder %s439, %s442
      %p451 = scmp.eq.s32.totalorder %s46, 1
      %p452 = por %p450, %p451
      %p453 = scmp.ne.s32.totalorder %s442, %s443
      %p454 = scmp.eq.s32.totalorder %s46, 0
      %p455 = por %p453, %p454
      %p456 = scmp.ne.s32.totalorder %s442, %s443
      %p457 = scmp.eq.s32.totalorder %s47, 1
      %p458 = por %p456, %p457
      %p460 = scmp.ne.s32.totalorder %s443, %s459
      %p461 = scmp.eq.s32.totalorder %s47, 0
      %p462 = por %p460, %p461
      %p463 = scmp.le.s32.totalorder 1, %s41
      %p464 = scmp.lt.s32.totalorder %s41, 3
      %p465 = pnand %p463, %p464
      %p466 = pneg %p465
      // Predicated region
      $region9: #{tpu_custom_call.1} parent=5 // pred_check
        _
      $region10: #{tpu_custom_call.1} parent=5 // pred_check_branch
        %468 = sbr.rel (%p465) target = $region12
      $region11: #{tpu_custom_call.1} parent=5 // pred_region
        %s469 = ssub.s32 %s41, 1
        // Predicated region
        $region13: #{tpu_custom_call.1} parent=11 // pred_check
          %p470 = pneg %p114
        $region14: #{tpu_custom_call.1} parent=11 // pred_check_branch
          %472 = sbr.rel (%p470) target = $region16
        $region15: #{tpu_custom_call.1} parent=11 // pred_region
          %s474 = ssub.s32 16, 16
          %475 = vsyncadd [#allocation7], %s474
          %s477 = sshll.u32 [#allocation8], 4
          %s478 = int_to_ptr.vmem [resolvable:$true] %s477
          %480 = dma.hbm_to_vmem [thread:$0]  %s2, 16, %s478, [#allocation7]
        $region16: #{tpu_custom_call.1} parent=11 // pred_fallthru
          _
        // Predicated region
        $region17: #{tpu_custom_call.1} parent=11 // pred_check
          %p481 = pneg %p135
        $region18: #{tpu_custom_call.1} parent=11 // pred_check_branch
          %483 = sbr.rel (%p481) target = $region20
        $region19: #{tpu_custom_call.1} parent=11 // pred_region
          %s485 = ssub.s32 16, 16
          %486 = vsyncadd [#allocation10], %s485
          %s488 = sshll.u32 [#allocation9], 4
          %s489 = int_to_ptr.vmem [resolvable:$true] %s488
          %491 = dma.hbm_to_vmem [thread:$0]  %s3, 16, %s489, [#allocation10]
        $region20: #{tpu_custom_call.1} parent=11 // pred_fallthru
          _
        // Predicated region
        $region21: #{tpu_custom_call.1} parent=11 // pred_check
          %p492 = pneg %p156
        $region22: #{tpu_custom_call.1} parent=11 // pred_check_branch
          %494 = sbr.rel (%p492) target = $region24
        $region23: #{tpu_custom_call.1} parent=11 // pred_region
          %s496 = ssub.s32 2048, 2048
          %497 = vsyncadd [#allocation10], %s496
          %s498 = sshll.u32 [#allocation11], 4
          %s499 = int_to_ptr.vmem [resolvable:$true] %s498
          %504 = dma.hbm_to_vmem [thread:$0]  %s4, 2048, %s499, [#allocation10], 128, 128, 8
        $region24: #{tpu_custom_call.1} parent=11 // pred_fallthru
          _
        // Predicated region
        $region25: #{tpu_custom_call.1} parent=11 // pred_check
          %p505 = pneg %p177
        $region26: #{tpu_custom_call.1} parent=11 // pred_check_branch
          %507 = sbr.rel (%p505) target = $region28
        $region27: #{tpu_custom_call.1} parent=11 // pred_region
          %s509 = ssub.s32 16, 16
          %510 = vsyncadd [#allocation13], %s509
          %s512 = sshll.u32 [#allocation12], 4
          %s513 = int_to_ptr.vmem [resolvable:$true] %s512
          %515 = dma.hbm_to_vmem [thread:$0]  %s5, 16, %s513, [#allocation13]
        $region28: #{tpu_custom_call.1} parent=11 // pred_fallthru
          _
        // Predicated region
        $region29: #{tpu_custom_call.1} parent=11 // pred_check
          %p516 = pneg %p198
        $region30: #{tpu_custom_call.1} parent=11 // pred_check_branch
          %518 = sbr.rel (%p516) target = $region32
        $region31: #{tpu_custom_call.1} parent=11 // pred_region
          %s520 = ssub.s32 2048, 2048
          %521 = vsyncadd [#allocation13], %s520
          %s522 = sshll.u32 [#allocation14], 4
          %s523 = int_to_ptr.vmem [resolvable:$true] %s522
          %528 = dma.hbm_to_vmem [thread:$0]  %s6, 2048, %s523, [#allocation13], 128, 128, 8
        $region32: #{tpu_custom_call.1} parent=11 // pred_fallthru
          _
        // Predicated region
        $region33: #{tpu_custom_call.1} parent=11 // pred_check
          %p529 = pneg %p219
        $region34: #{tpu_custom_call.1} parent=11 // pred_check_branch
          %531 = sbr.rel (%p529) target = $region36
        $region35: #{tpu_custom_call.1} parent=11 // pred_region
          %s533 = ssub.s32 16, 16
          %534 = vsyncadd [#allocation16], %s533
          %s536 = sshll.u32 [#allocation15], 4
          %s537 = int_to_ptr.vmem [resolvable:$true] %s536
          %539 = dma.hbm_to_vmem [thread:$0]  %s7, 16, %s537, [#allocation16]
        $region36: #{tpu_custom_call.1} parent=11 // pred_fallthru
          _
        // Predicated region
        $region37: #{tpu_custom_call.1} parent=11 // pred_check
          %p540 = pneg %p240
        $region38: #{tpu_custom_call.1} parent=11 // pred_check_branch
          %542 = sbr.rel (%p540) target = $region40
        $region39: #{tpu_custom_call.1} parent=11 // pred_region
          %s544 = ssub.s32 2048, 2048
          %545 = vsyncadd [#allocation16], %s544
          %s546 = sshll.u32 [#allocation17], 4
          %s547 = int_to_ptr.vmem [resolvable:$true] %s546
          %552 = dma.hbm_to_vmem [thread:$0]  %s8, 2048, %s547, [#allocation16], 128, 128, 8
        $region40: #{tpu_custom_call.1} parent=11 // pred_fallthru
          _
        // Predicated region
        $region41: #{tpu_custom_call.1} parent=11 // pred_check
          %p553 = pneg %p261
        $region42: #{tpu_custom_call.1} parent=11 // pred_check_branch
          %555 = sbr.rel (%p553) target = $region44
        $region43: #{tpu_custom_call.1} parent=11 // pred_region
          %s557 = ssub.s32 16, 16
          %558 = vsyncadd [#allocation19], %s557
          %s560 = sshll.u32 [#allocation18], 4
          %s561 = int_to_ptr.vmem [resolvable:$true] %s560
          %563 = dma.hbm_to_vmem [thread:$0]  %s9, 16, %s561, [#allocation19]
        $region44: #{tpu_custom_call.1} parent=11 // pred_fallthru
          _
        // Predicated region
        $region45: #{tpu_custom_call.1} parent=11 // pred_check
          %p564 = pneg %p282
        $region46: #{tpu_custom_call.1} parent=11 // pred_check_branch
          %566 = sbr.rel (%p564) target = $region48
        $region47: #{tpu_custom_call.1} parent=11 // pred_region
          %s568 = ssub.s32 2048, 2048
          %569 = vsyncadd [#allocation19], %s568
          %s570 = sshll.u32 [#allocation20], 4
          %s571 = int_to_ptr.vmem [resolvable:$true] %s570
          %576 = dma.hbm_to_vmem [thread:$0]  %s10, 2048, %s571, [#allocation19], 128, 128, 8
        $region48: #{tpu_custom_call.1} parent=11 // pred_fallthru
          _
        // Predicated region
        $region49: #{tpu_custom_call.1} parent=11 // pred_check
          %p577 = pneg %p303
        $region50: #{tpu_custom_call.1} parent=11 // pred_check_branch
          %579 = sbr.rel (%p577) target = $region52
        $region51: #{tpu_custom_call.1} parent=11 // pred_region
          %s581 = ssub.s32 16, 16
          %582 = vsyncadd [#allocation22], %s581
          %s584 = sshll.u32 [#allocation21], 4
          %s585 = int_to_ptr.vmem [resolvable:$true] %s584
          %587 = dma.hbm_to_vmem [thread:$0]  %s11, 16, %s585, [#allocation22]
        $region52: #{tpu_custom_call.1} parent=11 // pred_fallthru
          _
        // Predicated region
        $region53: #{tpu_custom_call.1} parent=11 // pred_check
          %p588 = pneg %p324
        $region54: #{tpu_custom_call.1} parent=11 // pred_check_branch
          %590 = sbr.rel (%p588) target = $region56
        $region55: #{tpu_custom_call.1} parent=11 // pred_region
          %s592 = ssub.s32 16, 16
          %593 = vsyncadd [#allocation22], %s592
          %s595 = sshll.u32 [#allocation23], 4
          %s596 = int_to_ptr.vmem [resolvable:$true] %s595
          %598 = dma.hbm_to_vmem [thread:$0]  %s12, 16, %s596, [#allocation22]
        $region56: #{tpu_custom_call.1} parent=11 // pred_fallthru
          _
        // Predicated region
        $region57: #{tpu_custom_call.1} parent=11 // pred_check
          %p599 = pneg %p345
        $region58: #{tpu_custom_call.1} parent=11 // pred_check_branch
          %601 = sbr.rel (%p599) target = $region60
        $region59: #{tpu_custom_call.1} parent=11 // pred_region
          %s603 = ssub.s32 16, 16
          %604 = vsyncadd [#allocation25], %s603
          %s606 = sshll.u32 [#allocation24], 4
          %s607 = int_to_ptr.vmem [resolvable:$true] %s606
          %609 = dma.hbm_to_vmem [thread:$0]  %s13, 16, %s607, [#allocation25]
        $region60: #{tpu_custom_call.1} parent=11 // pred_fallthru
          _
        // Predicated region
        $region61: #{tpu_custom_call.1} parent=11 // pred_check
          %p610 = pneg %p366
        $region62: #{tpu_custom_call.1} parent=11 // pred_check_branch
          %612 = sbr.rel (%p610) target = $region64
        $region63: #{tpu_custom_call.1} parent=11 // pred_region
          %s614 = ssub.s32 4096, 4096
          %615 = vsyncadd [#allocation25], %s614
          %s616 = sshll.u32 [#allocation26], 4
          %s617 = int_to_ptr.vmem [resolvable:$true] %s616
          %622 = dma.hbm_to_vmem [thread:$0]  %s14, 4096, %s617, [#allocation25], 256, 256, 16
        $region64: #{tpu_custom_call.1} parent=11 // pred_fallthru
          _
        // Predicated region
        $region65: #{tpu_custom_call.1} parent=11 // pred_check
          %p623 = pneg %p387
        $region66: #{tpu_custom_call.1} parent=11 // pred_check_branch
          %625 = sbr.rel (%p623) target = $region68
        $region67: #{tpu_custom_call.1} parent=11 // pred_region
          %s627 = ssub.s32 32, 32
          %628 = vsyncadd [#allocation28], %s627
          %s630 = sshll.u32 [#allocation27], 4
          %s631 = int_to_ptr.vmem [resolvable:$true] %s630
          %633 = dma.hbm_to_vmem [thread:$0]  %s15, 32, %s631, [#allocation28]
        $region68: #{tpu_custom_call.1} parent=11 // pred_fallthru
          _
        // Predicated region
        $region69: #{tpu_custom_call.1} parent=11 // pred_check
          %p634 = pneg %p408
        $region70: #{tpu_custom_call.1} parent=11 // pred_check_branch
          %636 = sbr.rel (%p634) target = $region72
        $region71: #{tpu_custom_call.1} parent=11 // pred_region
          %s638 = ssub.s32 4096, 4096
          %639 = vsyncadd [#allocation28], %s638
          %s640 = sshll.u32 [#allocation29], 4
          %s641 = int_to_ptr.vmem [resolvable:$true] %s640
          %646 = dma.hbm_to_vmem [thread:$0]  %s16, 4096, %s641, [#allocation28], 128, 128, 8
        $region72: #{tpu_custom_call.1} parent=11 // pred_fallthru
          _
        // Predicated region
        $region73: #{tpu_custom_call.1} parent=11 // pred_check
          %p647 = pneg %p429
        $region74: #{tpu_custom_call.1} parent=11 // pred_check_branch
          %649 = sbr.rel (%p647) target = $region76
        $region75: #{tpu_custom_call.1} parent=11 // pred_region
          %s651 = ssub.s32 16, 16
          %652 = vsyncadd [#allocation31], %s651
          %s654 = sshll.u32 [#allocation30], 4
          %s655 = int_to_ptr.vmem [resolvable:$true] %s654
          %657 = dma.hbm_to_vmem [thread:$0]  %s17, 16, %s655, [#allocation31]
        $region76: #{tpu_custom_call.1} parent=11 // pred_fallthru
          _
      $region12: #{tpu_custom_call.1} parent=5 // pred_fallthru
        _
      %p658 = scmp.lt.s32.totalorder %s41, 2
      // Predicated region
      $region77: #{tpu_custom_call.1} parent=5 // pred_check
        %p659 = pneg %p658
      $region78: #{tpu_custom_call.1} parent=5 // pred_check_branch
        %661 = sbr.rel (%p659) target = $region80
      $region79: #{tpu_custom_call.1} parent=5 // pred_region
        // Predicated region
        $region81: #{tpu_custom_call.1} parent=79 // pred_check
          %p662 = pneg %p61
        $region82: #{tpu_custom_call.1} parent=79 // pred_check_branch
          %664 = sbr.rel (%p662) target = $region84
        $region83: #{tpu_custom_call.1} parent=79 // pred_region
          %s665 = sand.u32 %s51, 1
          %s666 = scalar_lea.sflag [#allocation4], %s665
          %s667 = sand.u32 %s51, 1
          %s668 = smul.addr %s667, 32
          %s669 = scalar_lea.vmem [#allocation3], %s668
          %s670 = smul.u32 2, %s41
          %s672 = ssub.s32 512, 512
          %673 = vsyncadd %s666, %s672
          %s674 = smul.addr %s670, 2
          %s675 = smul.addr %s674, 128
          %s676 = scalar_lea.hbm %s0, %s675
          %s677 = sshll.u32 %s669, 4
          %s678 = int_to_ptr.vmem [resolvable:$true] %s677
          %683 = dma.hbm_to_vmem [thread:$0]  %s676, 512, %s678, %s666, 128, 128, 8
        $region84: #{tpu_custom_call.1} parent=79 // pred_fallthru
          _
        // Predicated region
        $region85: #{tpu_custom_call.1} parent=79 // pred_check
          %p684 = pneg %p87
        $region86: #{tpu_custom_call.1} parent=79 // pred_check_branch
          %686 = sbr.rel (%p684) target = $region88
        $region87: #{tpu_custom_call.1} parent=79 // pred_region
          %s687 = sand.u32 %s41, 1
          %s688 = scalar_lea.sflag [#allocation7], %s687
          %s689 = sand.u32 %s77, 1
          %s690 = smul.addr %s689, 32
          %s691 = scalar_lea.vmem [#allocation6], %s690
          %s692 = smul.u32 2, %s41
          %s694 = ssub.s32 512, 512
          %695 = vsyncadd %s688, %s694
          %s696 = smul.addr %s692, 2
          %s697 = smul.addr %s696, 128
          %s698 = scalar_lea.hbm %s1, %s697
          %s699 = sshll.u32 %s691, 4
          %s700 = int_to_ptr.vmem [resolvable:$true] %s699
          %705 = dma.hbm_to_vmem [thread:$0]  %s698, 512, %s700, %s688, 128, 128, 8
        $region88: #{tpu_custom_call.1} parent=79 // pred_fallthru
          _
      $region80: #{tpu_custom_call.1} parent=5 // pred_fallthru
        _
      %p706 = scmp.le.s32.totalorder 1, %s41
      %p707 = scmp.lt.s32.totalorder %s41, 3
      %p708 = pnand %p706, %p707
      %p709 = pneg %p708
      // Predicated region
      $region89: #{tpu_custom_call.1} parent=5 // pred_check
        _
      $region90: #{tpu_custom_call.1} parent=5 // pred_check_branch
        %711 = sbr.rel (%p708) target = $region92
      $region91: #{tpu_custom_call.1} parent=5 // pred_region
        %s712 = ssub.s32 %s41, 1
        %s713 = sand.u32 %s54, 1
        %s714 = scalar_lea.sflag [#allocation4], %s713
        %s715 = sand.u32 %s54, 1
        %s716 = smul.addr %s715, 32
        %s717 = scalar_lea.vmem [#allocation3], %s716
        // Predicated region
        $region93: #{tpu_custom_call.1} parent=91 // pred_check
          %p718 = pneg %p67
        $region94: #{tpu_custom_call.1} parent=91 // pred_check_branch
          %720 = sbr.rel (%p718) target = $region96
        $region95: #{tpu_custom_call.1} parent=91 // pred_region
          %721 = dma.done %s714, 512
        $region96: #{tpu_custom_call.1} parent=91 // pred_fallthru
          _
        %s722 = sand.u32 %s46, 1
        %s723 = scalar_lea.sflag [#allocation7], %s722
        %s724 = sand.u32 %s80, 1
        %s725 = smul.addr %s724, 32
        %s726 = scalar_lea.vmem [#allocation6], %s725
        // Predicated region
        $region97: #{tpu_custom_call.1} parent=91 // pred_check
          %p727 = pneg %p93
        $region98: #{tpu_custom_call.1} parent=91 // pred_check_branch
          %729 = sbr.rel (%p727) target = $region100
        $region99: #{tpu_custom_call.1} parent=91 // pred_region
          %730 = dma.done %s723, 512
        $region100: #{tpu_custom_call.1} parent=91 // pred_fallthru
          _
        // Predicated region
        $region101: #{tpu_custom_call.1} parent=91 // pred_check
          %p731 = pneg %p114
        $region102: #{tpu_custom_call.1} parent=91 // pred_check_branch
          %733 = sbr.rel (%p731) target = $region104
        $region103: #{tpu_custom_call.1} parent=91 // pred_region
          %734 = dma.done [#allocation7], 16
        $region104: #{tpu_custom_call.1} parent=91 // pred_fallthru
          _
        // Predicated region
        $region105: #{tpu_custom_call.1} parent=91 // pred_check
          %p735 = pneg %p135
        $region106: #{tpu_custom_call.1} parent=91 // pred_check_branch
          %737 = sbr.rel (%p735) target = $region108
        $region107: #{tpu_custom_call.1} parent=91 // pred_region
          %738 = dma.done [#allocation10], 16
        $region108: #{tpu_custom_call.1} parent=91 // pred_fallthru
          _
        // Predicated region
        $region109: #{tpu_custom_call.1} parent=91 // pred_check
          %p739 = pneg %p156
        $region110: #{tpu_custom_call.1} parent=91 // pred_check_branch
          %741 = sbr.rel (%p739) target = $region112
        $region111: #{tpu_custom_call.1} parent=91 // pred_region
          %742 = dma.done [#allocation10], 2048
        $region112: #{tpu_custom_call.1} parent=91 // pred_fallthru
          _
        // Predicated region
        $region113: #{tpu_custom_call.1} parent=91 // pred_check
          %p743 = pneg %p177
        $region114: #{tpu_custom_call.1} parent=91 // pred_check_branch
          %745 = sbr.rel (%p743) target = $region116
        $region115: #{tpu_custom_call.1} parent=91 // pred_region
          %746 = dma.done [#allocation13], 16
        $region116: #{tpu_custom_call.1} parent=91 // pred_fallthru
          _
        // Predicated region
        $region117: #{tpu_custom_call.1} parent=91 // pred_check
          %p747 = pneg %p198
        $region118: #{tpu_custom_call.1} parent=91 // pred_check_branch
          %749 = sbr.rel (%p747) target = $region120
        $region119: #{tpu_custom_call.1} parent=91 // pred_region
          %750 = dma.done [#allocation13], 2048
        $region120: #{tpu_custom_call.1} parent=91 // pred_fallthru
          _
        // Predicated region
        $region121: #{tpu_custom_call.1} parent=91 // pred_check
          %p751 = pneg %p219
        $region122: #{tpu_custom_call.1} parent=91 // pred_check_branch
          %753 = sbr.rel (%p751) target = $region124
        $region123: #{tpu_custom_call.1} parent=91 // pred_region
          %754 = dma.done [#allocation16], 16
        $region124: #{tpu_custom_call.1} parent=91 // pred_fallthru
          _
        // Predicated region
        $region125: #{tpu_custom_call.1} parent=91 // pred_check
          %p755 = pneg %p240
        $region126: #{tpu_custom_call.1} parent=91 // pred_check_branch
          %757 = sbr.rel (%p755) target = $region128
        $region127: #{tpu_custom_call.1} parent=91 // pred_region
          %758 = dma.done [#allocation16], 2048
        $region128: #{tpu_custom_call.1} parent=91 // pred_fallthru
          _
        // Predicated region
        $region129: #{tpu_custom_call.1} parent=91 // pred_check
          %p759 = pneg %p261
        $region130: #{tpu_custom_call.1} parent=91 // pred_check_branch
          %761 = sbr.rel (%p759) target = $region132
        $region131: #{tpu_custom_call.1} parent=91 // pred_region
          %762 = dma.done [#allocation19], 16
        $region132: #{tpu_custom_call.1} parent=91 // pred_fallthru
          _
        // Predicated region
        $region133: #{tpu_custom_call.1} parent=91 // pred_check
          %p763 = pneg %p282
        $region134: #{tpu_custom_call.1} parent=91 // pred_check_branch
          %765 = sbr.rel (%p763) target = $region136
        $region135: #{tpu_custom_call.1} parent=91 // pred_region
          %766 = dma.done [#allocation19], 2048
        $region136: #{tpu_custom_call.1} parent=91 // pred_fallthru
          _
        // Predicated region
        $region137: #{tpu_custom_call.1} parent=91 // pred_check
          %p767 = pneg %p303
        $region138: #{tpu_custom_call.1} parent=91 // pred_check_branch
          %769 = sbr.rel (%p767) target = $region140
        $region139: #{tpu_custom_call.1} parent=91 // pred_region
          %770 = dma.done [#allocation22], 16
        $region140: #{tpu_custom_call.1} parent=91 // pred_fallthru
          _
        // Predicated region
        $region141: #{tpu_custom_call.1} parent=91 // pred_check
          %p771 = pneg %p324
        $region142: #{tpu_custom_call.1} parent=91 // pred_check_branch
          %773 = sbr.rel (%p771) target = $region144
        $region143: #{tpu_custom_call.1} parent=91 // pred_region
          %774 = dma.done [#allocation22], 16
        $region144: #{tpu_custom_call.1} parent=91 // pred_fallthru
          _
        // Predicated region
        $region145: #{tpu_custom_call.1} parent=91 // pred_check
          %p775 = pneg %p345
        $region146: #{tpu_custom_call.1} parent=91 // pred_check_branch
          %777 = sbr.rel (%p775) target = $region148
        $region147: #{tpu_custom_call.1} parent=91 // pred_region
          %778 = dma.done [#allocation25], 16
        $region148: #{tpu_custom_call.1} parent=91 // pred_fallthru
          _
        // Predicated region
        $region149: #{tpu_custom_call.1} parent=91 // pred_check
          %p779 = pneg %p366
        $region150: #{tpu_custom_call.1} parent=91 // pred_check_branch
          %781 = sbr.rel (%p779) target = $region152
        $region151: #{tpu_custom_call.1} parent=91 // pred_region
          %782 = dma.done [#allocation25], 4096
        $region152: #{tpu_custom_call.1} parent=91 // pred_fallthru
          _
        // Predicated region
        $region153: #{tpu_custom_call.1} parent=91 // pred_check
          %p783 = pneg %p387
        $region154: #{tpu_custom_call.1} parent=91 // pred_check_branch
          %785 = sbr.rel (%p783) target = $region156
        $region155: #{tpu_custom_call.1} parent=91 // pred_region
          %786 = dma.done [#allocation28], 32
        $region156: #{tpu_custom_call.1} parent=91 // pred_fallthru
          _
        // Predicated region
        $region157: #{tpu_custom_call.1} parent=91 // pred_check
          %p787 = pneg %p408
        $region158: #{tpu_custom_call.1} parent=91 // pred_check_branch
          %789 = sbr.rel (%p787) target = $region160
        $region159: #{tpu_custom_call.1} parent=91 // pred_region
          %790 = dma.done [#allocation28], 4096
        $region160: #{tpu_custom_call.1} parent=91 // pred_fallthru
          _
        // Predicated region
        $region161: #{tpu_custom_call.1} parent=91 // pred_check
          %p791 = pneg %p429
        $region162: #{tpu_custom_call.1} parent=91 // pred_check_branch
          %793 = sbr.rel (%p791) target = $region164
        $region163: #{tpu_custom_call.1} parent=91 // pred_region
          %794 = dma.done [#allocation31], 16
        $region164: #{tpu_custom_call.1} parent=91 // pred_fallthru
          _
        %s795 = sand.u32 %s54, 1
        %s796 = scalar_lea.sflag [#allocation4], %s795
        %s797 = sand.u32 %s54, 1
        %s798 = smul.addr %s797, 32
        %s799 = scalar_lea.vmem [#allocation3], %s798
        %p800 = pneg %p67
        %p801 = pneg %p64
        %s802 = sand.u32 %s46, 1
        %s803 = scalar_lea.sflag [#allocation7], %s802
        %s804 = sand.u32 %s80, 1
        %s805 = smul.addr %s804, 32
        %s806 = scalar_lea.vmem [#allocation6], %s805
        %p807 = pneg %p93
        %p808 = pneg %p90
        %p809 = pneg %p114
        %p810 = pneg %p111
        %p811 = pneg %p135
        %p812 = pneg %p132
        %p813 = pneg %p156
        %p814 = pneg %p153
        %p815 = pneg %p177
        %p816 = pneg %p174
        %p817 = pneg %p198
        %p818 = pneg %p195
        %p819 = pneg %p219
        %p820 = pneg %p216
        %p821 = pneg %p240
        %p822 = pneg %p237
        %p823 = pneg %p261
        %p824 = pneg %p258
        %p825 = pneg %p282
        %p826 = pneg %p279
        %p827 = pneg %p303
        %p828 = pneg %p300
        %p829 = pneg %p324
        %p830 = pneg %p321
        %p831 = pneg %p345
        %p832 = pneg %p342
        %p833 = pneg %p366
        %p834 = pneg %p363
        %p835 = pneg %p387
        %p836 = pneg %p384
        %p837 = pneg %p408
        %p838 = pneg %p405
        %p839 = pneg %p429
        %p840 = pneg %p426
        %p841 = pneg %p455
        %p842 = pneg %p452
        %s843 = sand.u32 %s442, 1
        %s844 = scalar_lea.sflag [#allocation5], %s843
        %s845 = sand.u32 %s442, 1
        %s846 = smul.addr %s845, 32
        %s847 = scalar_lea.vmem [#allocation32], %s846
        %s848 = smul.u32 2, %s46
        %s849 = smul.u32 2, %s46
        %s850 = smul.u32 2, %s46
        %v851 = vld [vmem:[%s717] sm:$0xff]
        %v852 = vld [vmem:[%s717 + $0x8] sm:$0xff]
        %v853 = vld [vmem:[%s717 + $0x10] sm:$0xff]
        %v854 = vld [vmem:[%s717 + $0x18] sm:$0xff]
        %v855 = vld [vmem:[%s726] sm:$0xff]
        %v856 = vld [vmem:[%s726 + $0x8] sm:$0xff]
        %v857 = vld [vmem:[%s726 + $0x10] sm:$0xff]
        %v858 = vld [vmem:[%s726 + $0x18] sm:$0xff]
        %859 = vst [vmem:[#allocation2] sm:$0xff] %v851
        %860 = vst [vmem:[#allocation2 + $0x8] sm:$0xff] %v852
        %861 = vst [vmem:[#allocation2 + $0x20] sm:$0xff] %v853
        %862 = vst [vmem:[#allocation2 + $0x28] sm:$0xff] %v854
        %863 = vst [vmem:[#allocation2 + $0x10] sm:$0xff] %v855
        %864 = vst [vmem:[#allocation2 + $0x18] sm:$0xff] %v856
        %865 = vst [vmem:[#allocation2 + $0x30] sm:$0xff] %v857
        %866 = vst [vmem:[#allocation2 + $0x38] sm:$0xff] %v858
        %v867 = vld [vmem:[#allocation2] sm:$0xff]
        %v868 = vld [vmem:[#allocation2 + $0x8] sm:$0xff]
        %v869 = vld [vmem:[#allocation2 + $0x10] sm:$0xff]
        %v870 = vld [vmem:[#allocation2 + $0x18] sm:$0xff]
        %v871 = vld [vmem:[#allocation2 + $0x20] sm:$0xff]
        %v872 = vld [vmem:[#allocation2 + $0x28] sm:$0xff]
        %v873 = vld [vmem:[#allocation2 + $0x30] sm:$0xff]
        %v874 = vld [vmem:[#allocation2 + $0x38] sm:$0xff]
        %875 = vadd.xlane.f32.xlu0 %v867
        %v876 = vpop.xlane.xlu0 %875
        %877 = vadd.xlane.f32.xlu0 %v868
        %v878 = vpop.xlane.xlu0 %877
        %879 = vadd.xlane.f32.xlu0 %v869
        %v880 = vpop.xlane.xlu0 %879
        %881 = vadd.xlane.f32.xlu0 %v870
        %v882 = vpop.xlane.xlu0 %881
        %883 = vadd.xlane.f32.xlu0 %v871
        %v884 = vpop.xlane.xlu0 %883
        %885 = vadd.xlane.f32.xlu0 %v872
        %v886 = vpop.xlane.xlu0 %885
        %887 = vadd.xlane.f32.xlu0 %v873
        %v888 = vpop.xlane.xlu0 %887
        %889 = vadd.xlane.f32.xlu0 %v874
        %v890 = vpop.xlane.xlu0 %889
        %v891 = vrcp.pop 128.0
        %v892 = vmul.f32 %v876, %v891
        %v893 = vmul.f32 %v878, %v891
        %v894 = vmul.f32 %v880, %v891
        %v895 = vmul.f32 %v882, %v891
        %v896 = vmul.f32 %v884, %v891
        %v897 = vmul.f32 %v886, %v891
        %v898 = vmul.f32 %v888, %v891
        %v899 = vmul.f32 %v890, %v891
        %v900 = vsub.f32 %v867, %v892
        %v901 = vsub.f32 %v868, %v893
        %v902 = vsub.f32 %v869, %v894
        %v903 = vsub.f32 %v870, %v895
        %v904 = vsub.f32 %v871, %v896
        %v905 = vsub.f32 %v872, %v897
        %v906 = vsub.f32 %v873, %v898
        %v907 = vsub.f32 %v874, %v899
        %v908 = vmul.f32 %v900, %v900
        %v909 = vmul.f32 %v901, %v901
        %v910 = vmul.f32 %v902, %v902
        %v911 = vmul.f32 %v903, %v903
        %v912 = vmul.f32 %v904, %v904
        %v913 = vmul.f32 %v905, %v905
        %v914 = vmul.f32 %v906, %v906
        %v915 = vmul.f32 %v907, %v907
        %916 = vadd.xlane.f32.xlu0 %v908
        %v917 = vpop.xlane.xlu0 %916
        %918 = vadd.xlane.f32.xlu0 %v909
        %v919 = vpop.xlane.xlu0 %918
        %920 = vadd.xlane.f32.xlu0 %v910
        %v921 = vpop.xlane.xlu0 %920
        %922 = vadd.xlane.f32.xlu0 %v911
        %v923 = vpop.xlane.xlu0 %922
        %924 = vadd.xlane.f32.xlu0 %v912
        %v925 = vpop.xlane.xlu0 %924
        %926 = vadd.xlane.f32.xlu0 %v913
        %v927 = vpop.xlane.xlu0 %926
        %928 = vadd.xlane.f32.xlu0 %v914
        %v929 = vpop.xlane.xlu0 %928
        %930 = vadd.xlane.f32.xlu0 %v915
        %v931 = vpop.xlane.xlu0 %930
        %v932 = vmul.f32 %v917, %v891
        %v933 = vmul.f32 %v919, %v891
        %v934 = vmul.f32 %v921, %v891
        %v935 = vmul.f32 %v923, %v891
        %v936 = vmul.f32 %v925, %v891
        %v937 = vmul.f32 %v927, %v891
        %v938 = vmul.f32 %v929, %v891
        %v939 = vmul.f32 %v931, %v891
        %v940 = vadd.f32 %v932, 1e-05
        %v941 = vadd.f32 %v933, 1e-05
        %v942 = vadd.f32 %v934, 1e-05
        %v943 = vadd.f32 %v935, 1e-05
        %v944 = vadd.f32 %v936, 1e-05
        %v945 = vadd.f32 %v937, 1e-05
        %v946 = vadd.f32 %v938, 1e-05
        %v947 = vadd.f32 %v939, 1e-05
        %v948 = vrsqrt.pop %v940
        %v949 = vrsqrt.pop %v941
        %v950 = vrsqrt.pop %v942
        %v951 = vrsqrt.pop %v943
        %v952 = vrsqrt.pop %v944
        %v953 = vrsqrt.pop %v945
        %v954 = vrsqrt.pop %v946
        %v955 = vrsqrt.pop %v947
        %v956 = vmul.f32 %v900, %v948
        %v957 = vmul.f32 %v901, %v949
        %v958 = vmul.f32 %v902, %v950
        %v959 = vmul.f32 %v903, %v951
        %v960 = vmul.f32 %v904, %v952
        %v961 = vmul.f32 %v905, %v953
        %v962 = vmul.f32 %v906, %v954
        %v963 = vmul.f32 %v907, %v955
        %v964 = vld [vmem:[#allocation8] sm:$0x1]
        %v966 = vlaneseq
        %v967 = vshrl.u32 %v966, 7
        %v968 = vsub.s32 0, %v967
        %v969 = vrot.slane %v964, %v968
        %v971 = vmul.f32 %v956, %v969
        %v972 = vmul.f32 %v957, %v969
        %v973 = vmul.f32 %v958, %v969
        %v974 = vmul.f32 %v959, %v969
        %v975 = vmul.f32 %v960, %v969
        %v976 = vmul.f32 %v961, %v969
        %v977 = vmul.f32 %v962, %v969
        %v978 = vmul.f32 %v963, %v969
        %v979 = vld [vmem:[#allocation9] sm:$0x1]
        %v981 = vlaneseq
        %v982 = vshrl.u32 %v981, 7
        %v983 = vsub.s32 0, %v982
        %v984 = vrot.slane %v979, %v983
        %v986 = vadd.f32 %v971, %v984
        %v987 = vadd.f32 %v972, %v984
        %v988 = vadd.f32 %v973, %v984
        %v989 = vadd.f32 %v974, %v984
        %v990 = vadd.f32 %v975, %v984
        %v991 = vadd.f32 %v976, %v984
        %v992 = vadd.f32 %v977, %v984
        %v993 = vadd.f32 %v978, %v984
        %v994 = vld [vmem:[#allocation11] sm:$0xff]
        %v995 = vld [vmem:[#allocation11 + $0x8] sm:$0xff]
        %v996 = vld [vmem:[#allocation11 + $0x10] sm:$0xff]
        %v997 = vld [vmem:[#allocation11 + $0x18] sm:$0xff]
        %v998 = vld [vmem:[#allocation11 + $0x20] sm:$0xff]
        %v999 = vld [vmem:[#allocation11 + $0x28] sm:$0xff]
        %v1000 = vld [vmem:[#allocation11 + $0x30] sm:$0xff]
        %v1001 = vld [vmem:[#allocation11 + $0x38] sm:$0xff]
        %v1002 = vld [vmem:[#allocation11 + $0x40] sm:$0xff]
        %v1003 = vld [vmem:[#allocation11 + $0x48] sm:$0xff]
        %v1004 = vld [vmem:[#allocation11 + $0x50] sm:$0xff]
        %v1005 = vld [vmem:[#allocation11 + $0x58] sm:$0xff]
        %v1006 = vld [vmem:[#allocation11 + $0x60] sm:$0xff]
        %v1007 = vld [vmem:[#allocation11 + $0x68] sm:$0xff]
        %v1008 = vld [vmem:[#allocation11 + $0x70] sm:$0xff]
        %v1009 = vld [vmem:[#allocation11 + $0x78] sm:$0xff]
        %v1010 = vld [vmem:[#allocation12] sm:$0x1]
        %v1012 = vlaneseq
        %v1013 = vshrl.u32 %v1012, 7
        %v1014 = vsub.s32 0, %v1013
        %v1015 = vrot.slane %v1010, %v1014
        %1017 = vmatprep.subr.mxu0 0.0
        %1018 = vmatpush1.msra.mxu0 %v994
        %1019 = vmatprep.subr.mxu0 0.0
        %1020 = vmatpush1.msra.mxu0 %v995
        %1021 = vmatprep.subr.mxu0 0.0
        %1022 = vmatpush1.msra.mxu0 %v996
        %1023 = vmatprep.subr.mxu0 0.0
        %1024 = vmatpush1.msra.mxu0 %v997
        %1025 = vmatprep.subr.mxu0 0.0
        %1026 = vmatpush1.msra.mxu0 %v998
        %1027 = vmatprep.subr.mxu0 0.0
        %1028 = vmatpush1.msra.mxu0 %v999
        %1029 = vmatprep.subr.mxu0 0.0
        %1030 = vmatpush1.msra.mxu0 %v1000
        %1031 = vmatprep.subr.mxu0 0.0
        %1032 = vmatpush1.msra.mxu0 %v1001
        %1033 = vmatprep.subr.mxu0 0.0
        %1034 = vmatpush1.msra.mxu0 %v1002
        %1035 = vmatprep.subr.mxu0 0.0
        %1036 = vmatpush1.msra.mxu0 %v1003
        %1037 = vmatprep.subr.mxu0 0.0
        %1038 = vmatpush1.msra.mxu0 %v1004
        %1039 = vmatprep.subr.mxu0 0.0
        %1040 = vmatpush1.msra.mxu0 %v1005
        %1041 = vmatprep.subr.mxu0 0.0
        %1042 = vmatpush1.msra.mxu0 %v1006
        %1043 = vmatprep.subr.mxu0 0.0
        %1044 = vmatpush1.msra.mxu0 %v1007
        %1045 = vmatprep.subr.mxu0 0.0
        %1046 = vmatpush1.msra.mxu0 %v1008
        %1047 = vmatprep.subr.mxu0 0.0
        %1048 = vmatpush1.msra.mxu0 %v1009
        %1049 = vmatprep.subr.mxu0 0.0
        %1050 = vmatpush1.msra.mxu0 0.0
        %1051 = vmatprep.subr.mxu0 0.0
        %1052 = vmatpush1.msra.mxu0 0.0
        %1053 = vmatprep.subr.mxu0 0.0
        %1054 = vmatpush1.msra.mxu0 0.0
        %1055 = vmatprep.subr.mxu0 0.0
        %1056 = vmatpush1.msra.mxu0 0.0
        %1057 = vmatprep.subr.mxu0 0.0
        %1058 = vmatpush1.msra.mxu0 0.0
        %1059 = vmatprep.subr.mxu0 0.0
        %1060 = vmatpush1.msra.mxu0 0.0
        %1061 = vmatprep.subr.mxu0 0.0
        %1062 = vmatpush1.msra.mxu0 0.0
        %1063 = vmatprep.subr.mxu0 0.0
        %1064 = vmatpush1.msra.mxu0 0.0
        %1065 = vmatprep.subr.mxu0 0.0
        %1066 = vmatpush1.msra.mxu0 0.0
        %1067 = vmatprep.subr.mxu0 0.0
        %1068 = vmatpush1.msra.mxu0 0.0
        %1069 = vmatprep.subr.mxu0 0.0
        %1070 = vmatpush1.msra.mxu0 0.0
        %1071 = vmatprep.subr.mxu0 0.0
        %1072 = vmatpush1.msra.mxu0 0.0
        %1073 = vmatprep.subr.mxu0 0.0
        %1074 = vmatpush1.msra.mxu0 0.0
        %1075 = vmatprep.subr.mxu0 0.0
        %1076 = vmatpush1.msra.mxu0 0.0
        %1077 = vmatprep.subr.mxu0 0.0
        %1078 = vmatpush1.msra.mxu0 0.0
        %1079 = vmatprep.subr.mxu0 0.0
        %1080 = vmatpush1.msra.mxu0 0.0
        %1081 = vmatprep.mubr.f32.mxu0 0.0
        %1082 = vmatmul.mubr.f32.gmra.mrb[0].mxu0 %v855
        %v1083 = vpop.f32.mrb[0].mxu0
        %v1084 = vadd.f32 %v1015, %v1083
        %v1085 = vpop.f32.mrb[0].mxu0
        %1086 = vmatprep.mubr.f32.mxu0 0.0
        %1087 = vmatmul.mubr.f32.gmra.mrb[0].mxu0 %v856
        %v1088 = vpop.f32.mrb[0].mxu0
        %v1089 = vadd.f32 %v1015, %v1088
        %v1090 = vpop.f32.mrb[0].mxu0
        %1091 = vmatprep.mubr.f32.mxu0 0.0
        %1092 = vmatmul.mubr.f32.gmra.mrb[0].mxu0 %v857
        %v1093 = vpop.f32.mrb[0].mxu0
        %v1094 = vadd.f32 %v1015, %v1093
        %v1095 = vpop.f32.mrb[0].mxu0
        %1096 = vmatprep.mubr.f32.mxu0 0.0
        %1097 = vmatmul.mubr.f32.gmra.mrb[0].mxu0 %v858
        %v1098 = vpop.f32.mrb[0].mxu0
        %v1099 = vadd.f32 %v1015, %v1098
        %v1100 = vpop.f32.mrb[0].mxu0
        %1101 = vdwg.mxu0
        %v1102 = vld [vmem:[#allocation14] sm:$0xff]
        %v1103 = vld [vmem:[#allocation14 + $0x8] sm:$0xff]
        %v1104 = vld [vmem:[#allocation14 + $0x10] sm:$0xff]
        %v1105 = vld [vmem:[#allocation14 + $0x18] sm:$0xff]
        %v1106 = vld [vmem:[#allocation14 + $0x20] sm:$0xff]
        %v1107 = vld [vmem:[#allocation14 + $0x28] sm:$0xff]
        %v1108 = vld [vmem:[#allocation14 + $0x30] sm:$0xff]
        %v1109 = vld [vmem:[#allocation14 + $0x38] sm:$0xff]
        %v1110 = vld [vmem:[#allocation14 + $0x40] sm:$0xff]
        %v1111 = vld [vmem:[#allocation14 + $0x48] sm:$0xff]
        %v1112 = vld [vmem:[#allocation14 + $0x50] sm:$0xff]
        %v1113 = vld [vmem:[#allocation14 + $0x58] sm:$0xff]
        %v1114 = vld [vmem:[#allocation14 + $0x60] sm:$0xff]
        %v1115 = vld [vmem:[#allocation14 + $0x68] sm:$0xff]
        %v1116 = vld [vmem:[#allocation14 + $0x70] sm:$0xff]
        %v1117 = vld [vmem:[#allocation14 + $0x78] sm:$0xff]
        %v1118 = vld [vmem:[#allocation15] sm:$0x1]
        %v1120 = vlaneseq
        %v1121 = vshrl.u32 %v1120, 7
        %v1122 = vsub.s32 0, %v1121
        %v1123 = vrot.slane %v1118, %v1122
        %1125 = vmatprep.subr.mxu0 0.0
        %1126 = vmatpush1.msra.mxu0 %v1102
        %1127 = vmatprep.subr.mxu0 0.0
        %1128 = vmatpush1.msra.mxu0 %v1103
        %1129 = vmatprep.subr.mxu0 0.0
        %1130 = vmatpush1.msra.mxu0 %v1104
        %1131 = vmatprep.subr.mxu0 0.0
        %1132 = vmatpush1.msra.mxu0 %v1105
        %1133 = vmatprep.subr.mxu0 0.0
        %1134 = vmatpush1.msra.mxu0 %v1106
        %1135 = vmatprep.subr.mxu0 0.0
        %1136 = vmatpush1.msra.mxu0 %v1107
        %1137 = vmatprep.subr.mxu0 0.0
        %1138 = vmatpush1.msra.mxu0 %v1108
        %1139 = vmatprep.subr.mxu0 0.0
        %1140 = vmatpush1.msra.mxu0 %v1109
        %1141 = vmatprep.subr.mxu0 0.0
        %1142 = vmatpush1.msra.mxu0 %v1110
        %1143 = vmatprep.subr.mxu0 0.0
        %1144 = vmatpush1.msra.mxu0 %v1111
        %1145 = vmatprep.subr.mxu0 0.0
        %1146 = vmatpush1.msra.mxu0 %v1112
        %1147 = vmatprep.subr.mxu0 0.0
        %1148 = vmatpush1.msra.mxu0 %v1113
        %1149 = vmatprep.subr.mxu0 0.0
        %1150 = vmatpush1.msra.mxu0 %v1114
        %1151 = vmatprep.subr.mxu0 0.0
        %1152 = vmatpush1.msra.mxu0 %v1115
        %1153 = vmatprep.subr.mxu0 0.0
        %1154 = vmatpush1.msra.mxu0 %v1116
        %1155 = vmatprep.subr.mxu0 0.0
        %1156 = vmatpush1.msra.mxu0 %v1117
        %1157 = vmatprep.subr.mxu0 0.0
        %1158 = vmatpush1.msra.mxu0 0.0
        %1159 = vmatprep.subr.mxu0 0.0
        %1160 = vmatpush1.msra.mxu0 0.0
        %1161 = vmatprep.subr.mxu0 0.0
        %1162 = vmatpush1.msra.mxu0 0.0
        %1163 = vmatprep.subr.mxu0 0.0
        %1164 = vmatpush1.msra.mxu0 0.0
        %1165 = vmatprep.subr.mxu0 0.0
        %1166 = vmatpush1.msra.mxu0 0.0
        %1167 = vmatprep.subr.mxu0 0.0
        %1168 = vmatpush1.msra.mxu0 0.0
        %1169 = vmatprep.subr.mxu0 0.0
        %1170 = vmatpush1.msra.mxu0 0.0
        %1171 = vmatprep.subr.mxu0 0.0
        %1172 = vmatpush1.msra.mxu0 0.0
        %1173 = vmatprep.subr.mxu0 0.0
        %1174 = vmatpush1.msra.mxu0 0.0
        %1175 = vmatprep.subr.mxu0 0.0
        %1176 = vmatpush1.msra.mxu0 0.0
        %1177 = vmatprep.subr.mxu0 0.0
        %1178 = vmatpush1.msra.mxu0 0.0
        %1179 = vmatprep.subr.mxu0 0.0
        %1180 = vmatpush1.msra.mxu0 0.0
        %1181 = vmatprep.subr.mxu0 0.0
        %1182 = vmatpush1.msra.mxu0 0.0
        %1183 = vmatprep.subr.mxu0 0.0
        %1184 = vmatpush1.msra.mxu0 0.0
        %1185 = vmatprep.subr.mxu0 0.0
        %1186 = vmatpush1.msra.mxu0 0.0
        %1187 = vmatprep.subr.mxu0 0.0
        %1188 = vmatpush1.msra.mxu0 0.0
        %1189 = vmatprep.mubr.f32.mxu0 0.0
        %1190 = vmatmul.mubr.f32.gmra.mrb[0].mxu0 %v986
        %v1191 = vpop.f32.mrb[0].mxu0
        %v1192 = vadd.f32 %v1123, %v1191
        %v1193 = vpop.f32.mrb[0].mxu0
        %1194 = vmatprep.mubr.f32.mxu0 0.0
        %1195 = vmatmul.mubr.f32.gmra.mrb[0].mxu0 %v987
        %v1196 = vpop.f32.mrb[0].mxu0
        %v1197 = vadd.f32 %v1123, %v1196
        %v1198 = vpop.f32.mrb[0].mxu0
        %1199 = vmatprep.mubr.f32.mxu0 0.0
        %1200 = vmatmul.mubr.f32.gmra.mrb[0].mxu0 %v988
        %v1201 = vpop.f32.mrb[0].mxu0
        %v1202 = vadd.f32 %v1123, %v1201
        %v1203 = vpop.f32.mrb[0].mxu0
        %1204 = vmatprep.mubr.f32.mxu0 0.0
        %1205 = vmatmul.mubr.f32.gmra.mrb[0].mxu0 %v989
        %v1206 = vpop.f32.mrb[0].mxu0
        %v1207 = vadd.f32 %v1123, %v1206
        %v1208 = vpop.f32.mrb[0].mxu0
        %1209 = vmatprep.mubr.f32.mxu0 0.0
        %1210 = vmatmul.mubr.f32.gmra.mrb[0].mxu0 %v990
        %v1211 = vpop.f32.mrb[0].mxu0
        %v1212 = vadd.f32 %v1123, %v1211
        %v1213 = vpop.f32.mrb[0].mxu0
        %1214 = vmatprep.mubr.f32.mxu0 0.0
        %1215 = vmatmul.mubr.f32.gmra.mrb[0].mxu0 %v991
        %v1216 = vpop.f32.mrb[0].mxu0
        %v1217 = vadd.f32 %v1123, %v1216
        %v1218 = vpop.f32.mrb[0].mxu0
        %1219 = vmatprep.mubr.f32.mxu0 0.0
        %1220 = vmatmul.mubr.f32.gmra.mrb[0].mxu0 %v992
        %v1221 = vpop.f32.mrb[0].mxu0
        %v1222 = vadd.f32 %v1123, %v1221
        %v1223 = vpop.f32.mrb[0].mxu0
        %1224 = vmatprep.mubr.f32.mxu0 0.0
        %1225 = vmatmul.mubr.f32.gmra.mrb[0].mxu0 %v993
        %v1226 = vpop.f32.mrb[0].mxu0
        %v1227 = vadd.f32 %v1123, %v1226
        %v1228 = vpop.f32.mrb[0].mxu0
        %1229 = vdwg.mxu0
        %v1230 = vld [vmem:[#allocation17] sm:$0xff]
        %v1231 = vld [vmem:[#allocation17 + $0x8] sm:$0xff]
        %v1232 = vld [vmem:[#allocation17 + $0x10] sm:$0xff]
        %v1233 = vld [vmem:[#allocation17 + $0x18] sm:$0xff]
        %v1234 = vld [vmem:[#allocation17 + $0x20] sm:$0xff]
        %v1235 = vld [vmem:[#allocation17 + $0x28] sm:$0xff]
        %v1236 = vld [vmem:[#allocation17 + $0x30] sm:$0xff]
        %v1237 = vld [vmem:[#allocation17 + $0x38] sm:$0xff]
        %v1238 = vld [vmem:[#allocation17 + $0x40] sm:$0xff]
        %v1239 = vld [vmem:[#allocation17 + $0x48] sm:$0xff]
        %v1240 = vld [vmem:[#allocation17 + $0x50] sm:$0xff]
        %v1241 = vld [vmem:[#allocation17 + $0x58] sm:$0xff]
        %v1242 = vld [vmem:[#allocation17 + $0x60] sm:$0xff]
        %v1243 = vld [vmem:[#allocation17 + $0x68] sm:$0xff]
        %v1244 = vld [vmem:[#allocation17 + $0x70] sm:$0xff]
        %v1245 = vld [vmem:[#allocation17 + $0x78] sm:$0xff]
        %v1246 = vld [vmem:[#allocation18] sm:$0x1]
        %v1248 = vlaneseq
        %v1249 = vshrl.u32 %v1248, 7
        %v1250 = vsub.s32 0, %v1249
        %v1251 = vrot.slane %v1246, %v1250
        %1253 = vmatprep.subr.mxu0 0.0
        %1254 = vmatpush1.msra.mxu0 %v1230
        %1255 = vmatprep.subr.mxu0 0.0
        %1256 = vmatpush1.msra.mxu0 %v1231
        %1257 = vmatprep.subr.mxu0 0.0
        %1258 = vmatpush1.msra.mxu0 %v1232
        %1259 = vmatprep.subr.mxu0 0.0
        %1260 = vmatpush1.msra.mxu0 %v1233
        %1261 = vmatprep.subr.mxu0 0.0
        %1262 = vmatpush1.msra.mxu0 %v1234
        %1263 = vmatprep.subr.mxu0 0.0
        %1264 = vmatpush1.msra.mxu0 %v1235
        %1265 = vmatprep.subr.mxu0 0.0
        %1266 = vmatpush1.msra.mxu0 %v1236
        %1267 = vmatprep.subr.mxu0 0.0
        %1268 = vmatpush1.msra.mxu0 %v1237
        %1269 = vmatprep.subr.mxu0 0.0
        %1270 = vmatpush1.msra.mxu0 %v1238
        %1271 = vmatprep.subr.mxu0 0.0
        %1272 = vmatpush1.msra.mxu0 %v1239
        %1273 = vmatprep.subr.mxu0 0.0
        %1274 = vmatpush1.msra.mxu0 %v1240
        %1275 = vmatprep.subr.mxu0 0.0
        %1276 = vmatpush1.msra.mxu0 %v1241
        %1277 = vmatprep.subr.mxu0 0.0
        %1278 = vmatpush1.msra.mxu0 %v1242
        %1279 = vmatprep.subr.mxu0 0.0
        %1280 = vmatpush1.msra.mxu0 %v1243
        %1281 = vmatprep.subr.mxu0 0.0
        %1282 = vmatpush1.msra.mxu0 %v1244
        %1283 = vmatprep.subr.mxu0 0.0
        %1284 = vmatpush1.msra.mxu0 %v1245
        %1285 = vmatprep.subr.mxu0 0.0
        %1286 = vmatpush1.msra.mxu0 0.0
        %1287 = vmatprep.subr.mxu0 0.0
        %1288 = vmatpush1.msra.mxu0 0.0
        %1289 = vmatprep.subr.mxu0 0.0
        %1290 = vmatpush1.msra.mxu0 0.0
        %1291 = vmatprep.subr.mxu0 0.0
        %1292 = vmatpush1.msra.mxu0 0.0
        %1293 = vmatprep.subr.mxu0 0.0
        %1294 = vmatpush1.msra.mxu0 0.0
        %1295 = vmatprep.subr.mxu0 0.0
        %1296 = vmatpush1.msra.mxu0 0.0
        %1297 = vmatprep.subr.mxu0 0.0
        %1298 = vmatpush1.msra.mxu0 0.0
        %1299 = vmatprep.subr.mxu0 0.0
        %1300 = vmatpush1.msra.mxu0 0.0
        %1301 = vmatprep.subr.mxu0 0.0
        %1302 = vmatpush1.msra.mxu0 0.0
        %1303 = vmatprep.subr.mxu0 0.0
        %1304 = vmatpush1.msra.mxu0 0.0
        %1305 = vmatprep.subr.mxu0 0.0
        %1306 = vmatpush1.msra.mxu0 0.0
        %1307 = vmatprep.subr.mxu0 0.0
        %1308 = vmatpush1.msra.mxu0 0.0
        %1309 = vmatprep.subr.mxu0 0.0
        %1310 = vmatpush1.msra.mxu0 0.0
        %1311 = vmatprep.subr.mxu0 0.0
        %1312 = vmatpush1.msra.mxu0 0.0
        %1313 = vmatprep.subr.mxu0 0.0
        %1314 = vmatpush1.msra.mxu0 0.0
        %1315 = vmatprep.subr.mxu0 0.0
        %1316 = vmatpush1.msra.mxu0 0.0
        %1317 = vmatprep.mubr.f32.mxu0 0.0
        %1318 = vmatmul.mubr.f32.gmra.mrb[0].mxu0 %v986
        %v1319 = vpop.f32.mrb[0].mxu0
        %v1320 = vadd.f32 %v1251, %v1319
        %v1321 = vpop.f32.mrb[0].mxu0
        %1322 = vmatprep.mubr.f32.mxu0 0.0
        %1323 = vmatmul.mubr.f32.gmra.mrb[0].mxu0 %v987
        %v1324 = vpop.f32.mrb[0].mxu0
        %v1325 = vadd.f32 %v1251, %v1324
        %v1326 = vpop.f32.mrb[0].mxu0
        %1327 = vmatprep.mubr.f32.mxu0 0.0
        %1328 = vmatmul.mubr.f32.gmra.mrb[0].mxu0 %v988
        %v1329 = vpop.f32.mrb[0].mxu0
        %v1330 = vadd.f32 %v1251, %v1329
        %v1331 = vpop.f32.mrb[0].mxu0
        %1332 = vmatprep.mubr.f32.mxu0 0.0
        %1333 = vmatmul.mubr.f32.gmra.mrb[0].mxu0 %v989
        %v1334 = vpop.f32.mrb[0].mxu0
        %v1335 = vadd.f32 %v1251, %v1334
        %v1336 = vpop.f32.mrb[0].mxu0
        %1337 = vmatprep.mubr.f32.mxu0 0.0
        %1338 = vmatmul.mubr.f32.gmra.mrb[0].mxu0 %v990
        %v1339 = vpop.f32.mrb[0].mxu0
        %v1340 = vadd.f32 %v1251, %v1339
        %v1341 = vpop.f32.mrb[0].mxu0
        %1342 = vmatprep.mubr.f32.mxu0 0.0
        %1343 = vmatmul.mubr.f32.gmra.mrb[0].mxu0 %v991
        %v1344 = vpop.f32.mrb[0].mxu0
        %v1345 = vadd.f32 %v1251, %v1344
        %v1346 = vpop.f32.mrb[0].mxu0
        %1347 = vmatprep.mubr.f32.mxu0 0.0
        %1348 = vmatmul.mubr.f32.gmra.mrb[0].mxu0 %v992
        %v1349 = vpop.f32.mrb[0].mxu0
        %v1350 = vadd.f32 %v1251, %v1349
        %v1351 = vpop.f32.mrb[0].mxu0
        %1352 = vmatprep.mubr.f32.mxu0 0.0
        %1353 = vmatmul.mubr.f32.gmra.mrb[0].mxu0 %v993
        %v1354 = vpop.f32.mrb[0].mxu0
        %v1355 = vadd.f32 %v1251, %v1354
        %v1356 = vpop.f32.mrb[0].mxu0
        %1357 = vdwg.mxu0
        %v1358 = vmul.f32 %v1084, 0.25
        %v1359 = vmul.f32 %v1089, 0.25
        %v1360 = vmul.f32 %v1094, 0.25
        %v1361 = vmul.f32 %v1099, 0.25
        %vm1362 = vcmask 130048
        %v1364 = vsel %vm1362, %v1358, 0
        %v1367 = vsel %vm1362, %v1359, 0
        %v1370 = vsel %vm1362, %v1192, 0
        %v1373 = vsel %vm1362, %v1197, 0
        %v1376 = vsel %vm1362, %v1202, 0
        %v1379 = vsel %vm1362, %v1207, 0
        %1381 = vmatprep.subr.mxu0 0.0
        %1382 = vmatpush1.xpose.msra.mxu0 %v1370
        %1383 = vmatprep.subr.mxu0 0.0
        %1384 = vmatpush1.xpose.msra.mxu0 %v1373
        %1385 = vmatprep.subr.mxu0 0.0
        %1386 = vmatpush1.xpose.msra.mxu0 %v1376
        %1387 = vmatprep.subr.mxu0 0.0
        %1388 = vmatpush1.xpose.msra.mxu0 %v1379
        %1389 = vmatprep.subr.mxu0 0.0
        %1390 = vmatpush1.xpose.msra.mxu0 0.0
        %1391 = vmatprep.subr.mxu0 0.0
        %1392 = vmatpush1.xpose.msra.mxu0 0.0
        %1393 = vmatprep.subr.mxu0 0.0
        %1394 = vmatpush1.xpose.msra.mxu0 0.0
        %1395 = vmatprep.subr.mxu0 0.0
        %1396 = vmatpush1.xpose.msra.mxu0 0.0
        %1397 = vmatprep.subr.mxu0 0.0
        %1398 = vmatpush1.xpose.msra.mxu0 0.0
        %1399 = vmatprep.subr.mxu0 0.0
        %1400 = vmatpush1.xpose.msra.mxu0 0.0
        %1401 = vmatprep.subr.mxu0 0.0
        %1402 = vmatpush1.xpose.msra.mxu0 0.0
        %1403 = vmatprep.subr.mxu0 0.0
        %1404 = vmatpush1.xpose.msra.mxu0 0.0
        %1405 = vmatprep.subr.mxu0 0.0
        %1406 = vmatpush1.xpose.msra.mxu0 0.0
        %1407 = vmatprep.subr.mxu0 0.0
        %1408 = vmatpush1.xpose.msra.mxu0 0.0
        %1409 = vmatprep.subr.mxu0 0.0
        %1410 = vmatpush1.xpose.msra.mxu0 0.0
        %1411 = vmatprep.subr.mxu0 0.0
        %1412 = vmatpush1.xpose.msra.mxu0 0.0
        %1413 = vmatprep.subr.mxu0 0.0
        %1414 = vmatpush1.xpose.msra.mxu0 0.0
        %1415 = vmatprep.subr.mxu0 0.0
        %1416 = vmatpush1.xpose.msra.mxu0 0.0
        %1417 = vmatprep.subr.mxu0 0.0
        %1418 = vmatpush1.xpose.msra.mxu0 0.0
        %1419 = vmatprep.subr.mxu0 0.0
        %1420 = vmatpush1.xpose.msra.mxu0 0.0
        %1421 = vmatprep.subr.mxu0 0.0
        %1422 = vmatpush1.xpose.msra.mxu0 0.0
        %1423 = vmatprep.subr.mxu0 0.0
        %1424 = vmatpush1.xpose.msra.mxu0 0.0
        %1425 = vmatprep.subr.mxu0 0.0
        %1426 = vmatpush1.xpose.msra.mxu0 0.0
        %1427 = vmatprep.subr.mxu0 0.0
        %1428 = vmatpush1.xpose.msra.mxu0 0.0
        %1429 = vmatprep.subr.mxu0 0.0
        %1430 = vmatpush1.xpose.msra.mxu0 0.0
        %1431 = vmatprep.subr.mxu0 0.0
        %1432 = vmatpush1.xpose.msra.mxu0 0.0
        %1433 = vmatprep.subr.mxu0 0.0
        %1434 = vmatpush1.xpose.msra.mxu0 0.0
        %1435 = vmatprep.subr.mxu0 0.0
        %1436 = vmatpush1.xpose.msra.mxu0 0.0
        %1437 = vmatprep.subr.mxu0 0.0
        %1438 = vmatpush1.xpose.msra.mxu0 0.0
        %1439 = vmatprep.subr.mxu0 0.0
        %1440 = vmatpush1.xpose.msra.mxu0 0.0
        %1441 = vmatprep.subr.mxu0 0.0
        %1442 = vmatpush1.xpose.msra.mxu0 0.0
        %1443 = vmatprep.subr.mxu0 0.0
        %1444 = vmatpush1.xpose.msra.mxu0 0.0
        %1445 = vmatprep.mubr.f32.mxu0 0.0
        %1446 = vmatmul.mubr.f32.gmra.mrb[0].mxu0 %v1364
        %v1447 = vpop.f32.mrb[0].mxu0
        %v1448 = vadd.f32 0.0, %v1447
        %v1449 = vpop.f32.mrb[0].mxu0
        %1450 = vmatprep.mubr.f32.mxu0 0.0
        %1451 = vmatmul.mubr.f32.gmra.mrb[0].mxu0 %v1367
        %v1452 = vpop.f32.mrb[0].mxu0
        %v1453 = vadd.f32 0.0, %v1452
        %v1454 = vpop.f32.mrb[0].mxu0
        %1455 = vdwg.mxu0
        %v1457 = vsel %vm1362, %v1360, 0
        %v1460 = vsel %vm1362, %v1361, 0
        %v1463 = vsel %vm1362, %v1212, 0
        %v1466 = vsel %vm1362, %v1217, 0
        %v1469 = vsel %vm1362, %v1222, 0
        %v1472 = vsel %vm1362, %v1227, 0
        %1474 = vmatprep.subr.mxu0 0.0
        %1475 = vmatpush1.xpose.msra.mxu0 %v1463
        %1476 = vmatprep.subr.mxu0 0.0
        %1477 = vmatpush1.xpose.msra.mxu0 %v1466
        %1478 = vmatprep.subr.mxu0 0.0
        %1479 = vmatpush1.xpose.msra.mxu0 %v1469
        %1480 = vmatprep.subr.mxu0 0.0
        %1481 = vmatpush1.xpose.msra.mxu0 %v1472
        %1482 = vmatprep.subr.mxu0 0.0
        %1483 = vmatpush1.xpose.msra.mxu0 0.0
        %1484 = vmatprep.subr.mxu0 0.0
        %1485 = vmatpush1.xpose.msra.mxu0 0.0
        %1486 = vmatprep.subr.mxu0 0.0
        %1487 = vmatpush1.xpose.msra.mxu0 0.0
        %1488 = vmatprep.subr.mxu0 0.0
        %1489 = vmatpush1.xpose.msra.mxu0 0.0
        %1490 = vmatprep.subr.mxu0 0.0
        %1491 = vmatpush1.xpose.msra.mxu0 0.0
        %1492 = vmatprep.subr.mxu0 0.0
        %1493 = vmatpush1.xpose.msra.mxu0 0.0
        %1494 = vmatprep.subr.mxu0 0.0
        %1495 = vmatpush1.xpose.msra.mxu0 0.0
        %1496 = vmatprep.subr.mxu0 0.0
        %1497 = vmatpush1.xpose.msra.mxu0 0.0
        %1498 = vmatprep.subr.mxu0 0.0
        %1499 = vmatpush1.xpose.msra.mxu0 0.0
        %1500 = vmatprep.subr.mxu0 0.0
        %1501 = vmatpush1.xpose.msra.mxu0 0.0
        %1502 = vmatprep.subr.mxu0 0.0
        %1503 = vmatpush1.xpose.msra.mxu0 0.0
        %1504 = vmatprep.subr.mxu0 0.0
        %1505 = vmatpush1.xpose.msra.mxu0 0.0
        %1506 = vmatprep.subr.mxu0 0.0
        %1507 = vmatpush1.xpose.msra.mxu0 0.0
        %1508 = vmatprep.subr.mxu0 0.0
        %1509 = vmatpush1.xpose.msra.mxu0 0.0
        %1510 = vmatprep.subr.mxu0 0.0
        %1511 = vmatpush1.xpose.msra.mxu0 0.0
        %1512 = vmatprep.subr.mxu0 0.0
        %1513 = vmatpush1.xpose.msra.mxu0 0.0
        %1514 = vmatprep.subr.mxu0 0.0
        %1515 = vmatpush1.xpose.msra.mxu0 0.0
        %1516 = vmatprep.subr.mxu0 0.0
        %1517 = vmatpush1.xpose.msra.mxu0 0.0
        %1518 = vmatprep.subr.mxu0 0.0
        %1519 = vmatpush1.xpose.msra.mxu0 0.0
        %1520 = vmatprep.subr.mxu0 0.0
        %1521 = vmatpush1.xpose.msra.mxu0 0.0
        %1522 = vmatprep.subr.mxu0 0.0
        %1523 = vmatpush1.xpose.msra.mxu0 0.0
        %1524 = vmatprep.subr.mxu0 0.0
        %1525 = vmatpush1.xpose.msra.mxu0 0.0
        %1526 = vmatprep.subr.mxu0 0.0
        %1527 = vmatpush1.xpose.msra.mxu0 0.0
        %1528 = vmatprep.subr.mxu0 0.0
        %1529 = vmatpush1.xpose.msra.mxu0 0.0
        %1530 = vmatprep.subr.mxu0 0.0
        %1531 = vmatpush1.xpose.msra.mxu0 0.0
        %1532 = vmatprep.subr.mxu0 0.0
        %1533 = vmatpush1.xpose.msra.mxu0 0.0
        %1534 = vmatprep.subr.mxu0 0.0
        %1535 = vmatpush1.xpose.msra.mxu0 0.0
        %1536 = vmatprep.subr.mxu0 0.0
        %1537 = vmatpush1.xpose.msra.mxu0 0.0
        %1538 = vmatprep.mubr.f32.mxu0 0.0
        %1539 = vmatmul.mubr.f32.gmra.mrb[0].mxu0 %v1457
        %v1540 = vpop.f32.mrb[0].mxu0
        %v1541 = vadd.f32 0.0, %v1540
        %v1542 = vpop.f32.mrb[0].mxu0
        %1543 = vmatprep.mubr.f32.mxu0 0.0
        %1544 = vmatmul.mubr.f32.gmra.mrb[0].mxu0 %v1460
        %v1545 = vpop.f32.mrb[0].mxu0
        %v1546 = vadd.f32 0.0, %v1545
        %v1547 = vpop.f32.mrb[0].mxu0
        %1548 = vdwg.mxu0
        %vm1549 = vcmask 261120
        %v1550 = vsel %vm1549, %v1448, -inf
        %1551 = vmax.xlane.f32.xlu0 %v1550
        %v1552 = vpop.xlane.xlu0 %1551
        %v1553 = vsel %vm1549, %v1453, -inf
        %1554 = vmax.xlane.f32.xlu0 %v1553
        %v1555 = vpop.xlane.xlu0 %1554
        %v1556 = vsel %vm1549, %v1541, -inf
        %1557 = vmax.xlane.f32.xlu0 %v1556
        %v1558 = vpop.xlane.xlu0 %1557
        %v1559 = vsel %vm1549, %v1546, -inf
        %1560 = vmax.xlane.f32.xlu0 %v1559
        %v1561 = vpop.xlane.xlu0 %1560
        %v1562 = vsub.f32 %v1448, %v1552
        %v1563 = vsub.f32 %v1453, %v1555
        %v1564 = vsub.f32 %v1541, %v1558
        %v1565 = vsub.f32 %v1546, %v1561
        %v1566 = vmul.f32 %v1562, 1.442695
        %v1567 = vpow.pop %v1566
        %v1568 = vmul.f32 %v1563, 1.442695
        %v1569 = vpow.pop %v1568
        %v1570 = vmul.f32 %v1564, 1.442695
        %v1571 = vpow.pop %v1570
        %v1572 = vmul.f32 %v1565, 1.442695
        %v1573 = vpow.pop %v1572
        %v1574 = vsel %vm1549, %v1567, 0.0
        %1575 = vadd.xlane.f32.xlu0 %v1574
        %v1576 = vpop.xlane.xlu0 %1575
        %v1577 = vsel %vm1549, %v1569, 0.0
        %1578 = vadd.xlane.f32.xlu0 %v1577
        %v1579 = vpop.xlane.xlu0 %1578
        %v1580 = vsel %vm1549, %v1571, 0.0
        %1581 = vadd.xlane.f32.xlu0 %v1580
        %v1582 = vpop.xlane.xlu0 %1581
        %v1583 = vsel %vm1549, %v1573, 0.0
        %1584 = vadd.xlane.f32.xlu0 %v1583
        %v1585 = vpop.xlane.xlu0 %1584
        %v1586 = vrcp.pop %v1576
        %v1587 = vrcp.pop %v1579
        %v1588 = vrcp.pop %v1582
        %v1589 = vrcp.pop %v1585
        %v1590 = vmul.f32 %v1567, %v1586
        %v1591 = vmul.f32 %v1569, %v1587
        %v1592 = vmul.f32 %v1571, %v1588
        %v1593 = vmul.f32 %v1573, %v1589
        %v1595 = vsel %vm1549, %v1590, 0
        %v1598 = vsel %vm1549, %v1591, 0
        %1600 = vmatprep.subr.mxu0 0.0
        %1601 = vmatpush1.msra.mxu0 %v1320
        %1602 = vmatprep.subr.mxu0 0.0
        %1603 = vmatpush1.msra.mxu0 %v1325
        %1604 = vmatprep.subr.mxu0 0.0
        %1605 = vmatpush1.msra.mxu0 %v1330
        %1606 = vmatprep.subr.mxu0 0.0
        %1607 = vmatpush1.msra.mxu0 %v1335
        %1608 = vmatprep.subr.mxu0 0.0
        %1609 = vmatpush1.msra.mxu0 0.0
        %1610 = vmatprep.subr.mxu0 0.0
        %1611 = vmatpush1.msra.mxu0 0.0
        %1612 = vmatprep.subr.mxu0 0.0
        %1613 = vmatpush1.msra.mxu0 0.0
        %1614 = vmatprep.subr.mxu0 0.0
        %1615 = vmatpush1.msra.mxu0 0.0
        %1616 = vmatprep.subr.mxu0 0.0
        %1617 = vmatpush1.msra.mxu0 0.0
        %1618 = vmatprep.subr.mxu0 0.0
        %1619 = vmatpush1.msra.mxu0 0.0
        %1620 = vmatprep.subr.mxu0 0.0
        %1621 = vmatpush1.msra.mxu0 0.0
        %1622 = vmatprep.subr.mxu0 0.0
        %1623 = vmatpush1.msra.mxu0 0.0
        %1624 = vmatprep.subr.mxu0 0.0
        %1625 = vmatpush1.msra.mxu0 0.0
        %1626 = vmatprep.subr.mxu0 0.0
        %1627 = vmatpush1.msra.mxu0 0.0
        %1628 = vmatprep.subr.mxu0 0.0
        %1629 = vmatpush1.msra.mxu0 0.0
        %1630 = vmatprep.subr.mxu0 0.0
        %1631 = vmatpush1.msra.mxu0 0.0
        %1632 = vmatprep.subr.mxu0 0.0
        %1633 = vmatpush1.msra.mxu0 0.0
        %1634 = vmatprep.subr.mxu0 0.0
        %1635 = vmatpush1.msra.mxu0 0.0
        %1636 = vmatprep.subr.mxu0 0.0
        %1637 = vmatpush1.msra.mxu0 0.0
        %1638 = vmatprep.subr.mxu0 0.0
        %1639 = vmatpush1.msra.mxu0 0.0
        %1640 = vmatprep.subr.mxu0 0.0
        %1641 = vmatpush1.msra.mxu0 0.0
        %1642 = vmatprep.subr.mxu0 0.0
        %1643 = vmatpush1.msra.mxu0 0.0
        %1644 = vmatprep.subr.mxu0 0.0
        %1645 = vmatpush1.msra.mxu0 0.0
        %1646 = vmatprep.subr.mxu0 0.0
        %1647 = vmatpush1.msra.mxu0 0.0
        %1648 = vmatprep.subr.mxu0 0.0
        %1649 = vmatpush1.msra.mxu0 0.0
        %1650 = vmatprep.subr.mxu0 0.0
        %1651 = vmatpush1.msra.mxu0 0.0
        %1652 = vmatprep.subr.mxu0 0.0
        %1653 = vmatpush1.msra.mxu0 0.0
        %1654 = vmatprep.subr.mxu0 0.0
        %1655 = vmatpush1.msra.mxu0 0.0
        %1656 = vmatprep.subr.mxu0 0.0
        %1657 = vmatpush1.msra.mxu0 0.0
        %1658 = vmatprep.subr.mxu0 0.0
        %1659 = vmatpush1.msra.mxu0 0.0
        %1660 = vmatprep.subr.mxu0 0.0
        %1661 = vmatpush1.msra.mxu0 0.0
        %1662 = vmatprep.subr.mxu0 0.0
        %1663 = vmatpush1.msra.mxu0 0.0
        %1664 = vmatprep.mubr.f32.mxu0 0.0
        %1665 = vmatmul.mubr.f32.gmra.mrb[0].mxu0 %v1595
        %v1666 = vpop.f32.mrb[0].mxu0
        %v1667 = vadd.f32 0.0, %v1666
        %v1668 = vpop.f32.mrb[0].mxu0
        %1669 = vmatprep.mubr.f32.mxu0 0.0
        %1670 = vmatmul.mubr.f32.gmra.mrb[0].mxu0 %v1598
        %v1671 = vpop.f32.mrb[0].mxu0
        %v1672 = vadd.f32 0.0, %v1671
        %v1673 = vpop.f32.mrb[0].mxu0
        %1674 = vdwg.mxu0
        %v1676 = vsel %vm1549, %v1592, 0
        %v1679 = vsel %vm1549, %v1593, 0
        %1681 = vmatprep.subr.mxu0 0.0
        %1682 = vmatpush1.msra.mxu0 %v1340
        %1683 = vmatprep.subr.mxu0 0.0
        %1684 = vmatpush1.msra.mxu0 %v1345
        %1685 = vmatprep.subr.mxu0 0.0
        %1686 = vmatpush1.msra.mxu0 %v1350
        %1687 = vmatprep.subr.mxu0 0.0
        %1688 = vmatpush1.msra.mxu0 %v1355
        %1689 = vmatprep.subr.mxu0 0.0
        %1690 = vmatpush1.msra.mxu0 0.0
        %1691 = vmatprep.subr.mxu0 0.0
        %1692 = vmatpush1.msra.mxu0 0.0
        %1693 = vmatprep.subr.mxu0 0.0
        %1694 = vmatpush1.msra.mxu0 0.0
        %1695 = vmatprep.subr.mxu0 0.0
        %1696 = vmatpush1.msra.mxu0 0.0
        %1697 = vmatprep.subr.mxu0 0.0
        %1698 = vmatpush1.msra.mxu0 0.0
        %1699 = vmatprep.subr.mxu0 0.0
        %1700 = vmatpush1.msra.mxu0 0.0
        %1701 = vmatprep.subr.mxu0 0.0
        %1702 = vmatpush1.msra.mxu0 0.0
        %1703 = vmatprep.subr.mxu0 0.0
        %1704 = vmatpush1.msra.mxu0 0.0
        %1705 = vmatprep.subr.mxu0 0.0
        %1706 = vmatpush1.msra.mxu0 0.0
        %1707 = vmatprep.subr.mxu0 0.0
        %1708 = vmatpush1.msra.mxu0 0.0
        %1709 = vmatprep.subr.mxu0 0.0
        %1710 = vmatpush1.msra.mxu0 0.0
        %1711 = vmatprep.subr.mxu0 0.0
        %1712 = vmatpush1.msra.mxu0 0.0
        %1713 = vmatprep.subr.mxu0 0.0
        %1714 = vmatpush1.msra.mxu0 0.0
        %1715 = vmatprep.subr.mxu0 0.0
        %1716 = vmatpush1.msra.mxu0 0.0
        %1717 = vmatprep.subr.mxu0 0.0
        %1718 = vmatpush1.msra.mxu0 0.0
        %1719 = vmatprep.subr.mxu0 0.0
        %1720 = vmatpush1.msra.mxu0 0.0
        %1721 = vmatprep.subr.mxu0 0.0
        %1722 = vmatpush1.msra.mxu0 0.0
        %1723 = vmatprep.subr.mxu0 0.0
        %1724 = vmatpush1.msra.mxu0 0.0
        %1725 = vmatprep.subr.mxu0 0.0
        %1726 = vmatpush1.msra.mxu0 0.0
        %1727 = vmatprep.subr.mxu0 0.0
        %1728 = vmatpush1.msra.mxu0 0.0
        %1729 = vmatprep.subr.mxu0 0.0
        %1730 = vmatpush1.msra.mxu0 0.0
        %1731 = vmatprep.subr.mxu0 0.0
        %1732 = vmatpush1.msra.mxu0 0.0
        %1733 = vmatprep.subr.mxu0 0.0
        %1734 = vmatpush1.msra.mxu0 0.0
        %1735 = vmatprep.subr.mxu0 0.0
        %1736 = vmatpush1.msra.mxu0 0.0
        %1737 = vmatprep.subr.mxu0 0.0
        %1738 = vmatpush1.msra.mxu0 0.0
        %1739 = vmatprep.subr.mxu0 0.0
        %1740 = vmatpush1.msra.mxu0 0.0
        %1741 = vmatprep.subr.mxu0 0.0
        %1742 = vmatpush1.msra.mxu0 0.0
        %1743 = vmatprep.subr.mxu0 0.0
        %1744 = vmatpush1.msra.mxu0 0.0
        %1745 = vmatprep.mubr.f32.mxu0 0.0
        %1746 = vmatmul.mubr.f32.gmra.mrb[0].mxu0 %v1676
        %v1747 = vpop.f32.mrb[0].mxu0
        %v1748 = vadd.f32 0.0, %v1747
        %v1749 = vpop.f32.mrb[0].mxu0
        %1750 = vmatprep.mubr.f32.mxu0 0.0
        %1751 = vmatmul.mubr.f32.gmra.mrb[0].mxu0 %v1679
        %v1752 = vpop.f32.mrb[0].mxu0
        %v1753 = vadd.f32 0.0, %v1752
        %v1754 = vpop.f32.mrb[0].mxu0
        %1755 = vdwg.mxu0
        %1756 = vrot.lane.b32.xlu0 %v1358, 112
        %v1757 = vpop.permute.xlu0 %1756
        %1758 = vrot.lane.b32.xlu0 %v1359, 112
        %v1759 = vpop.permute.xlu0 %1758
        %1760 = vrot.lane.b32.xlu0 %v1192, 112
        %v1761 = vpop.permute.xlu0 %1760
        %1762 = vrot.lane.b32.xlu0 %v1197, 112
        %v1763 = vpop.permute.xlu0 %1762
        %1764 = vrot.lane.b32.xlu0 %v1202, 112
        %v1765 = vpop.permute.xlu0 %1764
        %1766 = vrot.lane.b32.xlu0 %v1207, 112
        %v1767 = vpop.permute.xlu0 %1766
        %v1768 = vsel %vm1362, %v1757, 0
        %v1770 = vsel %vm1362, %v1759, 0
        %v1772 = vsel %vm1362, %v1761, 0
        %v1774 = vsel %vm1362, %v1763, 0
        %v1776 = vsel %vm1362, %v1765, 0
        %v1778 = vsel %vm1362, %v1767, 0
        %1780 = vmatprep.subr.mxu0 0.0
        %1781 = vmatpush1.xpose.msra.mxu0 %v1772
        %1782 = vmatprep.subr.mxu0 0.0
        %1783 = vmatpush1.xpose.msra.mxu0 %v1774
        %1784 = vmatprep.subr.mxu0 0.0
        %1785 = vmatpush1.xpose.msra.mxu0 %v1776
        %1786 = vmatprep.subr.mxu0 0.0
        %1787 = vmatpush1.xpose.msra.mxu0 %v1778
        %1788 = vmatprep.subr.mxu0 0.0
        %1789 = vmatpush1.xpose.msra.mxu0 0.0
        %1790 = vmatprep.subr.mxu0 0.0
        %1791 = vmatpush1.xpose.msra.mxu0 0.0
        %1792 = vmatprep.subr.mxu0 0.0
        %1793 = vmatpush1.xpose.msra.mxu0 0.0
        %1794 = vmatprep.subr.mxu0 0.0
        %1795 = vmatpush1.xpose.msra.mxu0 0.0
        %1796 = vmatprep.subr.mxu0 0.0
        %1797 = vmatpush1.xpose.msra.mxu0 0.0
        %1798 = vmatprep.subr.mxu0 0.0
        %1799 = vmatpush1.xpose.msra.mxu0 0.0
        %1800 = vmatprep.subr.mxu0 0.0
        %1801 = vmatpush1.xpose.msra.mxu0 0.0
        %1802 = vmatprep.subr.mxu0 0.0
        %1803 = vmatpush1.xpose.msra.mxu0 0.0
        %1804 = vmatprep.subr.mxu0 0.0
        %1805 = vmatpush1.xpose.msra.mxu0 0.0
        %1806 = vmatprep.subr.mxu0 0.0
        %1807 = vmatpush1.xpose.msra.mxu0 0.0
        %1808 = vmatprep.subr.mxu0 0.0
        %1809 = vmatpush1.xpose.msra.mxu0 0.0
        %1810 = vmatprep.subr.mxu0 0.0
        %1811 = vmatpush1.xpose.msra.mxu0 0.0
        %1812 = vmatprep.subr.mxu0 0.0
        %1813 = vmatpush1.xpose.msra.mxu0 0.0
        %1814 = vmatprep.subr.mxu0 0.0
        %1815 = vmatpush1.xpose.msra.mxu0 0.0
        %1816 = vmatprep.subr.mxu0 0.0
        %1817 = vmatpush1.xpose.msra.mxu0 0.0
        %1818 = vmatprep.subr.mxu0 0.0
        %1819 = vmatpush1.xpose.msra.mxu0 0.0
        %1820 = vmatprep.subr.mxu0 0.0
        %1821 = vmatpush1.xpose.msra.mxu0 0.0
        %1822 = vmatprep.subr.mxu0 0.0
        %1823 = vmatpush1.xpose.msra.mxu0 0.0
        %1824 = vmatprep.subr.mxu0 0.0
        %1825 = vmatpush1.xpose.msra.mxu0 0.0
        %1826 = vmatprep.subr.mxu0 0.0
        %1827 = vmatpush1.xpose.msra.mxu0 0.0
        %1828 = vmatprep.subr.mxu0 0.0
        %1829 = vmatpush1.xpose.msra.mxu0 0.0
        %1830 = vmatprep.subr.mxu0 0.0
        %1831 = vmatpush1.xpose.msra.mxu0 0.0
        %1832 = vmatprep.subr.mxu0 0.0
        %1833 = vmatpush1.xpose.msra.mxu0 0.0
        %1834 = vmatprep.subr.mxu0 0.0
        %1835 = vmatpush1.xpose.msra.mxu0 0.0
        %1836 = vmatprep.subr.mxu0 0.0
        %1837 = vmatpush1.xpose.msra.mxu0 0.0
        %1838 = vmatprep.subr.mxu0 0.0
        %1839 = vmatpush1.xpose.msra.mxu0 0.0
        %1840 = vmatprep.subr.mxu0 0.0
        %1841 = vmatpush1.xpose.msra.mxu0 0.0
        %1842 = vmatprep.subr.mxu0 0.0
        %1843 = vmatpush1.xpose.msra.mxu0 0.0
        %1844 = vmatprep.mubr.f32.mxu0 0.0
        %1845 = vmatmul.mubr.f32.gmra.mrb[0].mxu0 %v1768
        %v1846 = vpop.f32.mrb[0].mxu0
        %v1847 = vadd.f32 0.0, %v1846
        %v1848 = vpop.f32.mrb[0].mxu0
        %1849 = vmatprep.mubr.f32.mxu0 0.0
        %1850 = vmatmul.mubr.f32.gmra.mrb[0].mxu0 %v1770
        %v1851 = vpop.f32.mrb[0].mxu0
        %v1852 = vadd.f32 0.0, %v1851
        %v1853 = vpop.f32.mrb[0].mxu0
        %1854 = vdwg.mxu0
        %1855 = vrot.lane.b32.xlu0 %v1360, 112
        %v1856 = vpop.permute.xlu0 %1855
        %1857 = vrot.lane.b32.xlu0 %v1361, 112
        %v1858 = vpop.permute.xlu0 %1857
        %1859 = vrot.lane.b32.xlu0 %v1212, 112
        %v1860 = vpop.permute.xlu0 %1859
        %1861 = vrot.lane.b32.xlu0 %v1217, 112
        %v1862 = vpop.permute.xlu0 %1861
        %1863 = vrot.lane.b32.xlu0 %v1222, 112
        %v1864 = vpop.permute.xlu0 %1863
        %1865 = vrot.lane.b32.xlu0 %v1227, 112
        %v1866 = vpop.permute.xlu0 %1865
        %v1867 = vsel %vm1362, %v1856, 0
        %v1869 = vsel %vm1362, %v1858, 0
        %v1871 = vsel %vm1362, %v1860, 0
        %v1873 = vsel %vm1362, %v1862, 0
        %v1875 = vsel %vm1362, %v1864, 0
        %v1877 = vsel %vm1362, %v1866, 0
        %1879 = vmatprep.subr.mxu0 0.0
        %1880 = vmatpush1.xpose.msra.mxu0 %v1871
        %1881 = vmatprep.subr.mxu0 0.0
        %1882 = vmatpush1.xpose.msra.mxu0 %v1873
        %1883 = vmatprep.subr.mxu0 0.0
        %1884 = vmatpush1.xpose.msra.mxu0 %v1875
        %1885 = vmatprep.subr.mxu0 0.0
        %1886 = vmatpush1.xpose.msra.mxu0 %v1877
        %1887 = vmatprep.subr.mxu0 0.0
        %1888 = vmatpush1.xpose.msra.mxu0 0.0
        %1889 = vmatprep.subr.mxu0 0.0
        %1890 = vmatpush1.xpose.msra.mxu0 0.0
        %1891 = vmatprep.subr.mxu0 0.0
        %1892 = vmatpush1.xpose.msra.mxu0 0.0
        %1893 = vmatprep.subr.mxu0 0.0
        %1894 = vmatpush1.xpose.msra.mxu0 0.0
        %1895 = vmatprep.subr.mxu0 0.0
        %1896 = vmatpush1.xpose.msra.mxu0 0.0
        %1897 = vmatprep.subr.mxu0 0.0
        %1898 = vmatpush1.xpose.msra.mxu0 0.0
        %1899 = vmatprep.subr.mxu0 0.0
        %1900 = vmatpush1.xpose.msra.mxu0 0.0
        %1901 = vmatprep.subr.mxu0 0.0
        %1902 = vmatpush1.xpose.msra.mxu0 0.0
        %1903 = vmatprep.subr.mxu0 0.0
        %1904 = vmatpush1.xpose.msra.mxu0 0.0
        %1905 = vmatprep.subr.mxu0 0.0
        %1906 = vmatpush1.xpose.msra.mxu0 0.0
        %1907 = vmatprep.subr.mxu0 0.0
        %1908 = vmatpush1.xpose.msra.mxu0 0.0
        %1909 = vmatprep.subr.mxu0 0.0
        %1910 = vmatpush1.xpose.msra.mxu0 0.0
        %1911 = vmatprep.subr.mxu0 0.0
        %1912 = vmatpush1.xpose.msra.mxu0 0.0
        %1913 = vmatprep.subr.mxu0 0.0
        %1914 = vmatpush1.xpose.msra.mxu0 0.0
        %1915 = vmatprep.subr.mxu0 0.0
        %1916 = vmatpush1.xpose.msra.mxu0 0.0
        %1917 = vmatprep.subr.mxu0 0.0
        %1918 = vmatpush1.xpose.msra.mxu0 0.0
        %1919 = vmatprep.subr.mxu0 0.0
        %1920 = vmatpush1.xpose.msra.mxu0 0.0
        %1921 = vmatprep.subr.mxu0 0.0
        %1922 = vmatpush1.xpose.msra.mxu0 0.0
        %1923 = vmatprep.subr.mxu0 0.0
        %1924 = vmatpush1.xpose.msra.mxu0 0.0
        %1925 = vmatprep.subr.mxu0 0.0
        %1926 = vmatpush1.xpose.msra.mxu0 0.0
        %1927 = vmatprep.subr.mxu0 0.0
        %1928 = vmatpush1.xpose.msra.mxu0 0.0
        %1929 = vmatprep.subr.mxu0 0.0
        %1930 = vmatpush1.xpose.msra.mxu0 0.0
        %1931 = vmatprep.subr.mxu0 0.0
        %1932 = vmatpush1.xpose.msra.mxu0 0.0
        %1933 = vmatprep.subr.mxu0 0.0
        %1934 = vmatpush1.xpose.msra.mxu0 0.0
        %1935 = vmatprep.subr.mxu0 0.0
        %1936 = vmatpush1.xpose.msra.mxu0 0.0
        %1937 = vmatprep.subr.mxu0 0.0
        %1938 = vmatpush1.xpose.msra.mxu0 0.0
        %1939 = vmatprep.subr.mxu0 0.0
        %1940 = vmatpush1.xpose.msra.mxu0 0.0
        %1941 = vmatprep.subr.mxu0 0.0
        %1942 = vmatpush1.xpose.msra.mxu0 0.0
        %1943 = vmatprep.mubr.f32.mxu0 0.0
        %1944 = vmatmul.mubr.f32.gmra.mrb[0].mxu0 %v1867
        %v1945 = vpop.f32.mrb[0].mxu0
        %v1946 = vadd.f32 0.0, %v1945
        %v1947 = vpop.f32.mrb[0].mxu0
        %1948 = vmatprep.mubr.f32.mxu0 0.0
        %1949 = vmatmul.mubr.f32.gmra.mrb[0].mxu0 %v1869
        %v1950 = vpop.f32.mrb[0].mxu0
        %v1951 = vadd.f32 0.0, %v1950
        %v1952 = vpop.f32.mrb[0].mxu0
        %1953 = vdwg.mxu0
        %v1954 = vsel %vm1549, %v1847, -inf
        %1955 = vmax.xlane.f32.xlu0 %v1954
        %v1956 = vpop.xlane.xlu0 %1955
        %v1957 = vsel %vm1549, %v1852, -inf
        %1958 = vmax.xlane.f32.xlu0 %v1957
        %v1959 = vpop.xlane.xlu0 %1958
        %v1960 = vsel %vm1549, %v1946, -inf
        %1961 = vmax.xlane.f32.xlu0 %v1960
        %v1962 = vpop.xlane.xlu0 %1961
        %v1963 = vsel %vm1549, %v1951, -inf
        %1964 = vmax.xlane.f32.xlu0 %v1963
        %v1965 = vpop.xlane.xlu0 %1964
        %v1966 = vsub.f32 %v1847, %v1956
        %v1967 = vsub.f32 %v1852, %v1959
        %v1968 = vsub.f32 %v1946, %v1962
        %v1969 = vsub.f32 %v1951, %v1965
        %v1970 = vmul.f32 %v1966, 1.442695
        %v1971 = vpow.pop %v1970
        %v1972 = vmul.f32 %v1967, 1.442695
        %v1973 = vpow.pop %v1972
        %v1974 = vmul.f32 %v1968, 1.442695
        %v1975 = vpow.pop %v1974
        %v1976 = vmul.f32 %v1969, 1.442695
        %v1977 = vpow.pop %v1976
        %v1978 = vsel %vm1549, %v1971, 0.0
        %1979 = vadd.xlane.f32.xlu0 %v1978
        %v1980 = vpop.xlane.xlu0 %1979
        %v1981 = vsel %vm1549, %v1973, 0.0
        %1982 = vadd.xlane.f32.xlu0 %v1981
        %v1983 = vpop.xlane.xlu0 %1982
        %v1984 = vsel %vm1549, %v1975, 0.0
        %1985 = vadd.xlane.f32.xlu0 %v1984
        %v1986 = vpop.xlane.xlu0 %1985
        %v1987 = vsel %vm1549, %v1977, 0.0
        %1988 = vadd.xlane.f32.xlu0 %v1987
        %v1989 = vpop.xlane.xlu0 %1988
        %v1990 = vrcp.pop %v1980
        %v1991 = vrcp.pop %v1983
        %v1992 = vrcp.pop %v1986
        %v1993 = vrcp.pop %v1989
        %v1994 = vmul.f32 %v1971, %v1990
        %v1995 = vmul.f32 %v1973, %v1991
        %v1996 = vmul.f32 %v1975, %v1992
        %v1997 = vmul.f32 %v1977, %v1993
        %2002 = vrot.lane.b32.xlu0 %v1320, 112
        %v2003 = vpop.permute.xlu0 %2002
        %2004 = vrot.lane.b32.xlu0 %v1325, 112
        %v2005 = vpop.permute.xlu0 %2004
        %2006 = vrot.lane.b32.xlu0 %v1330, 112
        %v2007 = vpop.permute.xlu0 %2006
        %2008 = vrot.lane.b32.xlu0 %v1335, 112
        %v2009 = vpop.permute.xlu0 %2008
        %v2015 = vsel %vm1549, %v1994, 0
        %v2018 = vsel %vm1549, %v1995, 0
        %2020 = vmatprep.subr.mxu0 0.0
        %2021 = vmatpush1.msra.mxu0 %v2003
        %2022 = vmatprep.subr.mxu0 0.0
        %2023 = vmatpush1.msra.mxu0 %v2005
        %2024 = vmatprep.subr.mxu0 0.0
        %2025 = vmatpush1.msra.mxu0 %v2007
        %2026 = vmatprep.subr.mxu0 0.0
        %2027 = vmatpush1.msra.mxu0 %v2009
        %2028 = vmatprep.subr.mxu0 0.0
        %2029 = vmatpush1.msra.mxu0 0.0
        %2030 = vmatprep.subr.mxu0 0.0
        %2031 = vmatpush1.msra.mxu0 0.0
        %2032 = vmatprep.subr.mxu0 0.0
        %2033 = vmatpush1.msra.mxu0 0.0
        %2034 = vmatprep.subr.mxu0 0.0
        %2035 = vmatpush1.msra.mxu0 0.0
        %2036 = vmatprep.subr.mxu0 0.0
        %2037 = vmatpush1.msra.mxu0 0.0
        %2038 = vmatprep.subr.mxu0 0.0
        %2039 = vmatpush1.msra.mxu0 0.0
        %2040 = vmatprep.subr.mxu0 0.0
        %2041 = vmatpush1.msra.mxu0 0.0
        %2042 = vmatprep.subr.mxu0 0.0
        %2043 = vmatpush1.msra.mxu0 0.0
        %2044 = vmatprep.subr.mxu0 0.0
        %2045 = vmatpush1.msra.mxu0 0.0
        %2046 = vmatprep.subr.mxu0 0.0
        %2047 = vmatpush1.msra.mxu0 0.0
        %2048 = vmatprep.subr.mxu0 0.0
        %2049 = vmatpush1.msra.mxu0 0.0
        %2050 = vmatprep.subr.mxu0 0.0
        %2051 = vmatpush1.msra.mxu0 0.0
        %2052 = vmatprep.subr.mxu0 0.0
        %2053 = vmatpush1.msra.mxu0 0.0
        %2054 = vmatprep.subr.mxu0 0.0
        %2055 = vmatpush1.msra.mxu0 0.0
        %2056 = vmatprep.subr.mxu0 0.0
        %2057 = vmatpush1.msra.mxu0 0.0
        %2058 = vmatprep.subr.mxu0 0.0
        %2059 = vmatpush1.msra.mxu0 0.0
        %2060 = vmatprep.subr.mxu0 0.0
        %2061 = vmatpush1.msra.mxu0 0.0
        %2062 = vmatprep.subr.mxu0 0.0
        %2063 = vmatpush1.msra.mxu0 0.0
        %2064 = vmatprep.subr.mxu0 0.0
        %2065 = vmatpush1.msra.mxu0 0.0
        %2066 = vmatprep.subr.mxu0 0.0
        %2067 = vmatpush1.msra.mxu0 0.0
        %2068 = vmatprep.subr.mxu0 0.0
        %2069 = vmatpush1.msra.mxu0 0.0
        %2070 = vmatprep.subr.mxu0 0.0
        %2071 = vmatpush1.msra.mxu0 0.0
        %2072 = vmatprep.subr.mxu0 0.0
        %2073 = vmatpush1.msra.mxu0 0.0
        %2074 = vmatprep.subr.mxu0 0.0
        %2075 = vmatpush1.msra.mxu0 0.0
        %2076 = vmatprep.subr.mxu0 0.0
        %2077 = vmatpush1.msra.mxu0 0.0
        %2078 = vmatprep.subr.mxu0 0.0
        %2079 = vmatpush1.msra.mxu0 0.0
        %2080 = vmatprep.subr.mxu0 0.0
        %2081 = vmatpush1.msra.mxu0 0.0
        %2082 = vmatprep.subr.mxu0 0.0
        %2083 = vmatpush1.msra.mxu0 0.0
        %2084 = vmatprep.mubr.f32.mxu0 0.0
        %2085 = vmatmul.mubr.f32.gmra.mrb[0].mxu0 %v2015
        %v2086 = vpop.f32.mrb[0].mxu0
        %v2087 = vadd.f32 0.0, %v2086
        %v2088 = vpop.f32.mrb[0].mxu0
        %2089 = vmatprep.mubr.f32.mxu0 0.0
        %2090 = vmatmul.mubr.f32.gmra.mrb[0].mxu0 %v2018
        %v2091 = vpop.f32.mrb[0].mxu0
        %v2092 = vadd.f32 0.0, %v2091
        %v2093 = vpop.f32.mrb[0].mxu0
        %2094 = vdwg.mxu0
        %2099 = vrot.lane.b32.xlu0 %v1340, 112
        %v2100 = vpop.permute.xlu0 %2099
        %2101 = vrot.lane.b32.xlu0 %v1345, 112
        %v2102 = vpop.permute.xlu0 %2101
        %2103 = vrot.lane.b32.xlu0 %v1350, 112
        %v2104 = vpop.permute.xlu0 %2103
        %2105 = vrot.lane.b32.xlu0 %v1355, 112
        %v2106 = vpop.permute.xlu0 %2105
        %v2112 = vsel %vm1549, %v1996, 0
        %v2115 = vsel %vm1549, %v1997, 0
        %2117 = vmatprep.subr.mxu0 0.0
        %2118 = vmatpush1.msra.mxu0 %v2100
        %2119 = vmatprep.subr.mxu0 0.0
        %2120 = vmatpush1.msra.mxu0 %v2102
        %2121 = vmatprep.subr.mxu0 0.0
        %2122 = vmatpush1.msra.mxu0 %v2104
        %2123 = vmatprep.subr.mxu0 0.0
        %2124 = vmatpush1.msra.mxu0 %v2106
        %2125 = vmatprep.subr.mxu0 0.0
        %2126 = vmatpush1.msra.mxu0 0.0
        %2127 = vmatprep.subr.mxu0 0.0
        %2128 = vmatpush1.msra.mxu0 0.0
        %2129 = vmatprep.subr.mxu0 0.0
        %2130 = vmatpush1.msra.mxu0 0.0
        %2131 = vmatprep.subr.mxu0 0.0
        %2132 = vmatpush1.msra.mxu0 0.0
        %2133 = vmatprep.subr.mxu0 0.0
        %2134 = vmatpush1.msra.mxu0 0.0
        %2135 = vmatprep.subr.mxu0 0.0
        %2136 = vmatpush1.msra.mxu0 0.0
        %2137 = vmatprep.subr.mxu0 0.0
        %2138 = vmatpush1.msra.mxu0 0.0
        %2139 = vmatprep.subr.mxu0 0.0
        %2140 = vmatpush1.msra.mxu0 0.0
        %2141 = vmatprep.subr.mxu0 0.0
        %2142 = vmatpush1.msra.mxu0 0.0
        %2143 = vmatprep.subr.mxu0 0.0
        %2144 = vmatpush1.msra.mxu0 0.0
        %2145 = vmatprep.subr.mxu0 0.0
        %2146 = vmatpush1.msra.mxu0 0.0
        %2147 = vmatprep.subr.mxu0 0.0
        %2148 = vmatpush1.msra.mxu0 0.0
        %2149 = vmatprep.subr.mxu0 0.0
        %2150 = vmatpush1.msra.mxu0 0.0
        %2151 = vmatprep.subr.mxu0 0.0
        %2152 = vmatpush1.msra.mxu0 0.0
        %2153 = vmatprep.subr.mxu0 0.0
        %2154 = vmatpush1.msra.mxu0 0.0
        %2155 = vmatprep.subr.mxu0 0.0
        %2156 = vmatpush1.msra.mxu0 0.0
        %2157 = vmatprep.subr.mxu0 0.0
        %2158 = vmatpush1.msra.mxu0 0.0
        %2159 = vmatprep.subr.mxu0 0.0
        %2160 = vmatpush1.msra.mxu0 0.0
        %2161 = vmatprep.subr.mxu0 0.0
        %2162 = vmatpush1.msra.mxu0 0.0
        %2163 = vmatprep.subr.mxu0 0.0
        %2164 = vmatpush1.msra.mxu0 0.0
        %2165 = vmatprep.subr.mxu0 0.0
        %2166 = vmatpush1.msra.mxu0 0.0
        %2167 = vmatprep.subr.mxu0 0.0
        %2168 = vmatpush1.msra.mxu0 0.0
        %2169 = vmatprep.subr.mxu0 0.0
        %2170 = vmatpush1.msra.mxu0 0.0
        %2171 = vmatprep.subr.mxu0 0.0
        %2172 = vmatpush1.msra.mxu0 0.0
        %2173 = vmatprep.subr.mxu0 0.0
        %2174 = vmatpush1.msra.mxu0 0.0
        %2175 = vmatprep.subr.mxu0 0.0
        %2176 = vmatpush1.msra.mxu0 0.0
        %2177 = vmatprep.subr.mxu0 0.0
        %2178 = vmatpush1.msra.mxu0 0.0
        %2179 = vmatprep.subr.mxu0 0.0
        %2180 = vmatpush1.msra.mxu0 0.0
        %2181 = vmatprep.mubr.f32.mxu0 0.0
        %2182 = vmatmul.mubr.f32.gmra.mrb[0].mxu0 %v2112
        %v2183 = vpop.f32.mrb[0].mxu0
        %v2184 = vadd.f32 0.0, %v2183
        %v2185 = vpop.f32.mrb[0].mxu0
        %2186 = vmatprep.mubr.f32.mxu0 0.0
        %2187 = vmatmul.mubr.f32.gmra.mrb[0].mxu0 %v2115
        %v2188 = vpop.f32.mrb[0].mxu0
        %v2189 = vadd.f32 0.0, %v2188
        %v2190 = vpop.f32.mrb[0].mxu0
        %2191 = vdwg.mxu0
        %2192 = vrot.lane.b32.xlu0 %v1358, 96
        %v2193 = vpop.permute.xlu0 %2192
        %2194 = vrot.lane.b32.xlu0 %v1359, 96
        %v2195 = vpop.permute.xlu0 %2194
        %2196 = vrot.lane.b32.xlu0 %v1192, 96
        %v2197 = vpop.permute.xlu0 %2196
        %2198 = vrot.lane.b32.xlu0 %v1197, 96
        %v2199 = vpop.permute.xlu0 %2198
        %2200 = vrot.lane.b32.xlu0 %v1202, 96
        %v2201 = vpop.permute.xlu0 %2200
        %2202 = vrot.lane.b32.xlu0 %v1207, 96
        %v2203 = vpop.permute.xlu0 %2202
        %v2204 = vsel %vm1362, %v2193, 0
        %v2206 = vsel %vm1362, %v2195, 0
        %v2208 = vsel %vm1362, %v2197, 0
        %v2210 = vsel %vm1362, %v2199, 0
        %v2212 = vsel %vm1362, %v2201, 0
        %v2214 = vsel %vm1362, %v2203, 0
        %2216 = vmatprep.subr.mxu0 0.0
        %2217 = vmatpush1.xpose.msra.mxu0 %v2208
        %2218 = vmatprep.subr.mxu0 0.0
        %2219 = vmatpush1.xpose.msra.mxu0 %v2210
        %2220 = vmatprep.subr.mxu0 0.0
        %2221 = vmatpush1.xpose.msra.mxu0 %v2212
        %2222 = vmatprep.subr.mxu0 0.0
        %2223 = vmatpush1.xpose.msra.mxu0 %v2214
        %2224 = vmatprep.subr.mxu0 0.0
        %2225 = vmatpush1.xpose.msra.mxu0 0.0
        %2226 = vmatprep.subr.mxu0 0.0
        %2227 = vmatpush1.xpose.msra.mxu0 0.0
        %2228 = vmatprep.subr.mxu0 0.0
        %2229 = vmatpush1.xpose.msra.mxu0 0.0
        %2230 = vmatprep.subr.mxu0 0.0
        %2231 = vmatpush1.xpose.msra.mxu0 0.0
        %2232 = vmatprep.subr.mxu0 0.0
        %2233 = vmatpush1.xpose.msra.mxu0 0.0
        %2234 = vmatprep.subr.mxu0 0.0
        %2235 = vmatpush1.xpose.msra.mxu0 0.0
        %2236 = vmatprep.subr.mxu0 0.0
        %2237 = vmatpush1.xpose.msra.mxu0 0.0
        %2238 = vmatprep.subr.mxu0 0.0
        %2239 = vmatpush1.xpose.msra.mxu0 0.0
        %2240 = vmatprep.subr.mxu0 0.0
        %2241 = vmatpush1.xpose.msra.mxu0 0.0
        %2242 = vmatprep.subr.mxu0 0.0
        %2243 = vmatpush1.xpose.msra.mxu0 0.0
        %2244 = vmatprep.subr.mxu0 0.0
        %2245 = vmatpush1.xpose.msra.mxu0 0.0
        %2246 = vmatprep.subr.mxu0 0.0
        %2247 = vmatpush1.xpose.msra.mxu0 0.0
        %2248 = vmatprep.subr.mxu0 0.0
        %2249 = vmatpush1.xpose.msra.mxu0 0.0
        %2250 = vmatprep.subr.mxu0 0.0
        %2251 = vmatpush1.xpose.msra.mxu0 0.0
        %2252 = vmatprep.subr.mxu0 0.0
        %2253 = vmatpush1.xpose.msra.mxu0 0.0
        %2254 = vmatprep.subr.mxu0 0.0
        %2255 = vmatpush1.xpose.msra.mxu0 0.0
        %2256 = vmatprep.subr.mxu0 0.0
        %2257 = vmatpush1.xpose.msra.mxu0 0.0
        %2258 = vmatprep.subr.mxu0 0.0
        %2259 = vmatpush1.xpose.msra.mxu0 0.0
        %2260 = vmatprep.subr.mxu0 0.0
        %2261 = vmatpush1.xpose.msra.mxu0 0.0
        %2262 = vmatprep.subr.mxu0 0.0
        %2263 = vmatpush1.xpose.msra.mxu0 0.0
        %2264 = vmatprep.subr.mxu0 0.0
        %2265 = vmatpush1.xpose.msra.mxu0 0.0
        %2266 = vmatprep.subr.mxu0 0.0
        %2267 = vmatpush1.xpose.msra.mxu0 0.0
        %2268 = vmatprep.subr.mxu0 0.0
        %2269 = vmatpush1.xpose.msra.mxu0 0.0
        %2270 = vmatprep.subr.mxu0 0.0
        %2271 = vmatpush1.xpose.msra.mxu0 0.0
        %2272 = vmatprep.subr.mxu0 0.0
        %2273 = vmatpush1.xpose.msra.mxu0 0.0
        %2274 = vmatprep.subr.mxu0 0.0
        %2275 = vmatpush1.xpose.msra.mxu0 0.0
        %2276 = vmatprep.subr.mxu0 0.0
        %2277 = vmatpush1.xpose.msra.mxu0 0.0
        %2278 = vmatprep.subr.mxu0 0.0
        %2279 = vmatpush1.xpose.msra.mxu0 0.0
        %2280 = vmatprep.mubr.f32.mxu0 0.0
        %2281 = vmatmul.mubr.f32.gmra.mrb[0].mxu0 %v2204
        %v2282 = vpop.f32.mrb[0].mxu0
        %v2283 = vadd.f32 0.0, %v2282
        %v2284 = vpop.f32.mrb[0].mxu0
        %2285 = vmatprep.mubr.f32.mxu0 0.0
        %2286 = vmatmul.mubr.f32.gmra.mrb[0].mxu0 %v2206
        %v2287 = vpop.f32.mrb[0].mxu0
        %v2288 = vadd.f32 0.0, %v2287
        %v2289 = vpop.f32.mrb[0].mxu0
        %2290 = vdwg.mxu0
        %2291 = vrot.lane.b32.xlu0 %v1360, 96
        %v2292 = vpop.permute.xlu0 %2291
        %2293 = vrot.lane.b32.xlu0 %v1361, 96
        %v2294 = vpop.permute.xlu0 %2293
        %2295 = vrot.lane.b32.xlu0 %v1212, 96
        %v2296 = vpop.permute.xlu0 %2295
        %2297 = vrot.lane.b32.xlu0 %v1217, 96
        %v2298 = vpop.permute.xlu0 %2297
        %2299 = vrot.lane.b32.xlu0 %v1222, 96
        %v2300 = vpop.permute.xlu0 %2299
        %2301 = vrot.lane.b32.xlu0 %v1227, 96
        %v2302 = vpop.permute.xlu0 %2301
        %v2303 = vsel %vm1362, %v2292, 0
        %v2305 = vsel %vm1362, %v2294, 0
        %v2307 = vsel %vm1362, %v2296, 0
        %v2309 = vsel %vm1362, %v2298, 0
        %v2311 = vsel %vm1362, %v2300, 0
        %v2313 = vsel %vm1362, %v2302, 0
        %2315 = vmatprep.subr.mxu0 0.0
        %2316 = vmatpush1.xpose.msra.mxu0 %v2307
        %2317 = vmatprep.subr.mxu0 0.0
        %2318 = vmatpush1.xpose.msra.mxu0 %v2309
        %2319 = vmatprep.subr.mxu0 0.0
        %2320 = vmatpush1.xpose.msra.mxu0 %v2311
        %2321 = vmatprep.subr.mxu0 0.0
        %2322 = vmatpush1.xpose.msra.mxu0 %v2313
        %2323 = vmatprep.subr.mxu0 0.0
        %2324 = vmatpush1.xpose.msra.mxu0 0.0
        %2325 = vmatprep.subr.mxu0 0.0
        %2326 = vmatpush1.xpose.msra.mxu0 0.0
        %2327 = vmatprep.subr.mxu0 0.0
        %2328 = vmatpush1.xpose.msra.mxu0 0.0
        %2329 = vmatprep.subr.mxu0 0.0
        %2330 = vmatpush1.xpose.msra.mxu0 0.0
        %2331 = vmatprep.subr.mxu0 0.0
        %2332 = vmatpush1.xpose.msra.mxu0 0.0
        %2333 = vmatprep.subr.mxu0 0.0
        %2334 = vmatpush1.xpose.msra.mxu0 0.0
        %2335 = vmatprep.subr.mxu0 0.0
        %2336 = vmatpush1.xpose.msra.mxu0 0.0
        %2337 = vmatprep.subr.mxu0 0.0
        %2338 = vmatpush1.xpose.msra.mxu0 0.0
        %2339 = vmatprep.subr.mxu0 0.0
        %2340 = vmatpush1.xpose.msra.mxu0 0.0
        %2341 = vmatprep.subr.mxu0 0.0
        %2342 = vmatpush1.xpose.msra.mxu0 0.0
        %2343 = vmatprep.subr.mxu0 0.0
        %2344 = vmatpush1.xpose.msra.mxu0 0.0
        %2345 = vmatprep.subr.mxu0 0.0
        %2346 = vmatpush1.xpose.msra.mxu0 0.0
        %2347 = vmatprep.subr.mxu0 0.0
        %2348 = vmatpush1.xpose.msra.mxu0 0.0
        %2349 = vmatprep.subr.mxu0 0.0
        %2350 = vmatpush1.xpose.msra.mxu0 0.0
        %2351 = vmatprep.subr.mxu0 0.0
        %2352 = vmatpush1.xpose.msra.mxu0 0.0
        %2353 = vmatprep.subr.mxu0 0.0
        %2354 = vmatpush1.xpose.msra.mxu0 0.0
        %2355 = vmatprep.subr.mxu0 0.0
        %2356 = vmatpush1.xpose.msra.mxu0 0.0
        %2357 = vmatprep.subr.mxu0 0.0
        %2358 = vmatpush1.xpose.msra.mxu0 0.0
        %2359 = vmatprep.subr.mxu0 0.0
        %2360 = vmatpush1.xpose.msra.mxu0 0.0
        %2361 = vmatprep.subr.mxu0 0.0
        %2362 = vmatpush1.xpose.msra.mxu0 0.0
        %2363 = vmatprep.subr.mxu0 0.0
        %2364 = vmatpush1.xpose.msra.mxu0 0.0
        %2365 = vmatprep.subr.mxu0 0.0
        %2366 = vmatpush1.xpose.msra.mxu0 0.0
        %2367 = vmatprep.subr.mxu0 0.0
        %2368 = vmatpush1.xpose.msra.mxu0 0.0
        %2369 = vmatprep.subr.mxu0 0.0
        %2370 = vmatpush1.xpose.msra.mxu0 0.0
        %2371 = vmatprep.subr.mxu0 0.0
        %2372 = vmatpush1.xpose.msra.mxu0 0.0
        %2373 = vmatprep.subr.mxu0 0.0
        %2374 = vmatpush1.xpose.msra.mxu0 0.0
        %2375 = vmatprep.subr.mxu0 0.0
        %2376 = vmatpush1.xpose.msra.mxu0 0.0
        %2377 = vmatprep.subr.mxu0 0.0
        %2378 = vmatpush1.xpose.msra.mxu0 0.0
        %2379 = vmatprep.mubr.f32.mxu0 0.0
        %2380 = vmatmul.mubr.f32.gmra.mrb[0].mxu0 %v2303
        %v2381 = vpop.f32.mrb[0].mxu0
        %v2382 = vadd.f32 0.0, %v2381
        %v2383 = vpop.f32.mrb[0].mxu0
        %2384 = vmatprep.mubr.f32.mxu0 0.0
        %2385 = vmatmul.mubr.f32.gmra.mrb[0].mxu0 %v2305
        %v2386 = vpop.f32.mrb[0].mxu0
        %v2387 = vadd.f32 0.0, %v2386
        %v2388 = vpop.f32.mrb[0].mxu0
        %2389 = vdwg.mxu0
        %v2390 = vsel %vm1549, %v2283, -inf
        %2391 = vmax.xlane.f32.xlu0 %v2390
        %v2392 = vpop.xlane.xlu0 %2391
        %v2393 = vsel %vm1549, %v2288, -inf
        %2394 = vmax.xlane.f32.xlu0 %v2393
        %v2395 = vpop.xlane.xlu0 %2394
        %v2396 = vsel %vm1549, %v2382, -inf
        %2397 = vmax.xlane.f32.xlu0 %v2396
        %v2398 = vpop.xlane.xlu0 %2397
        %v2399 = vsel %vm1549, %v2387, -inf
        %2400 = vmax.xlane.f32.xlu0 %v2399
        %v2401 = vpop.xlane.xlu0 %2400
        %v2402 = vsub.f32 %v2283, %v2392
        %v2403 = vsub.f32 %v2288, %v2395
        %v2404 = vsub.f32 %v2382, %v2398
        %v2405 = vsub.f32 %v2387, %v2401
        %v2406 = vmul.f32 %v2402, 1.442695
        %v2407 = vpow.pop %v2406
        %v2408 = vmul.f32 %v2403, 1.442695
        %v2409 = vpow.pop %v2408
        %v2410 = vmul.f32 %v2404, 1.442695
        %v2411 = vpow.pop %v2410
        %v2412 = vmul.f32 %v2405, 1.442695
        %v2413 = vpow.pop %v2412
        %v2414 = vsel %vm1549, %v2407, 0.0
        %2415 = vadd.xlane.f32.xlu0 %v2414
        %v2416 = vpop.xlane.xlu0 %2415
        %v2417 = vsel %vm1549, %v2409, 0.0
        %2418 = vadd.xlane.f32.xlu0 %v2417
        %v2419 = vpop.xlane.xlu0 %2418
        %v2420 = vsel %vm1549, %v2411, 0.0
        %2421 = vadd.xlane.f32.xlu0 %v2420
        %v2422 = vpop.xlane.xlu0 %2421
        %v2423 = vsel %vm1549, %v2413, 0.0
        %2424 = vadd.xlane.f32.xlu0 %v2423
        %v2425 = vpop.xlane.xlu0 %2424
        %v2426 = vrcp.pop %v2416
        %v2427 = vrcp.pop %v2419
        %v2428 = vrcp.pop %v2422
        %v2429 = vrcp.pop %v2425
        %v2430 = vmul.f32 %v2407, %v2426
        %v2431 = vmul.f32 %v2409, %v2427
        %v2432 = vmul.f32 %v2411, %v2428
        %v2433 = vmul.f32 %v2413, %v2429
        %2434 = vrot.lane.b32.xlu0 %v1320, 96
        %v2435 = vpop.permute.xlu0 %2434
        %2436 = vrot.lane.b32.xlu0 %v1325, 96
        %v2437 = vpop.permute.xlu0 %2436
        %2438 = vrot.lane.b32.xlu0 %v1330, 96
        %v2439 = vpop.permute.xlu0 %2438
        %2440 = vrot.lane.b32.xlu0 %v1335, 96
        %v2441 = vpop.permute.xlu0 %2440
        %v2447 = vsel %vm1549, %v2430, 0
        %v2450 = vsel %vm1549, %v2431, 0
        %2452 = vmatprep.subr.mxu0 0.0
        %2453 = vmatpush1.msra.mxu0 %v2435
        %2454 = vmatprep.subr.mxu0 0.0
        %2455 = vmatpush1.msra.mxu0 %v2437
        %2456 = vmatprep.subr.mxu0 0.0
        %2457 = vmatpush1.msra.mxu0 %v2439
        %2458 = vmatprep.subr.mxu0 0.0
        %2459 = vmatpush1.msra.mxu0 %v2441
        %2460 = vmatprep.subr.mxu0 0.0
        %2461 = vmatpush1.msra.mxu0 0.0
        %2462 = vmatprep.subr.mxu0 0.0
        %2463 = vmatpush1.msra.mxu0 0.0
        %2464 = vmatprep.subr.mxu0 0.0
        %2465 = vmatpush1.msra.mxu0 0.0
        %2466 = vmatprep.subr.mxu0 0.0
        %2467 = vmatpush1.msra.mxu0 0.0
        %2468 = vmatprep.subr.mxu0 0.0
        %2469 = vmatpush1.msra.mxu0 0.0
        %2470 = vmatprep.subr.mxu0 0.0
        %2471 = vmatpush1.msra.mxu0 0.0
        %2472 = vmatprep.subr.mxu0 0.0
        %2473 = vmatpush1.msra.mxu0 0.0
        %2474 = vmatprep.subr.mxu0 0.0
        %2475 = vmatpush1.msra.mxu0 0.0
        %2476 = vmatprep.subr.mxu0 0.0
        %2477 = vmatpush1.msra.mxu0 0.0
        %2478 = vmatprep.subr.mxu0 0.0
        %2479 = vmatpush1.msra.mxu0 0.0
        %2480 = vmatprep.subr.mxu0 0.0
        %2481 = vmatpush1.msra.mxu0 0.0
        %2482 = vmatprep.subr.mxu0 0.0
        %2483 = vmatpush1.msra.mxu0 0.0
        %2484 = vmatprep.subr.mxu0 0.0
        %2485 = vmatpush1.msra.mxu0 0.0
        %2486 = vmatprep.subr.mxu0 0.0
        %2487 = vmatpush1.msra.mxu0 0.0
        %2488 = vmatprep.subr.mxu0 0.0
        %2489 = vmatpush1.msra.mxu0 0.0
        %2490 = vmatprep.subr.mxu0 0.0
        %2491 = vmatpush1.msra.mxu0 0.0
        %2492 = vmatprep.subr.mxu0 0.0
        %2493 = vmatpush1.msra.mxu0 0.0
        %2494 = vmatprep.subr.mxu0 0.0
        %2495 = vmatpush1.msra.mxu0 0.0
        %2496 = vmatprep.subr.mxu0 0.0
        %2497 = vmatpush1.msra.mxu0 0.0
        %2498 = vmatprep.subr.mxu0 0.0
        %2499 = vmatpush1.msra.mxu0 0.0
        %2500 = vmatprep.subr.mxu0 0.0
        %2501 = vmatpush1.msra.mxu0 0.0
        %2502 = vmatprep.subr.mxu0 0.0
        %2503 = vmatpush1.msra.mxu0 0.0
        %2504 = vmatprep.subr.mxu0 0.0
        %2505 = vmatpush1.msra.mxu0 0.0
        %2506 = vmatprep.subr.mxu0 0.0
        %2507 = vmatpush1.msra.mxu0 0.0
        %2508 = vmatprep.subr.mxu0 0.0
        %2509 = vmatpush1.msra.mxu0 0.0
        %2510 = vmatprep.subr.mxu0 0.0
        %2511 = vmatpush1.msra.mxu0 0.0
        %2512 = vmatprep.subr.mxu0 0.0
        %2513 = vmatpush1.msra.mxu0 0.0
        %2514 = vmatprep.subr.mxu0 0.0
        %2515 = vmatpush1.msra.mxu0 0.0
        %2516 = vmatprep.mubr.f32.mxu0 0.0
        %2517 = vmatmul.mubr.f32.gmra.mrb[0].mxu0 %v2447
        %v2518 = vpop.f32.mrb[0].mxu0
        %v2519 = vadd.f32 0.0, %v2518
        %v2520 = vpop.f32.mrb[0].mxu0
        %2521 = vmatprep.mubr.f32.mxu0 0.0
        %2522 = vmatmul.mubr.f32.gmra.mrb[0].mxu0 %v2450
        %v2523 = vpop.f32.mrb[0].mxu0
        %v2524 = vadd.f32 0.0, %v2523
        %v2525 = vpop.f32.mrb[0].mxu0
        %2526 = vdwg.mxu0
        %2527 = vrot.lane.b32.xlu0 %v1340, 96
        %v2528 = vpop.permute.xlu0 %2527
        %2529 = vrot.lane.b32.xlu0 %v1345, 96
        %v2530 = vpop.permute.xlu0 %2529
        %2531 = vrot.lane.b32.xlu0 %v1350, 96
        %v2532 = vpop.permute.xlu0 %2531
        %2533 = vrot.lane.b32.xlu0 %v1355, 96
        %v2534 = vpop.permute.xlu0 %2533
        %v2540 = vsel %vm1549, %v2432, 0
        %v2543 = vsel %vm1549, %v2433, 0
        %2545 = vmatprep.subr.mxu0 0.0
        %2546 = vmatpush1.msra.mxu0 %v2528
        %2547 = vmatprep.subr.mxu0 0.0
        %2548 = vmatpush1.msra.mxu0 %v2530
        %2549 = vmatprep.subr.mxu0 0.0
        %2550 = vmatpush1.msra.mxu0 %v2532
        %2551 = vmatprep.subr.mxu0 0.0
        %2552 = vmatpush1.msra.mxu0 %v2534
        %2553 = vmatprep.subr.mxu0 0.0
        %2554 = vmatpush1.msra.mxu0 0.0
        %2555 = vmatprep.subr.mxu0 0.0
        %2556 = vmatpush1.msra.mxu0 0.0
        %2557 = vmatprep.subr.mxu0 0.0
        %2558 = vmatpush1.msra.mxu0 0.0
        %2559 = vmatprep.subr.mxu0 0.0
        %2560 = vmatpush1.msra.mxu0 0.0
        %2561 = vmatprep.subr.mxu0 0.0
        %2562 = vmatpush1.msra.mxu0 0.0
        %2563 = vmatprep.subr.mxu0 0.0
        %2564 = vmatpush1.msra.mxu0 0.0
        %2565 = vmatprep.subr.mxu0 0.0
        %2566 = vmatpush1.msra.mxu0 0.0
        %2567 = vmatprep.subr.mxu0 0.0
        %2568 = vmatpush1.msra.mxu0 0.0
        %2569 = vmatprep.subr.mxu0 0.0
        %2570 = vmatpush1.msra.mxu0 0.0
        %2571 = vmatprep.subr.mxu0 0.0
        %2572 = vmatpush1.msra.mxu0 0.0
        %2573 = vmatprep.subr.mxu0 0.0
        %2574 = vmatpush1.msra.mxu0 0.0
        %2575 = vmatprep.subr.mxu0 0.0
        %2576 = vmatpush1.msra.mxu0 0.0
        %2577 = vmatprep.subr.mxu0 0.0
        %2578 = vmatpush1.msra.mxu0 0.0
        %2579 = vmatprep.subr.mxu0 0.0
        %2580 = vmatpush1.msra.mxu0 0.0
        %2581 = vmatprep.subr.mxu0 0.0
        %2582 = vmatpush1.msra.mxu0 0.0
        %2583 = vmatprep.subr.mxu0 0.0
        %2584 = vmatpush1.msra.mxu0 0.0
        %2585 = vmatprep.subr.mxu0 0.0
        %2586 = vmatpush1.msra.mxu0 0.0
        %2587 = vmatprep.subr.mxu0 0.0
        %2588 = vmatpush1.msra.mxu0 0.0
        %2589 = vmatprep.subr.mxu0 0.0
        %2590 = vmatpush1.msra.mxu0 0.0
        %2591 = vmatprep.subr.mxu0 0.0
        %2592 = vmatpush1.msra.mxu0 0.0
        %2593 = vmatprep.subr.mxu0 0.0
        %2594 = vmatpush1.msra.mxu0 0.0
        %2595 = vmatprep.subr.mxu0 0.0
        %2596 = vmatpush1.msra.mxu0 0.0
        %2597 = vmatprep.subr.mxu0 0.0
        %2598 = vmatpush1.msra.mxu0 0.0
        %2599 = vmatprep.subr.mxu0 0.0
        %2600 = vmatpush1.msra.mxu0 0.0
        %2601 = vmatprep.subr.mxu0 0.0
        %2602 = vmatpush1.msra.mxu0 0.0
        %2603 = vmatprep.subr.mxu0 0.0
        %2604 = vmatpush1.msra.mxu0 0.0
        %2605 = vmatprep.subr.mxu0 0.0
        %2606 = vmatpush1.msra.mxu0 0.0
        %2607 = vmatprep.subr.mxu0 0.0
        %2608 = vmatpush1.msra.mxu0 0.0
        %2609 = vmatprep.mubr.f32.mxu0 0.0
        %2610 = vmatmul.mubr.f32.gmra.mrb[0].mxu0 %v2540
        %v2611 = vpop.f32.mrb[0].mxu0
        %v2612 = vadd.f32 0.0, %v2611
        %v2613 = vpop.f32.mrb[0].mxu0
        %2614 = vmatprep.mubr.f32.mxu0 0.0
        %2615 = vmatmul.mubr.f32.gmra.mrb[0].mxu0 %v2543
        %v2616 = vpop.f32.mrb[0].mxu0
        %v2617 = vadd.f32 0.0, %v2616
        %v2618 = vpop.f32.mrb[0].mxu0
        %2619 = vdwg.mxu0
        %2620 = vrot.lane.b32.xlu0 %v1358, 80
        %v2621 = vpop.permute.xlu0 %2620
        %2622 = vrot.lane.b32.xlu0 %v1359, 80
        %v2623 = vpop.permute.xlu0 %2622
        %2624 = vrot.lane.b32.xlu0 %v1192, 80
        %v2625 = vpop.permute.xlu0 %2624
        %2626 = vrot.lane.b32.xlu0 %v1197, 80
        %v2627 = vpop.permute.xlu0 %2626
        %2628 = vrot.lane.b32.xlu0 %v1202, 80
        %v2629 = vpop.permute.xlu0 %2628
        %2630 = vrot.lane.b32.xlu0 %v1207, 80
        %v2631 = vpop.permute.xlu0 %2630
        %v2632 = vsel %vm1362, %v2621, 0
        %v2634 = vsel %vm1362, %v2623, 0
        %v2636 = vsel %vm1362, %v2625, 0
        %v2638 = vsel %vm1362, %v2627, 0
        %v2640 = vsel %vm1362, %v2629, 0
        %v2642 = vsel %vm1362, %v2631, 0
        %2644 = vmatprep.subr.mxu0 0.0
        %2645 = vmatpush1.xpose.msra.mxu0 %v2636
        %2646 = vmatprep.subr.mxu0 0.0
        %2647 = vmatpush1.xpose.msra.mxu0 %v2638
        %2648 = vmatprep.subr.mxu0 0.0
        %2649 = vmatpush1.xpose.msra.mxu0 %v2640
        %2650 = vmatprep.subr.mxu0 0.0
        %2651 = vmatpush1.xpose.msra.mxu0 %v2642
        %2652 = vmatprep.subr.mxu0 0.0
        %2653 = vmatpush1.xpose.msra.mxu0 0.0
        %2654 = vmatprep.subr.mxu0 0.0
        %2655 = vmatpush1.xpose.msra.mxu0 0.0
        %2656 = vmatprep.subr.mxu0 0.0
        %2657 = vmatpush1.xpose.msra.mxu0 0.0
        %2658 = vmatprep.subr.mxu0 0.0
        %2659 = vmatpush1.xpose.msra.mxu0 0.0
        %2660 = vmatprep.subr.mxu0 0.0
        %2661 = vmatpush1.xpose.msra.mxu0 0.0
        %2662 = vmatprep.subr.mxu0 0.0
        %2663 = vmatpush1.xpose.msra.mxu0 0.0
        %2664 = vmatprep.subr.mxu0 0.0
        %2665 = vmatpush1.xpose.msra.mxu0 0.0
        %2666 = vmatprep.subr.mxu0 0.0
        %2667 = vmatpush1.xpose.msra.mxu0 0.0
        %2668 = vmatprep.subr.mxu0 0.0
        %2669 = vmatpush1.xpose.msra.mxu0 0.0
        %2670 = vmatprep.subr.mxu0 0.0
        %2671 = vmatpush1.xpose.msra.mxu0 0.0
        %2672 = vmatprep.subr.mxu0 0.0
        %2673 = vmatpush1.xpose.msra.mxu0 0.0
        %2674 = vmatprep.subr.mxu0 0.0
        %2675 = vmatpush1.xpose.msra.mxu0 0.0
        %2676 = vmatprep.subr.mxu0 0.0
        %2677 = vmatpush1.xpose.msra.mxu0 0.0
        %2678 = vmatprep.subr.mxu0 0.0
        %2679 = vmatpush1.xpose.msra.mxu0 0.0
        %2680 = vmatprep.subr.mxu0 0.0
        %2681 = vmatpush1.xpose.msra.mxu0 0.0
        %2682 = vmatprep.subr.mxu0 0.0
        %2683 = vmatpush1.xpose.msra.mxu0 0.0
        %2684 = vmatprep.subr.mxu0 0.0
        %2685 = vmatpush1.xpose.msra.mxu0 0.0
        %2686 = vmatprep.subr.mxu0 0.0
        %2687 = vmatpush1.xpose.msra.mxu0 0.0
        %2688 = vmatprep.subr.mxu0 0.0
        %2689 = vmatpush1.xpose.msra.mxu0 0.0
        %2690 = vmatprep.subr.mxu0 0.0
        %2691 = vmatpush1.xpose.msra.mxu0 0.0
        %2692 = vmatprep.subr.mxu0 0.0
        %2693 = vmatpush1.xpose.msra.mxu0 0.0
        %2694 = vmatprep.subr.mxu0 0.0
        %2695 = vmatpush1.xpose.msra.mxu0 0.0
        %2696 = vmatprep.subr.mxu0 0.0
        %2697 = vmatpush1.xpose.msra.mxu0 0.0
        %2698 = vmatprep.subr.mxu0 0.0
        %2699 = vmatpush1.xpose.msra.mxu0 0.0
        %2700 = vmatprep.subr.mxu0 0.0
        %2701 = vmatpush1.xpose.msra.mxu0 0.0
        %2702 = vmatprep.subr.mxu0 0.0
        %2703 = vmatpush1.xpose.msra.mxu0 0.0
        %2704 = vmatprep.subr.mxu0 0.0
        %2705 = vmatpush1.xpose.msra.mxu0 0.0
        %2706 = vmatprep.subr.mxu0 0.0
        %2707 = vmatpush1.xpose.msra.mxu0 0.0
        %2708 = vmatprep.mubr.f32.mxu0 0.0
        %2709 = vmatmul.mubr.f32.gmra.mrb[0].mxu0 %v2632
        %v2710 = vpop.f32.mrb[0].mxu0
        %v2711 = vadd.f32 0.0, %v2710
        %v2712 = vpop.f32.mrb[0].mxu0
        %2713 = vmatprep.mubr.f32.mxu0 0.0
        %2714 = vmatmul.mubr.f32.gmra.mrb[0].mxu0 %v2634
        %v2715 = vpop.f32.mrb[0].mxu0
        %v2716 = vadd.f32 0.0, %v2715
        %v2717 = vpop.f32.mrb[0].mxu0
        %2718 = vdwg.mxu0
        %2719 = vrot.lane.b32.xlu0 %v1360, 80
        %v2720 = vpop.permute.xlu0 %2719
        %2721 = vrot.lane.b32.xlu0 %v1361, 80
        %v2722 = vpop.permute.xlu0 %2721
        %2723 = vrot.lane.b32.xlu0 %v1212, 80
        %v2724 = vpop.permute.xlu0 %2723
        %2725 = vrot.lane.b32.xlu0 %v1217, 80
        %v2726 = vpop.permute.xlu0 %2725
        %2727 = vrot.lane.b32.xlu0 %v1222, 80
        %v2728 = vpop.permute.xlu0 %2727
        %2729 = vrot.lane.b32.xlu0 %v1227, 80
        %v2730 = vpop.permute.xlu0 %2729
        %v2731 = vsel %vm1362, %v2720, 0
        %v2733 = vsel %vm1362, %v2722, 0
        %v2735 = vsel %vm1362, %v2724, 0
        %v2737 = vsel %vm1362, %v2726, 0
        %v2739 = vsel %vm1362, %v2728, 0
        %v2741 = vsel %vm1362, %v2730, 0
        %2743 = vmatprep.subr.mxu0 0.0
        %2744 = vmatpush1.xpose.msra.mxu0 %v2735
        %2745 = vmatprep.subr.mxu0 0.0
        %2746 = vmatpush1.xpose.msra.mxu0 %v2737
        %2747 = vmatprep.subr.mxu0 0.0
        %2748 = vmatpush1.xpose.msra.mxu0 %v2739
        %2749 = vmatprep.subr.mxu0 0.0
        %2750 = vmatpush1.xpose.msra.mxu0 %v2741
        %2751 = vmatprep.subr.mxu0 0.0
        %2752 = vmatpush1.xpose.msra.mxu0 0.0
        %2753 = vmatprep.subr.mxu0 0.0
        %2754 = vmatpush1.xpose.msra.mxu0 0.0
        %2755 = vmatprep.subr.mxu0 0.0
        %2756 = vmatpush1.xpose.msra.mxu0 0.0
        %2757 = vmatprep.subr.mxu0 0.0
        %2758 = vmatpush1.xpose.msra.mxu0 0.0
        %2759 = vmatprep.subr.mxu0 0.0
        %2760 = vmatpush1.xpose.msra.mxu0 0.0
        %2761 = vmatprep.subr.mxu0 0.0
        %2762 = vmatpush1.xpose.msra.mxu0 0.0
        %2763 = vmatprep.subr.mxu0 0.0
        %2764 = vmatpush1.xpose.msra.mxu0 0.0
        %2765 = vmatprep.subr.mxu0 0.0
        %2766 = vmatpush1.xpose.msra.mxu0 0.0
        %2767 = vmatprep.subr.mxu0 0.0
        %2768 = vmatpush1.xpose.msra.mxu0 0.0
        %2769 = vmatprep.subr.mxu0 0.0
        %2770 = vmatpush1.xpose.msra.mxu0 0.0
        %2771 = vmatprep.subr.mxu0 0.0
        %2772 = vmatpush1.xpose.msra.mxu0 0.0
        %2773 = vmatprep.subr.mxu0 0.0
        %2774 = vmatpush1.xpose.msra.mxu0 0.0
        %2775 = vmatprep.subr.mxu0 0.0
        %2776 = vmatpush1.xpose.msra.mxu0 0.0
        %2777 = vmatprep.subr.mxu0 0.0
        %2778 = vmatpush1.xpose.msra.mxu0 0.0
        %2779 = vmatprep.subr.mxu0 0.0
        %2780 = vmatpush1.xpose.msra.mxu0 0.0
        %2781 = vmatprep.subr.mxu0 0.0
        %2782 = vmatpush1.xpose.msra.mxu0 0.0
        %2783 = vmatprep.subr.mxu0 0.0
        %2784 = vmatpush1.xpose.msra.mxu0 0.0
        %2785 = vmatprep.subr.mxu0 0.0
        %2786 = vmatpush1.xpose.msra.mxu0 0.0
        %2787 = vmatprep.subr.mxu0 0.0
        %2788 = vmatpush1.xpose.msra.mxu0 0.0
        %2789 = vmatprep.subr.mxu0 0.0
        %2790 = vmatpush1.xpose.msra.mxu0 0.0
        %2791 = vmatprep.subr.mxu0 0.0
        %2792 = vmatpush1.xpose.msra.mxu0 0.0
        %2793 = vmatprep.subr.mxu0 0.0
        %2794 = vmatpush1.xpose.msra.mxu0 0.0
        %2795 = vmatprep.subr.mxu0 0.0
        %2796 = vmatpush1.xpose.msra.mxu0 0.0
        %2797 = vmatprep.subr.mxu0 0.0
        %2798 = vmatpush1.xpose.msra.mxu0 0.0
        %2799 = vmatprep.subr.mxu0 0.0
        %2800 = vmatpush1.xpose.msra.mxu0 0.0
        %2801 = vmatprep.subr.mxu0 0.0
        %2802 = vmatpush1.xpose.msra.mxu0 0.0
        %2803 = vmatprep.subr.mxu0 0.0
        %2804 = vmatpush1.xpose.msra.mxu0 0.0
        %2805 = vmatprep.subr.mxu0 0.0
        %2806 = vmatpush1.xpose.msra.mxu0 0.0
        %2807 = vmatprep.mubr.f32.mxu0 0.0
        %2808 = vmatmul.mubr.f32.gmra.mrb[0].mxu0 %v2731
        %v2809 = vpop.f32.mrb[0].mxu0
        %v2810 = vadd.f32 0.0, %v2809
        %v2811 = vpop.f32.mrb[0].mxu0
        %2812 = vmatprep.mubr.f32.mxu0 0.0
        %2813 = vmatmul.mubr.f32.gmra.mrb[0].mxu0 %v2733
        %v2814 = vpop.f32.mrb[0].mxu0
        %v2815 = vadd.f32 0.0, %v2814
        %v2816 = vpop.f32.mrb[0].mxu0
        %2817 = vdwg.mxu0
        %v2818 = vsel %vm1549, %v2711, -inf
        %2819 = vmax.xlane.f32.xlu0 %v2818
        %v2820 = vpop.xlane.xlu0 %2819
        %v2821 = vsel %vm1549, %v2716, -inf
        %2822 = vmax.xlane.f32.xlu0 %v2821
        %v2823 = vpop.xlane.xlu0 %2822
        %v2824 = vsel %vm1549, %v2810, -inf
        %2825 = vmax.xlane.f32.xlu0 %v2824
        %v2826 = vpop.xlane.xlu0 %2825
        %v2827 = vsel %vm1549, %v2815, -inf
        %2828 = vmax.xlane.f32.xlu0 %v2827
        %v2829 = vpop.xlane.xlu0 %2828
        %v2830 = vsub.f32 %v2711, %v2820
        %v2831 = vsub.f32 %v2716, %v2823
        %v2832 = vsub.f32 %v2810, %v2826
        %v2833 = vsub.f32 %v2815, %v2829
        %v2834 = vmul.f32 %v2830, 1.442695
        %v2835 = vpow.pop %v2834
        %v2836 = vmul.f32 %v2831, 1.442695
        %v2837 = vpow.pop %v2836
        %v2838 = vmul.f32 %v2832, 1.442695
        %v2839 = vpow.pop %v2838
        %v2840 = vmul.f32 %v2833, 1.442695
        %v2841 = vpow.pop %v2840
        %v2842 = vsel %vm1549, %v2835, 0.0
        %2843 = vadd.xlane.f32.xlu0 %v2842
        %v2844 = vpop.xlane.xlu0 %2843
        %v2845 = vsel %vm1549, %v2837, 0.0
        %2846 = vadd.xlane.f32.xlu0 %v2845
        %v2847 = vpop.xlane.xlu0 %2846
        %v2848 = vsel %vm1549, %v2839, 0.0
        %2849 = vadd.xlane.f32.xlu0 %v2848
        %v2850 = vpop.xlane.xlu0 %2849
        %v2851 = vsel %vm1549, %v2841, 0.0
        %2852 = vadd.xlane.f32.xlu0 %v2851
        %v2853 = vpop.xlane.xlu0 %2852
        %v2854 = vrcp.pop %v2844
        %v2855 = vrcp.pop %v2847
        %v2856 = vrcp.pop %v2850
        %v2857 = vrcp.pop %v2853
        %v2858 = vmul.f32 %v2835, %v2854
        %v2859 = vmul.f32 %v2837, %v2855
        %v2860 = vmul.f32 %v2839, %v2856
        %v2861 = vmul.f32 %v2841, %v2857
        %2862 = vrot.lane.b32.xlu0 %v1320, 80
        %v2863 = vpop.permute.xlu0 %2862
        %2864 = vrot.lane.b32.xlu0 %v1325, 80
        %v2865 = vpop.permute.xlu0 %2864
        %2866 = vrot.lane.b32.xlu0 %v1330, 80
        %v2867 = vpop.permute.xlu0 %2866
        %2868 = vrot.lane.b32.xlu0 %v1335, 80
        %v2869 = vpop.permute.xlu0 %2868
        %v2875 = vsel %vm1549, %v2858, 0
        %v2878 = vsel %vm1549, %v2859, 0
        %2880 = vmatprep.subr.mxu0 0.0
        %2881 = vmatpush1.msra.mxu0 %v2863
        %2882 = vmatprep.subr.mxu0 0.0
        %2883 = vmatpush1.msra.mxu0 %v2865
        %2884 = vmatprep.subr.mxu0 0.0
        %2885 = vmatpush1.msra.mxu0 %v2867
        %2886 = vmatprep.subr.mxu0 0.0
        %2887 = vmatpush1.msra.mxu0 %v2869
        %2888 = vmatprep.subr.mxu0 0.0
        %2889 = vmatpush1.msra.mxu0 0.0
        %2890 = vmatprep.subr.mxu0 0.0
        %2891 = vmatpush1.msra.mxu0 0.0
        %2892 = vmatprep.subr.mxu0 0.0
        %2893 = vmatpush1.msra.mxu0 0.0
        %2894 = vmatprep.subr.mxu0 0.0
        %2895 = vmatpush1.msra.mxu0 0.0
        %2896 = vmatprep.subr.mxu0 0.0
        %2897 = vmatpush1.msra.mxu0 0.0
        %2898 = vmatprep.subr.mxu0 0.0
        %2899 = vmatpush1.msra.mxu0 0.0
        %2900 = vmatprep.subr.mxu0 0.0
        %2901 = vmatpush1.msra.mxu0 0.0
        %2902 = vmatprep.subr.mxu0 0.0
        %2903 = vmatpush1.msra.mxu0 0.0
        %2904 = vmatprep.subr.mxu0 0.0
        %2905 = vmatpush1.msra.mxu0 0.0
        %2906 = vmatprep.subr.mxu0 0.0
        %2907 = vmatpush1.msra.mxu0 0.0
        %2908 = vmatprep.subr.mxu0 0.0
        %2909 = vmatpush1.msra.mxu0 0.0
        %2910 = vmatprep.subr.mxu0 0.0
        %2911 = vmatpush1.msra.mxu0 0.0
        %2912 = vmatprep.subr.mxu0 0.0
        %2913 = vmatpush1.msra.mxu0 0.0
        %2914 = vmatprep.subr.mxu0 0.0
        %2915 = vmatpush1.msra.mxu0 0.0
        %2916 = vmatprep.subr.mxu0 0.0
        %2917 = vmatpush1.msra.mxu0 0.0
        %2918 = vmatprep.subr.mxu0 0.0
        %2919 = vmatpush1.msra.mxu0 0.0
        %2920 = vmatprep.subr.mxu0 0.0
        %2921 = vmatpush1.msra.mxu0 0.0
        %2922 = vmatprep.subr.mxu0 0.0
        %2923 = vmatpush1.msra.mxu0 0.0
        %2924 = vmatprep.subr.mxu0 0.0
        %2925 = vmatpush1.msra.mxu0 0.0
        %2926 = vmatprep.subr.mxu0 0.0
        %2927 = vmatpush1.msra.mxu0 0.0
        %2928 = vmatprep.subr.mxu0 0.0
        %2929 = vmatpush1.msra.mxu0 0.0
        %2930 = vmatprep.subr.mxu0 0.0
        %2931 = vmatpush1.msra.mxu0 0.0
        %2932 = vmatprep.subr.mxu0 0.0
        %2933 = vmatpush1.msra.mxu0 0.0
        %2934 = vmatprep.subr.mxu0 0.0
        %2935 = vmatpush1.msra.mxu0 0.0
        %2936 = vmatprep.subr.mxu0 0.0
        %2937 = vmatpush1.msra.mxu0 0.0
        %2938 = vmatprep.subr.mxu0 0.0
        %2939 = vmatpush1.msra.mxu0 0.0
        %2940 = vmatprep.subr.mxu0 0.0
        %2941 = vmatpush1.msra.mxu0 0.0
        %2942 = vmatprep.subr.mxu0 0.0
        %2943 = vmatpush1.msra.mxu0 0.0
        %2944 = vmatprep.mubr.f32.mxu0 0.0
        %2945 = vmatmul.mubr.f32.gmra.mrb[0].mxu0 %v2875
        %v2946 = vpop.f32.mrb[0].mxu0
        %v2947 = vadd.f32 0.0, %v2946
        %v2948 = vpop.f32.mrb[0].mxu0
        %2949 = vmatprep.mubr.f32.mxu0 0.0
        %2950 = vmatmul.mubr.f32.gmra.mrb[0].mxu0 %v2878
        %v2951 = vpop.f32.mrb[0].mxu0
        %v2952 = vadd.f32 0.0, %v2951
        %v2953 = vpop.f32.mrb[0].mxu0
        %2954 = vdwg.mxu0
        %2955 = vrot.lane.b32.xlu0 %v1340, 80
        %v2956 = vpop.permute.xlu0 %2955
        %2957 = vrot.lane.b32.xlu0 %v1345, 80
        %v2958 = vpop.permute.xlu0 %2957
        %2959 = vrot.lane.b32.xlu0 %v1350, 80
        %v2960 = vpop.permute.xlu0 %2959
        %2961 = vrot.lane.b32.xlu0 %v1355, 80
        %v2962 = vpop.permute.xlu0 %2961
        %v2968 = vsel %vm1549, %v2860, 0
        %v2971 = vsel %vm1549, %v2861, 0
        %2973 = vmatprep.subr.mxu0 0.0
        %2974 = vmatpush1.msra.mxu0 %v2956
        %2975 = vmatprep.subr.mxu0 0.0
        %2976 = vmatpush1.msra.mxu0 %v2958
        %2977 = vmatprep.subr.mxu0 0.0
        %2978 = vmatpush1.msra.mxu0 %v2960
        %2979 = vmatprep.subr.mxu0 0.0
        %2980 = vmatpush1.msra.mxu0 %v2962
        %2981 = vmatprep.subr.mxu0 0.0
        %2982 = vmatpush1.msra.mxu0 0.0
        %2983 = vmatprep.subr.mxu0 0.0
        %2984 = vmatpush1.msra.mxu0 0.0
        %2985 = vmatprep.subr.mxu0 0.0
        %2986 = vmatpush1.msra.mxu0 0.0
        %2987 = vmatprep.subr.mxu0 0.0
        %2988 = vmatpush1.msra.mxu0 0.0
        %2989 = vmatprep.subr.mxu0 0.0
        %2990 = vmatpush1.msra.mxu0 0.0
        %2991 = vmatprep.subr.mxu0 0.0
        %2992 = vmatpush1.msra.mxu0 0.0
        %2993 = vmatprep.subr.mxu0 0.0
        %2994 = vmatpush1.msra.mxu0 0.0
        %2995 = vmatprep.subr.mxu0 0.0
        %2996 = vmatpush1.msra.mxu0 0.0
        %2997 = vmatprep.subr.mxu0 0.0
        %2998 = vmatpush1.msra.mxu0 0.0
        %2999 = vmatprep.subr.mxu0 0.0
        %3000 = vmatpush1.msra.mxu0 0.0
        %3001 = vmatprep.subr.mxu0 0.0
        %3002 = vmatpush1.msra.mxu0 0.0
        %3003 = vmatprep.subr.mxu0 0.0
        %3004 = vmatpush1.msra.mxu0 0.0
        %3005 = vmatprep.subr.mxu0 0.0
        %3006 = vmatpush1.msra.mxu0 0.0
        %3007 = vmatprep.subr.mxu0 0.0
        %3008 = vmatpush1.msra.mxu0 0.0
        %3009 = vmatprep.subr.mxu0 0.0
        %3010 = vmatpush1.msra.mxu0 0.0
        %3011 = vmatprep.subr.mxu0 0.0
        %3012 = vmatpush1.msra.mxu0 0.0
        %3013 = vmatprep.subr.mxu0 0.0
        %3014 = vmatpush1.msra.mxu0 0.0
        %3015 = vmatprep.subr.mxu0 0.0
        %3016 = vmatpush1.msra.mxu0 0.0
        %3017 = vmatprep.subr.mxu0 0.0
        %3018 = vmatpush1.msra.mxu0 0.0
        %3019 = vmatprep.subr.mxu0 0.0
        %3020 = vmatpush1.msra.mxu0 0.0
        %3021 = vmatprep.subr.mxu0 0.0
        %3022 = vmatpush1.msra.mxu0 0.0
        %3023 = vmatprep.subr.mxu0 0.0
        %3024 = vmatpush1.msra.mxu0 0.0
        %3025 = vmatprep.subr.mxu0 0.0
        %3026 = vmatpush1.msra.mxu0 0.0
        %3027 = vmatprep.subr.mxu0 0.0
        %3028 = vmatpush1.msra.mxu0 0.0
        %3029 = vmatprep.subr.mxu0 0.0
        %3030 = vmatpush1.msra.mxu0 0.0
        %3031 = vmatprep.subr.mxu0 0.0
        %3032 = vmatpush1.msra.mxu0 0.0
        %3033 = vmatprep.subr.mxu0 0.0
        %3034 = vmatpush1.msra.mxu0 0.0
        %3035 = vmatprep.subr.mxu0 0.0
        %3036 = vmatpush1.msra.mxu0 0.0
        %3037 = vmatprep.mubr.f32.mxu0 0.0
        %3038 = vmatmul.mubr.f32.gmra.mrb[0].mxu0 %v2968
        %v3039 = vpop.f32.mrb[0].mxu0
        %v3040 = vadd.f32 0.0, %v3039
        %v3041 = vpop.f32.mrb[0].mxu0
        %3042 = vmatprep.mubr.f32.mxu0 0.0
        %3043 = vmatmul.mubr.f32.gmra.mrb[0].mxu0 %v2971
        %v3044 = vpop.f32.mrb[0].mxu0
        %v3045 = vadd.f32 0.0, %v3044
        %v3046 = vpop.f32.mrb[0].mxu0
        %3047 = vdwg.mxu0
        %3048 = vrot.lane.b32.xlu0 %v1358, 64
        %v3049 = vpop.permute.xlu0 %3048
        %3050 = vrot.lane.b32.xlu0 %v1359, 64
        %v3051 = vpop.permute.xlu0 %3050
        %3052 = vrot.lane.b32.xlu0 %v1192, 64
        %v3053 = vpop.permute.xlu0 %3052
        %3054 = vrot.lane.b32.xlu0 %v1197, 64
        %v3055 = vpop.permute.xlu0 %3054
        %3056 = vrot.lane.b32.xlu0 %v1202, 64
        %v3057 = vpop.permute.xlu0 %3056
        %3058 = vrot.lane.b32.xlu0 %v1207, 64
        %v3059 = vpop.permute.xlu0 %3058
        %v3060 = vsel %vm1362, %v3049, 0
        %v3062 = vsel %vm1362, %v3051, 0
        %v3064 = vsel %vm1362, %v3053, 0
        %v3066 = vsel %vm1362, %v3055, 0
        %v3068 = vsel %vm1362, %v3057, 0
        %v3070 = vsel %vm1362, %v3059, 0
        %3072 = vmatprep.subr.mxu0 0.0
        %3073 = vmatpush1.xpose.msra.mxu0 %v3064
        %3074 = vmatprep.subr.mxu0 0.0
        %3075 = vmatpush1.xpose.msra.mxu0 %v3066
        %3076 = vmatprep.subr.mxu0 0.0
        %3077 = vmatpush1.xpose.msra.mxu0 %v3068
        %3078 = vmatprep.subr.mxu0 0.0
        %3079 = vmatpush1.xpose.msra.mxu0 %v3070
        %3080 = vmatprep.subr.mxu0 0.0
        %3081 = vmatpush1.xpose.msra.mxu0 0.0
        %3082 = vmatprep.subr.mxu0 0.0
        %3083 = vmatpush1.xpose.msra.mxu0 0.0
        %3084 = vmatprep.subr.mxu0 0.0
        %3085 = vmatpush1.xpose.msra.mxu0 0.0
        %3086 = vmatprep.subr.mxu0 0.0
        %3087 = vmatpush1.xpose.msra.mxu0 0.0
        %3088 = vmatprep.subr.mxu0 0.0
        %3089 = vmatpush1.xpose.msra.mxu0 0.0
        %3090 = vmatprep.subr.mxu0 0.0
        %3091 = vmatpush1.xpose.msra.mxu0 0.0
        %3092 = vmatprep.subr.mxu0 0.0
        %3093 = vmatpush1.xpose.msra.mxu0 0.0
        %3094 = vmatprep.subr.mxu0 0.0
        %3095 = vmatpush1.xpose.msra.mxu0 0.0
        %3096 = vmatprep.subr.mxu0 0.0
        %3097 = vmatpush1.xpose.msra.mxu0 0.0
        %3098 = vmatprep.subr.mxu0 0.0
        %3099 = vmatpush1.xpose.msra.mxu0 0.0
        %3100 = vmatprep.subr.mxu0 0.0
        %3101 = vmatpush1.xpose.msra.mxu0 0.0
        %3102 = vmatprep.subr.mxu0 0.0
        %3103 = vmatpush1.xpose.msra.mxu0 0.0
        %3104 = vmatprep.subr.mxu0 0.0
        %3105 = vmatpush1.xpose.msra.mxu0 0.0
        %3106 = vmatprep.subr.mxu0 0.0
        %3107 = vmatpush1.xpose.msra.mxu0 0.0
        %3108 = vmatprep.subr.mxu0 0.0
        %3109 = vmatpush1.xpose.msra.mxu0 0.0
        %3110 = vmatprep.subr.mxu0 0.0
        %3111 = vmatpush1.xpose.msra.mxu0 0.0
        %3112 = vmatprep.subr.mxu0 0.0
        %3113 = vmatpush1.xpose.msra.mxu0 0.0
        %3114 = vmatprep.subr.mxu0 0.0
        %3115 = vmatpush1.xpose.msra.mxu0 0.0
        %3116 = vmatprep.subr.mxu0 0.0
        %3117 = vmatpush1.xpose.msra.mxu0 0.0
        %3118 = vmatprep.subr.mxu0 0.0
        %3119 = vmatpush1.xpose.msra.mxu0 0.0
        %3120 = vmatprep.subr.mxu0 0.0
        %3121 = vmatpush1.xpose.msra.mxu0 0.0
        %3122 = vmatprep.subr.mxu0 0.0
        %3123 = vmatpush1.xpose.msra.mxu0 0.0
        %3124 = vmatprep.subr.mxu0 0.0
        %3125 = vmatpush1.xpose.msra.mxu0 0.0
        %3126 = vmatprep.subr.mxu0 0.0
        %3127 = vmatpush1.xpose.msra.mxu0 0.0
        %3128 = vmatprep.subr.mxu0 0.0
        %3129 = vmatpush1.xpose.msra.mxu0 0.0
        %3130 = vmatprep.subr.mxu0 0.0
        %3131 = vmatpush1.xpose.msra.mxu0 0.0
        %3132 = vmatprep.subr.mxu0 0.0
        %3133 = vmatpush1.xpose.msra.mxu0 0.0
        %3134 = vmatprep.subr.mxu0 0.0
        %3135 = vmatpush1.xpose.msra.mxu0 0.0
        %3136 = vmatprep.mubr.f32.mxu0 0.0
        %3137 = vmatmul.mubr.f32.gmra.mrb[0].mxu0 %v3060
        %v3138 = vpop.f32.mrb[0].mxu0
        %v3139 = vadd.f32 0.0, %v3138
        %v3140 = vpop.f32.mrb[0].mxu0
        %3141 = vmatprep.mubr.f32.mxu0 0.0
        %3142 = vmatmul.mubr.f32.gmra.mrb[0].mxu0 %v3062
        %v3143 = vpop.f32.mrb[0].mxu0
        %v3144 = vadd.f32 0.0, %v3143
        %v3145 = vpop.f32.mrb[0].mxu0
        %3146 = vdwg.mxu0
        %3147 = vrot.lane.b32.xlu0 %v1360, 64
        %v3148 = vpop.permute.xlu0 %3147
        %3149 = vrot.lane.b32.xlu0 %v1361, 64
        %v3150 = vpop.permute.xlu0 %3149
        %3151 = vrot.lane.b32.xlu0 %v1212, 64
        %v3152 = vpop.permute.xlu0 %3151
        %3153 = vrot.lane.b32.xlu0 %v1217, 64
        %v3154 = vpop.permute.xlu0 %3153
        %3155 = vrot.lane.b32.xlu0 %v1222, 64
        %v3156 = vpop.permute.xlu0 %3155
        %3157 = vrot.lane.b32.xlu0 %v1227, 64
        %v3158 = vpop.permute.xlu0 %3157
        %v3159 = vsel %vm1362, %v3148, 0
        %v3161 = vsel %vm1362, %v3150, 0
        %v3163 = vsel %vm1362, %v3152, 0
        %v3165 = vsel %vm1362, %v3154, 0
        %v3167 = vsel %vm1362, %v3156, 0
        %v3169 = vsel %vm1362, %v3158, 0
        %3171 = vmatprep.subr.mxu0 0.0
        %3172 = vmatpush1.xpose.msra.mxu0 %v3163
        %3173 = vmatprep.subr.mxu0 0.0
        %3174 = vmatpush1.xpose.msra.mxu0 %v3165
        %3175 = vmatprep.subr.mxu0 0.0
        %3176 = vmatpush1.xpose.msra.mxu0 %v3167
        %3177 = vmatprep.subr.mxu0 0.0
        %3178 = vmatpush1.xpose.msra.mxu0 %v3169
        %3179 = vmatprep.subr.mxu0 0.0
        %3180 = vmatpush1.xpose.msra.mxu0 0.0
        %3181 = vmatprep.subr.mxu0 0.0
        %3182 = vmatpush1.xpose.msra.mxu0 0.0
        %3183 = vmatprep.subr.mxu0 0.0
        %3184 = vmatpush1.xpose.msra.mxu0 0.0
        %3185 = vmatprep.subr.mxu0 0.0
        %3186 = vmatpush1.xpose.msra.mxu0 0.0
        %3187 = vmatprep.subr.mxu0 0.0
        %3188 = vmatpush1.xpose.msra.mxu0 0.0
        %3189 = vmatprep.subr.mxu0 0.0
        %3190 = vmatpush1.xpose.msra.mxu0 0.0
        %3191 = vmatprep.subr.mxu0 0.0
        %3192 = vmatpush1.xpose.msra.mxu0 0.0
        %3193 = vmatprep.subr.mxu0 0.0
        %3194 = vmatpush1.xpose.msra.mxu0 0.0
        %3195 = vmatprep.subr.mxu0 0.0
        %3196 = vmatpush1.xpose.msra.mxu0 0.0
        %3197 = vmatprep.subr.mxu0 0.0
        %3198 = vmatpush1.xpose.msra.mxu0 0.0
        %3199 = vmatprep.subr.mxu0 0.0
        %3200 = vmatpush1.xpose.msra.mxu0 0.0
        %3201 = vmatprep.subr.mxu0 0.0
        %3202 = vmatpush1.xpose.msra.mxu0 0.0
        %3203 = vmatprep.subr.mxu0 0.0
        %3204 = vmatpush1.xpose.msra.mxu0 0.0
        %3205 = vmatprep.subr.mxu0 0.0
        %3206 = vmatpush1.xpose.msra.mxu0 0.0
        %3207 = vmatprep.subr.mxu0 0.0
        %3208 = vmatpush1.xpose.msra.mxu0 0.0
        %3209 = vmatprep.subr.mxu0 0.0
        %3210 = vmatpush1.xpose.msra.mxu0 0.0
        %3211 = vmatprep.subr.mxu0 0.0
        %3212 = vmatpush1.xpose.msra.mxu0 0.0
        %3213 = vmatprep.subr.mxu0 0.0
        %3214 = vmatpush1.xpose.msra.mxu0 0.0
        %3215 = vmatprep.subr.mxu0 0.0
        %3216 = vmatpush1.xpose.msra.mxu0 0.0
        %3217 = vmatprep.subr.mxu0 0.0
        %3218 = vmatpush1.xpose.msra.mxu0 0.0
        %3219 = vmatprep.subr.mxu0 0.0
        %3220 = vmatpush1.xpose.msra.mxu0 0.0
        %3221 = vmatprep.subr.mxu0 0.0
        %3222 = vmatpush1.xpose.msra.mxu0 0.0
        %3223 = vmatprep.subr.mxu0 0.0
        %3224 = vmatpush1.xpose.msra.mxu0 0.0
        %3225 = vmatprep.subr.mxu0 0.0
        %3226 = vmatpush1.xpose.msra.mxu0 0.0
        %3227 = vmatprep.subr.mxu0 0.0
        %3228 = vmatpush1.xpose.msra.mxu0 0.0
        %3229 = vmatprep.subr.mxu0 0.0
        %3230 = vmatpush1.xpose.msra.mxu0 0.0
        %3231 = vmatprep.subr.mxu0 0.0
        %3232 = vmatpush1.xpose.msra.mxu0 0.0
        %3233 = vmatprep.subr.mxu0 0.0
        %3234 = vmatpush1.xpose.msra.mxu0 0.0
        %3235 = vmatprep.mubr.f32.mxu0 0.0
        %3236 = vmatmul.mubr.f32.gmra.mrb[0].mxu0 %v3159
        %v3237 = vpop.f32.mrb[0].mxu0
        %v3238 = vadd.f32 0.0, %v3237
        %v3239 = vpop.f32.mrb[0].mxu0
        %3240 = vmatprep.mubr.f32.mxu0 0.0
        %3241 = vmatmul.mubr.f32.gmra.mrb[0].mxu0 %v3161
        %v3242 = vpop.f32.mrb[0].mxu0
        %v3243 = vadd.f32 0.0, %v3242
        %v3244 = vpop.f32.mrb[0].mxu0
        %3245 = vdwg.mxu0
        %v3246 = vsel %vm1549, %v3139, -inf
        %3247 = vmax.xlane.f32.xlu0 %v3246
        %v3248 = vpop.xlane.xlu0 %3247
        %v3249 = vsel %vm1549, %v3144, -inf
        %3250 = vmax.xlane.f32.xlu0 %v3249
        %v3251 = vpop.xlane.xlu0 %3250
        %v3252 = vsel %vm1549, %v3238, -inf
        %3253 = vmax.xlane.f32.xlu0 %v3252
        %v3254 = vpop.xlane.xlu0 %3253
        %v3255 = vsel %vm1549, %v3243, -inf
        %3256 = vmax.xlane.f32.xlu0 %v3255
        %v3257 = vpop.xlane.xlu0 %3256
        %v3258 = vsub.f32 %v3139, %v3248
        %v3259 = vsub.f32 %v3144, %v3251
        %v3260 = vsub.f32 %v3238, %v3254
        %v3261 = vsub.f32 %v3243, %v3257
        %v3262 = vmul.f32 %v3258, 1.442695
        %v3263 = vpow.pop %v3262
        %v3264 = vmul.f32 %v3259, 1.442695
        %v3265 = vpow.pop %v3264
        %v3266 = vmul.f32 %v3260, 1.442695
        %v3267 = vpow.pop %v3266
        %v3268 = vmul.f32 %v3261, 1.442695
        %v3269 = vpow.pop %v3268
        %v3270 = vsel %vm1549, %v3263, 0.0
        %3271 = vadd.xlane.f32.xlu0 %v3270
        %v3272 = vpop.xlane.xlu0 %3271
        %v3273 = vsel %vm1549, %v3265, 0.0
        %3274 = vadd.xlane.f32.xlu0 %v3273
        %v3275 = vpop.xlane.xlu0 %3274
        %v3276 = vsel %vm1549, %v3267, 0.0
        %3277 = vadd.xlane.f32.xlu0 %v3276
        %v3278 = vpop.xlane.xlu0 %3277
        %v3279 = vsel %vm1549, %v3269, 0.0
        %3280 = vadd.xlane.f32.xlu0 %v3279
        %v3281 = vpop.xlane.xlu0 %3280
        %v3282 = vrcp.pop %v3272
        %v3283 = vrcp.pop %v3275
        %v3284 = vrcp.pop %v3278
        %v3285 = vrcp.pop %v3281
        %v3286 = vmul.f32 %v3263, %v3282
        %v3287 = vmul.f32 %v3265, %v3283
        %v3288 = vmul.f32 %v3267, %v3284
        %v3289 = vmul.f32 %v3269, %v3285
        %3290 = vrot.lane.b32.xlu0 %v1320, 64
        %v3291 = vpop.permute.xlu0 %3290
        %3292 = vrot.lane.b32.xlu0 %v1325, 64
        %v3293 = vpop.permute.xlu0 %3292
        %3294 = vrot.lane.b32.xlu0 %v1330, 64
        %v3295 = vpop.permute.xlu0 %3294
        %3296 = vrot.lane.b32.xlu0 %v1335, 64
        %v3297 = vpop.permute.xlu0 %3296
        %v3303 = vsel %vm1549, %v3286, 0
        %v3306 = vsel %vm1549, %v3287, 0
        %3308 = vmatprep.subr.mxu0 0.0
        %3309 = vmatpush1.msra.mxu0 %v3291
        %3310 = vmatprep.subr.mxu0 0.0
        %3311 = vmatpush1.msra.mxu0 %v3293
        %3312 = vmatprep.subr.mxu0 0.0
        %3313 = vmatpush1.msra.mxu0 %v3295
        %3314 = vmatprep.subr.mxu0 0.0
        %3315 = vmatpush1.msra.mxu0 %v3297
        %3316 = vmatprep.subr.mxu0 0.0
        %3317 = vmatpush1.msra.mxu0 0.0
        %3318 = vmatprep.subr.mxu0 0.0
        %3319 = vmatpush1.msra.mxu0 0.0
        %3320 = vmatprep.subr.mxu0 0.0
        %3321 = vmatpush1.msra.mxu0 0.0
        %3322 = vmatprep.subr.mxu0 0.0
        %3323 = vmatpush1.msra.mxu0 0.0
        %3324 = vmatprep.subr.mxu0 0.0
        %3325 = vmatpush1.msra.mxu0 0.0
        %3326 = vmatprep.subr.mxu0 0.0
        %3327 = vmatpush1.msra.mxu0 0.0
        %3328 = vmatprep.subr.mxu0 0.0
        %3329 = vmatpush1.msra.mxu0 0.0
        %3330 = vmatprep.subr.mxu0 0.0
        %3331 = vmatpush1.msra.mxu0 0.0
        %3332 = vmatprep.subr.mxu0 0.0
        %3333 = vmatpush1.msra.mxu0 0.0
        %3334 = vmatprep.subr.mxu0 0.0
        %3335 = vmatpush1.msra.mxu0 0.0
        %3336 = vmatprep.subr.mxu0 0.0
        %3337 = vmatpush1.msra.mxu0 0.0
        %3338 = vmatprep.subr.mxu0 0.0
        %3339 = vmatpush1.msra.mxu0 0.0
        %3340 = vmatprep.subr.mxu0 0.0
        %3341 = vmatpush1.msra.mxu0 0.0
        %3342 = vmatprep.subr.mxu0 0.0
        %3343 = vmatpush1.msra.mxu0 0.0
        %3344 = vmatprep.subr.mxu0 0.0
        %3345 = vmatpush1.msra.mxu0 0.0
        %3346 = vmatprep.subr.mxu0 0.0
        %3347 = vmatpush1.msra.mxu0 0.0
        %3348 = vmatprep.subr.mxu0 0.0
        %3349 = vmatpush1.msra.mxu0 0.0
        %3350 = vmatprep.subr.mxu0 0.0
        %3351 = vmatpush1.msra.mxu0 0.0
        %3352 = vmatprep.subr.mxu0 0.0
        %3353 = vmatpush1.msra.mxu0 0.0
        %3354 = vmatprep.subr.mxu0 0.0
        %3355 = vmatpush1.msra.mxu0 0.0
        %3356 = vmatprep.subr.mxu0 0.0
        %3357 = vmatpush1.msra.mxu0 0.0
        %3358 = vmatprep.subr.mxu0 0.0
        %3359 = vmatpush1.msra.mxu0 0.0
        %3360 = vmatprep.subr.mxu0 0.0
        %3361 = vmatpush1.msra.mxu0 0.0
        %3362 = vmatprep.subr.mxu0 0.0
        %3363 = vmatpush1.msra.mxu0 0.0
        %3364 = vmatprep.subr.mxu0 0.0
        %3365 = vmatpush1.msra.mxu0 0.0
        %3366 = vmatprep.subr.mxu0 0.0
        %3367 = vmatpush1.msra.mxu0 0.0
        %3368 = vmatprep.subr.mxu0 0.0
        %3369 = vmatpush1.msra.mxu0 0.0
        %3370 = vmatprep.subr.mxu0 0.0
        %3371 = vmatpush1.msra.mxu0 0.0
        %3372 = vmatprep.mubr.f32.mxu0 0.0
        %3373 = vmatmul.mubr.f32.gmra.mrb[0].mxu0 %v3303
        %v3374 = vpop.f32.mrb[0].mxu0
        %v3375 = vadd.f32 0.0, %v3374
        %v3376 = vpop.f32.mrb[0].mxu0
        %3377 = vmatprep.mubr.f32.mxu0 0.0
        %3378 = vmatmul.mubr.f32.gmra.mrb[0].mxu0 %v3306
        %v3379 = vpop.f32.mrb[0].mxu0
        %v3380 = vadd.f32 0.0, %v3379
        %v3381 = vpop.f32.mrb[0].mxu0
        %3382 = vdwg.mxu0
        %3383 = vrot.lane.b32.xlu0 %v1340, 64
        %v3384 = vpop.permute.xlu0 %3383
        %3385 = vrot.lane.b32.xlu0 %v1345, 64
        %v3386 = vpop.permute.xlu0 %3385
        %3387 = vrot.lane.b32.xlu0 %v1350, 64
        %v3388 = vpop.permute.xlu0 %3387
        %3389 = vrot.lane.b32.xlu0 %v1355, 64
        %v3390 = vpop.permute.xlu0 %3389
        %v3396 = vsel %vm1549, %v3288, 0
        %v3399 = vsel %vm1549, %v3289, 0
        %3401 = vmatprep.subr.mxu0 0.0
        %3402 = vmatpush1.msra.mxu0 %v3384
        %3403 = vmatprep.subr.mxu0 0.0
        %3404 = vmatpush1.msra.mxu0 %v3386
        %3405 = vmatprep.subr.mxu0 0.0
        %3406 = vmatpush1.msra.mxu0 %v3388
        %3407 = vmatprep.subr.mxu0 0.0
        %3408 = vmatpush1.msra.mxu0 %v3390
        %3409 = vmatprep.subr.mxu0 0.0
        %3410 = vmatpush1.msra.mxu0 0.0
        %3411 = vmatprep.subr.mxu0 0.0
        %3412 = vmatpush1.msra.mxu0 0.0
        %3413 = vmatprep.subr.mxu0 0.0
        %3414 = vmatpush1.msra.mxu0 0.0
        %3415 = vmatprep.subr.mxu0 0.0
        %3416 = vmatpush1.msra.mxu0 0.0
        %3417 = vmatprep.subr.mxu0 0.0
        %3418 = vmatpush1.msra.mxu0 0.0
        %3419 = vmatprep.subr.mxu0 0.0
        %3420 = vmatpush1.msra.mxu0 0.0
        %3421 = vmatprep.subr.mxu0 0.0
        %3422 = vmatpush1.msra.mxu0 0.0
        %3423 = vmatprep.subr.mxu0 0.0
        %3424 = vmatpush1.msra.mxu0 0.0
        %3425 = vmatprep.subr.mxu0 0.0
        %3426 = vmatpush1.msra.mxu0 0.0
        %3427 = vmatprep.subr.mxu0 0.0
        %3428 = vmatpush1.msra.mxu0 0.0
        %3429 = vmatprep.subr.mxu0 0.0
        %3430 = vmatpush1.msra.mxu0 0.0
        %3431 = vmatprep.subr.mxu0 0.0
        %3432 = vmatpush1.msra.mxu0 0.0
        %3433 = vmatprep.subr.mxu0 0.0
        %3434 = vmatpush1.msra.mxu0 0.0
        %3435 = vmatprep.subr.mxu0 0.0
        %3436 = vmatpush1.msra.mxu0 0.0
        %3437 = vmatprep.subr.mxu0 0.0
        %3438 = vmatpush1.msra.mxu0 0.0
        %3439 = vmatprep.subr.mxu0 0.0
        %3440 = vmatpush1.msra.mxu0 0.0
        %3441 = vmatprep.subr.mxu0 0.0
        %3442 = vmatpush1.msra.mxu0 0.0
        %3443 = vmatprep.subr.mxu0 0.0
        %3444 = vmatpush1.msra.mxu0 0.0
        %3445 = vmatprep.subr.mxu0 0.0
        %3446 = vmatpush1.msra.mxu0 0.0
        %3447 = vmatprep.subr.mxu0 0.0
        %3448 = vmatpush1.msra.mxu0 0.0
        %3449 = vmatprep.subr.mxu0 0.0
        %3450 = vmatpush1.msra.mxu0 0.0
        %3451 = vmatprep.subr.mxu0 0.0
        %3452 = vmatpush1.msra.mxu0 0.0
        %3453 = vmatprep.subr.mxu0 0.0
        %3454 = vmatpush1.msra.mxu0 0.0
        %3455 = vmatprep.subr.mxu0 0.0
        %3456 = vmatpush1.msra.mxu0 0.0
        %3457 = vmatprep.subr.mxu0 0.0
        %3458 = vmatpush1.msra.mxu0 0.0
        %3459 = vmatprep.subr.mxu0 0.0
        %3460 = vmatpush1.msra.mxu0 0.0
        %3461 = vmatprep.subr.mxu0 0.0
        %3462 = vmatpush1.msra.mxu0 0.0
        %3463 = vmatprep.subr.mxu0 0.0
        %3464 = vmatpush1.msra.mxu0 0.0
        %3465 = vmatprep.mubr.f32.mxu0 0.0
        %3466 = vmatmul.mubr.f32.gmra.mrb[0].mxu0 %v3396
        %v3467 = vpop.f32.mrb[0].mxu0
        %v3468 = vadd.f32 0.0, %v3467
        %v3469 = vpop.f32.mrb[0].mxu0
        %3470 = vmatprep.mubr.f32.mxu0 0.0
        %3471 = vmatmul.mubr.f32.gmra.mrb[0].mxu0 %v3399
        %v3472 = vpop.f32.mrb[0].mxu0
        %v3473 = vadd.f32 0.0, %v3472
        %v3474 = vpop.f32.mrb[0].mxu0
        %3475 = vdwg.mxu0
        %3476 = vrot.lane.b32.xlu0 %v1358, 48
        %v3477 = vpop.permute.xlu0 %3476
        %3478 = vrot.lane.b32.xlu0 %v1359, 48
        %v3479 = vpop.permute.xlu0 %3478
        %3480 = vrot.lane.b32.xlu0 %v1192, 48
        %v3481 = vpop.permute.xlu0 %3480
        %3482 = vrot.lane.b32.xlu0 %v1197, 48
        %v3483 = vpop.permute.xlu0 %3482
        %3484 = vrot.lane.b32.xlu0 %v1202, 48
        %v3485 = vpop.permute.xlu0 %3484
        %3486 = vrot.lane.b32.xlu0 %v1207, 48
        %v3487 = vpop.permute.xlu0 %3486
        %v3488 = vsel %vm1362, %v3477, 0
        %v3490 = vsel %vm1362, %v3479, 0
        %v3492 = vsel %vm1362, %v3481, 0
        %v3494 = vsel %vm1362, %v3483, 0
        %v3496 = vsel %vm1362, %v3485, 0
        %v3498 = vsel %vm1362, %v3487, 0
        %3500 = vmatprep.subr.mxu0 0.0
        %3501 = vmatpush1.xpose.msra.mxu0 %v3492
        %3502 = vmatprep.subr.mxu0 0.0
        %3503 = vmatpush1.xpose.msra.mxu0 %v3494
        %3504 = vmatprep.subr.mxu0 0.0
        %3505 = vmatpush1.xpose.msra.mxu0 %v3496
        %3506 = vmatprep.subr.mxu0 0.0
        %3507 = vmatpush1.xpose.msra.mxu0 %v3498
        %3508 = vmatprep.subr.mxu0 0.0
        %3509 = vmatpush1.xpose.msra.mxu0 0.0
        %3510 = vmatprep.subr.mxu0 0.0
        %3511 = vmatpush1.xpose.msra.mxu0 0.0
        %3512 = vmatprep.subr.mxu0 0.0
        %3513 = vmatpush1.xpose.msra.mxu0 0.0
        %3514 = vmatprep.subr.mxu0 0.0
        %3515 = vmatpush1.xpose.msra.mxu0 0.0
        %3516 = vmatprep.subr.mxu0 0.0
        %3517 = vmatpush1.xpose.msra.mxu0 0.0
        %3518 = vmatprep.subr.mxu0 0.0
        %3519 = vmatpush1.xpose.msra.mxu0 0.0
        %3520 = vmatprep.subr.mxu0 0.0
        %3521 = vmatpush1.xpose.msra.mxu0 0.0
        %3522 = vmatprep.subr.mxu0 0.0
        %3523 = vmatpush1.xpose.msra.mxu0 0.0
        %3524 = vmatprep.subr.mxu0 0.0
        %3525 = vmatpush1.xpose.msra.mxu0 0.0
        %3526 = vmatprep.subr.mxu0 0.0
        %3527 = vmatpush1.xpose.msra.mxu0 0.0
        %3528 = vmatprep.subr.mxu0 0.0
        %3529 = vmatpush1.xpose.msra.mxu0 0.0
        %3530 = vmatprep.subr.mxu0 0.0
        %3531 = vmatpush1.xpose.msra.mxu0 0.0
        %3532 = vmatprep.subr.mxu0 0.0
        %3533 = vmatpush1.xpose.msra.mxu0 0.0
        %3534 = vmatprep.subr.mxu0 0.0
        %3535 = vmatpush1.xpose.msra.mxu0 0.0
        %3536 = vmatprep.subr.mxu0 0.0
        %3537 = vmatpush1.xpose.msra.mxu0 0.0
        %3538 = vmatprep.subr.mxu0 0.0
        %3539 = vmatpush1.xpose.msra.mxu0 0.0
        %3540 = vmatprep.subr.mxu0 0.0
        %3541 = vmatpush1.xpose.msra.mxu0 0.0
        %3542 = vmatprep.subr.mxu0 0.0
        %3543 = vmatpush1.xpose.msra.mxu0 0.0
        %3544 = vmatprep.subr.mxu0 0.0
        %3545 = vmatpush1.xpose.msra.mxu0 0.0
        %3546 = vmatprep.subr.mxu0 0.0
        %3547 = vmatpush1.xpose.msra.mxu0 0.0
        %3548 = vmatprep.subr.mxu0 0.0
        %3549 = vmatpush1.xpose.msra.mxu0 0.0
        %3550 = vmatprep.subr.mxu0 0.0
        %3551 = vmatpush1.xpose.msra.mxu0 0.0
        %3552 = vmatprep.subr.mxu0 0.0
        %3553 = vmatpush1.xpose.msra.mxu0 0.0
        %3554 = vmatprep.subr.mxu0 0.0
        %3555 = vmatpush1.xpose.msra.mxu0 0.0
        %3556 = vmatprep.subr.mxu0 0.0
        %3557 = vmatpush1.xpose.msra.mxu0 0.0
        %3558 = vmatprep.subr.mxu0 0.0
        %3559 = vmatpush1.xpose.msra.mxu0 0.0
        %3560 = vmatprep.subr.mxu0 0.0
        %3561 = vmatpush1.xpose.msra.mxu0 0.0
        %3562 = vmatprep.subr.mxu0 0.0
        %3563 = vmatpush1.xpose.msra.mxu0 0.0
        %3564 = vmatprep.mubr.f32.mxu0 0.0
        %3565 = vmatmul.mubr.f32.gmra.mrb[0].mxu0 %v3488
        %v3566 = vpop.f32.mrb[0].mxu0
        %v3567 = vadd.f32 0.0, %v3566
        %v3568 = vpop.f32.mrb[0].mxu0
        %3569 = vmatprep.mubr.f32.mxu0 0.0
        %3570 = vmatmul.mubr.f32.gmra.mrb[0].mxu0 %v3490
        %v3571 = vpop.f32.mrb[0].mxu0
        %v3572 = vadd.f32 0.0, %v3571
        %v3573 = vpop.f32.mrb[0].mxu0
        %3574 = vdwg.mxu0
        %3575 = vrot.lane.b32.xlu0 %v1360, 48
        %v3576 = vpop.permute.xlu0 %3575
        %3577 = vrot.lane.b32.xlu0 %v1361, 48
        %v3578 = vpop.permute.xlu0 %3577
        %3579 = vrot.lane.b32.xlu0 %v1212, 48
        %v3580 = vpop.permute.xlu0 %3579
        %3581 = vrot.lane.b32.xlu0 %v1217, 48
        %v3582 = vpop.permute.xlu0 %3581
        %3583 = vrot.lane.b32.xlu0 %v1222, 48
        %v3584 = vpop.permute.xlu0 %3583
        %3585 = vrot.lane.b32.xlu0 %v1227, 48
        %v3586 = vpop.permute.xlu0 %3585
        %v3587 = vsel %vm1362, %v3576, 0
        %v3589 = vsel %vm1362, %v3578, 0
        %v3591 = vsel %vm1362, %v3580, 0
        %v3593 = vsel %vm1362, %v3582, 0
        %v3595 = vsel %vm1362, %v3584, 0
        %v3597 = vsel %vm1362, %v3586, 0
        %3599 = vmatprep.subr.mxu0 0.0
        %3600 = vmatpush1.xpose.msra.mxu0 %v3591
        %3601 = vmatprep.subr.mxu0 0.0
        %3602 = vmatpush1.xpose.msra.mxu0 %v3593
        %3603 = vmatprep.subr.mxu0 0.0
        %3604 = vmatpush1.xpose.msra.mxu0 %v3595
        %3605 = vmatprep.subr.mxu0 0.0
        %3606 = vmatpush1.xpose.msra.mxu0 %v3597
        %3607 = vmatprep.subr.mxu0 0.0
        %3608 = vmatpush1.xpose.msra.mxu0 0.0
        %3609 = vmatprep.subr.mxu0 0.0
        %3610 = vmatpush1.xpose.msra.mxu0 0.0
        %3611 = vmatprep.subr.mxu0 0.0
        %3612 = vmatpush1.xpose.msra.mxu0 0.0
        %3613 = vmatprep.subr.mxu0 0.0
        %3614 = vmatpush1.xpose.msra.mxu0 0.0
        %3615 = vmatprep.subr.mxu0 0.0
        %3616 = vmatpush1.xpose.msra.mxu0 0.0
        %3617 = vmatprep.subr.mxu0 0.0
        %3618 = vmatpush1.xpose.msra.mxu0 0.0
        %3619 = vmatprep.subr.mxu0 0.0
        %3620 = vmatpush1.xpose.msra.mxu0 0.0
        %3621 = vmatprep.subr.mxu0 0.0
        %3622 = vmatpush1.xpose.msra.mxu0 0.0
        %3623 = vmatprep.subr.mxu0 0.0
        %3624 = vmatpush1.xpose.msra.mxu0 0.0
        %3625 = vmatprep.subr.mxu0 0.0
        %3626 = vmatpush1.xpose.msra.mxu0 0.0
        %3627 = vmatprep.subr.mxu0 0.0
        %3628 = vmatpush1.xpose.msra.mxu0 0.0
        %3629 = vmatprep.subr.mxu0 0.0
        %3630 = vmatpush1.xpose.msra.mxu0 0.0
        %3631 = vmatprep.subr.mxu0 0.0
        %3632 = vmatpush1.xpose.msra.mxu0 0.0
        %3633 = vmatprep.subr.mxu0 0.0
        %3634 = vmatpush1.xpose.msra.mxu0 0.0
        %3635 = vmatprep.subr.mxu0 0.0
        %3636 = vmatpush1.xpose.msra.mxu0 0.0
        %3637 = vmatprep.subr.mxu0 0.0
        %3638 = vmatpush1.xpose.msra.mxu0 0.0
        %3639 = vmatprep.subr.mxu0 0.0
        %3640 = vmatpush1.xpose.msra.mxu0 0.0
        %3641 = vmatprep.subr.mxu0 0.0
        %3642 = vmatpush1.xpose.msra.mxu0 0.0
        %3643 = vmatprep.subr.mxu0 0.0
        %3644 = vmatpush1.xpose.msra.mxu0 0.0
        %3645 = vmatprep.subr.mxu0 0.0
        %3646 = vmatpush1.xpose.msra.mxu0 0.0
        %3647 = vmatprep.subr.mxu0 0.0
        %3648 = vmatpush1.xpose.msra.mxu0 0.0
        %3649 = vmatprep.subr.mxu0 0.0
        %3650 = vmatpush1.xpose.msra.mxu0 0.0
        %3651 = vmatprep.subr.mxu0 0.0
        %3652 = vmatpush1.xpose.msra.mxu0 0.0
        %3653 = vmatprep.subr.mxu0 0.0
        %3654 = vmatpush1.xpose.msra.mxu0 0.0
        %3655 = vmatprep.subr.mxu0 0.0
        %3656 = vmatpush1.xpose.msra.mxu0 0.0
        %3657 = vmatprep.subr.mxu0 0.0
        %3658 = vmatpush1.xpose.msra.mxu0 0.0
        %3659 = vmatprep.subr.mxu0 0.0
        %3660 = vmatpush1.xpose.msra.mxu0 0.0
        %3661 = vmatprep.subr.mxu0 0.0
        %3662 = vmatpush1.xpose.msra.mxu0 0.0
        %3663 = vmatprep.mubr.f32.mxu0 0.0
        %3664 = vmatmul.mubr.f32.gmra.mrb[0].mxu0 %v3587
        %v3665 = vpop.f32.mrb[0].mxu0
        %v3666 = vadd.f32 0.0, %v3665
        %v3667 = vpop.f32.mrb[0].mxu0
        %3668 = vmatprep.mubr.f32.mxu0 0.0
        %3669 = vmatmul.mubr.f32.gmra.mrb[0].mxu0 %v3589
        %v3670 = vpop.f32.mrb[0].mxu0
        %v3671 = vadd.f32 0.0, %v3670
        %v3672 = vpop.f32.mrb[0].mxu0
        %3673 = vdwg.mxu0
        %v3674 = vsel %vm1549, %v3567, -inf
        %3675 = vmax.xlane.f32.xlu0 %v3674
        %v3676 = vpop.xlane.xlu0 %3675
        %v3677 = vsel %vm1549, %v3572, -inf
        %3678 = vmax.xlane.f32.xlu0 %v3677
        %v3679 = vpop.xlane.xlu0 %3678
        %v3680 = vsel %vm1549, %v3666, -inf
        %3681 = vmax.xlane.f32.xlu0 %v3680
        %v3682 = vpop.xlane.xlu0 %3681
        %v3683 = vsel %vm1549, %v3671, -inf
        %3684 = vmax.xlane.f32.xlu0 %v3683
        %v3685 = vpop.xlane.xlu0 %3684
        %v3686 = vsub.f32 %v3567, %v3676
        %v3687 = vsub.f32 %v3572, %v3679
        %v3688 = vsub.f32 %v3666, %v3682
        %v3689 = vsub.f32 %v3671, %v3685
        %v3690 = vmul.f32 %v3686, 1.442695
        %v3691 = vpow.pop %v3690
        %v3692 = vmul.f32 %v3687, 1.442695
        %v3693 = vpow.pop %v3692
        %v3694 = vmul.f32 %v3688, 1.442695
        %v3695 = vpow.pop %v3694
        %v3696 = vmul.f32 %v3689, 1.442695
        %v3697 = vpow.pop %v3696
        %v3698 = vsel %vm1549, %v3691, 0.0
        %3699 = vadd.xlane.f32.xlu0 %v3698
        %v3700 = vpop.xlane.xlu0 %3699
        %v3701 = vsel %vm1549, %v3693, 0.0
        %3702 = vadd.xlane.f32.xlu0 %v3701
        %v3703 = vpop.xlane.xlu0 %3702
        %v3704 = vsel %vm1549, %v3695, 0.0
        %3705 = vadd.xlane.f32.xlu0 %v3704
        %v3706 = vpop.xlane.xlu0 %3705
        %v3707 = vsel %vm1549, %v3697, 0.0
        %3708 = vadd.xlane.f32.xlu0 %v3707
        %v3709 = vpop.xlane.xlu0 %3708
        %v3710 = vrcp.pop %v3700
        %v3711 = vrcp.pop %v3703
        %v3712 = vrcp.pop %v3706
        %v3713 = vrcp.pop %v3709
        %v3714 = vmul.f32 %v3691, %v3710
        %v3715 = vmul.f32 %v3693, %v3711
        %v3716 = vmul.f32 %v3695, %v3712
        %v3717 = vmul.f32 %v3697, %v3713
        %3718 = vrot.lane.b32.xlu0 %v1320, 48
        %v3719 = vpop.permute.xlu0 %3718
        %3720 = vrot.lane.b32.xlu0 %v1325, 48
        %v3721 = vpop.permute.xlu0 %3720
        %3722 = vrot.lane.b32.xlu0 %v1330, 48
        %v3723 = vpop.permute.xlu0 %3722
        %3724 = vrot.lane.b32.xlu0 %v1335, 48
        %v3725 = vpop.permute.xlu0 %3724
        %v3731 = vsel %vm1549, %v3714, 0
        %v3734 = vsel %vm1549, %v3715, 0
        %3736 = vmatprep.subr.mxu0 0.0
        %3737 = vmatpush1.msra.mxu0 %v3719
        %3738 = vmatprep.subr.mxu0 0.0
        %3739 = vmatpush1.msra.mxu0 %v3721
        %3740 = vmatprep.subr.mxu0 0.0
        %3741 = vmatpush1.msra.mxu0 %v3723
        %3742 = vmatprep.subr.mxu0 0.0
        %3743 = vmatpush1.msra.mxu0 %v3725
        %3744 = vmatprep.subr.mxu0 0.0
        %3745 = vmatpush1.msra.mxu0 0.0
        %3746 = vmatprep.subr.mxu0 0.0
        %3747 = vmatpush1.msra.mxu0 0.0
        %3748 = vmatprep.subr.mxu0 0.0
        %3749 = vmatpush1.msra.mxu0 0.0
        %3750 = vmatprep.subr.mxu0 0.0
        %3751 = vmatpush1.msra.mxu0 0.0
        %3752 = vmatprep.subr.mxu0 0.0
        %3753 = vmatpush1.msra.mxu0 0.0
        %3754 = vmatprep.subr.mxu0 0.0
        %3755 = vmatpush1.msra.mxu0 0.0
        %3756 = vmatprep.subr.mxu0 0.0
        %3757 = vmatpush1.msra.mxu0 0.0
        %3758 = vmatprep.subr.mxu0 0.0
        %3759 = vmatpush1.msra.mxu0 0.0
        %3760 = vmatprep.subr.mxu0 0.0
        %3761 = vmatpush1.msra.mxu0 0.0
        %3762 = vmatprep.subr.mxu0 0.0
        %3763 = vmatpush1.msra.mxu0 0.0
        %3764 = vmatprep.subr.mxu0 0.0
        %3765 = vmatpush1.msra.mxu0 0.0
        %3766 = vmatprep.subr.mxu0 0.0
        %3767 = vmatpush1.msra.mxu0 0.0
        %3768 = vmatprep.subr.mxu0 0.0
        %3769 = vmatpush1.msra.mxu0 0.0
        %3770 = vmatprep.subr.mxu0 0.0
        %3771 = vmatpush1.msra.mxu0 0.0
        %3772 = vmatprep.subr.mxu0 0.0
        %3773 = vmatpush1.msra.mxu0 0.0
        %3774 = vmatprep.subr.mxu0 0.0
        %3775 = vmatpush1.msra.mxu0 0.0
        %3776 = vmatprep.subr.mxu0 0.0
        %3777 = vmatpush1.msra.mxu0 0.0
        %3778 = vmatprep.subr.mxu0 0.0
        %3779 = vmatpush1.msra.mxu0 0.0
        %3780 = vmatprep.subr.mxu0 0.0
        %3781 = vmatpush1.msra.mxu0 0.0
        %3782 = vmatprep.subr.mxu0 0.0
        %3783 = vmatpush1.msra.mxu0 0.0
        %3784 = vmatprep.subr.mxu0 0.0
        %3785 = vmatpush1.msra.mxu0 0.0
        %3786 = vmatprep.subr.mxu0 0.0
        %3787 = vmatpush1.msra.mxu0 0.0
        %3788 = vmatprep.subr.mxu0 0.0
        %3789 = vmatpush1.msra.mxu0 0.0
        %3790 = vmatprep.subr.mxu0 0.0
        %3791 = vmatpush1.msra.mxu0 0.0
        %3792 = vmatprep.subr.mxu0 0.0
        %3793 = vmatpush1.msra.mxu0 0.0
        %3794 = vmatprep.subr.mxu0 0.0
        %3795 = vmatpush1.msra.mxu0 0.0
        %3796 = vmatprep.subr.mxu0 0.0
        %3797 = vmatpush1.msra.mxu0 0.0
        %3798 = vmatprep.subr.mxu0 0.0
        %3799 = vmatpush1.msra.mxu0 0.0
        %3800 = vmatprep.mubr.f32.mxu0 0.0
        %3801 = vmatmul.mubr.f32.gmra.mrb[0].mxu0 %v3731
        %v3802 = vpop.f32.mrb[0].mxu0
        %v3803 = vadd.f32 0.0, %v3802
        %v3804 = vpop.f32.mrb[0].mxu0
        %3805 = vmatprep.mubr.f32.mxu0 0.0
        %3806 = vmatmul.mubr.f32.gmra.mrb[0].mxu0 %v3734
        %v3807 = vpop.f32.mrb[0].mxu0
        %v3808 = vadd.f32 0.0, %v3807
        %v3809 = vpop.f32.mrb[0].mxu0
        %3810 = vdwg.mxu0
        %3811 = vrot.lane.b32.xlu0 %v1340, 48
        %v3812 = vpop.permute.xlu0 %3811
        %3813 = vrot.lane.b32.xlu0 %v1345, 48
        %v3814 = vpop.permute.xlu0 %3813
        %3815 = vrot.lane.b32.xlu0 %v1350, 48
        %v3816 = vpop.permute.xlu0 %3815
        %3817 = vrot.lane.b32.xlu0 %v1355, 48
        %v3818 = vpop.permute.xlu0 %3817
        %v3824 = vsel %vm1549, %v3716, 0
        %v3827 = vsel %vm1549, %v3717, 0
        %3829 = vmatprep.subr.mxu0 0.0
        %3830 = vmatpush1.msra.mxu0 %v3812
        %3831 = vmatprep.subr.mxu0 0.0
        %3832 = vmatpush1.msra.mxu0 %v3814
        %3833 = vmatprep.subr.mxu0 0.0
        %3834 = vmatpush1.msra.mxu0 %v3816
        %3835 = vmatprep.subr.mxu0 0.0
        %3836 = vmatpush1.msra.mxu0 %v3818
        %3837 = vmatprep.subr.mxu0 0.0
        %3838 = vmatpush1.msra.mxu0 0.0
        %3839 = vmatprep.subr.mxu0 0.0
        %3840 = vmatpush1.msra.mxu0 0.0
        %3841 = vmatprep.subr.mxu0 0.0
        %3842 = vmatpush1.msra.mxu0 0.0
        %3843 = vmatprep.subr.mxu0 0.0
        %3844 = vmatpush1.msra.mxu0 0.0
        %3845 = vmatprep.subr.mxu0 0.0
        %3846 = vmatpush1.msra.mxu0 0.0
        %3847 = vmatprep.subr.mxu0 0.0
        %3848 = vmatpush1.msra.mxu0 0.0
        %3849 = vmatprep.subr.mxu0 0.0
        %3850 = vmatpush1.msra.mxu0 0.0
        %3851 = vmatprep.subr.mxu0 0.0
        %3852 = vmatpush1.msra.mxu0 0.0
        %3853 = vmatprep.subr.mxu0 0.0
        %3854 = vmatpush1.msra.mxu0 0.0
        %3855 = vmatprep.subr.mxu0 0.0
        %3856 = vmatpush1.msra.mxu0 0.0
        %3857 = vmatprep.subr.mxu0 0.0
        %3858 = vmatpush1.msra.mxu0 0.0
        %3859 = vmatprep.subr.mxu0 0.0
        %3860 = vmatpush1.msra.mxu0 0.0
        %3861 = vmatprep.subr.mxu0 0.0
        %3862 = vmatpush1.msra.mxu0 0.0
        %3863 = vmatprep.subr.mxu0 0.0
        %3864 = vmatpush1.msra.mxu0 0.0
        %3865 = vmatprep.subr.mxu0 0.0
        %3866 = vmatpush1.msra.mxu0 0.0
        %3867 = vmatprep.subr.mxu0 0.0
        %3868 = vmatpush1.msra.mxu0 0.0
        %3869 = vmatprep.subr.mxu0 0.0
        %3870 = vmatpush1.msra.mxu0 0.0
        %3871 = vmatprep.subr.mxu0 0.0
        %3872 = vmatpush1.msra.mxu0 0.0
        %3873 = vmatprep.subr.mxu0 0.0
        %3874 = vmatpush1.msra.mxu0 0.0
        %3875 = vmatprep.subr.mxu0 0.0
        %3876 = vmatpush1.msra.mxu0 0.0
        %3877 = vmatprep.subr.mxu0 0.0
        %3878 = vmatpush1.msra.mxu0 0.0
        %3879 = vmatprep.subr.mxu0 0.0
        %3880 = vmatpush1.msra.mxu0 0.0
        %3881 = vmatprep.subr.mxu0 0.0
        %3882 = vmatpush1.msra.mxu0 0.0
        %3883 = vmatprep.subr.mxu0 0.0
        %3884 = vmatpush1.msra.mxu0 0.0
        %3885 = vmatprep.subr.mxu0 0.0
        %3886 = vmatpush1.msra.mxu0 0.0
        %3887 = vmatprep.subr.mxu0 0.0
        %3888 = vmatpush1.msra.mxu0 0.0
        %3889 = vmatprep.subr.mxu0 0.0
        %3890 = vmatpush1.msra.mxu0 0.0
        %3891 = vmatprep.subr.mxu0 0.0
        %3892 = vmatpush1.msra.mxu0 0.0
        %3893 = vmatprep.mubr.f32.mxu0 0.0
        %3894 = vmatmul.mubr.f32.gmra.mrb[0].mxu0 %v3824
        %v3895 = vpop.f32.mrb[0].mxu0
        %v3896 = vadd.f32 0.0, %v3895
        %v3897 = vpop.f32.mrb[0].mxu0
        %3898 = vmatprep.mubr.f32.mxu0 0.0
        %3899 = vmatmul.mubr.f32.gmra.mrb[0].mxu0 %v3827
        %v3900 = vpop.f32.mrb[0].mxu0
        %v3901 = vadd.f32 0.0, %v3900
        %v3902 = vpop.f32.mrb[0].mxu0
        %3903 = vdwg.mxu0
        %3904 = vrot.lane.b32.xlu0 %v1358, 32
        %v3905 = vpop.permute.xlu0 %3904
        %3906 = vrot.lane.b32.xlu0 %v1359, 32
        %v3907 = vpop.permute.xlu0 %3906
        %3908 = vrot.lane.b32.xlu0 %v1192, 32
        %v3909 = vpop.permute.xlu0 %3908
        %3910 = vrot.lane.b32.xlu0 %v1197, 32
        %v3911 = vpop.permute.xlu0 %3910
        %3912 = vrot.lane.b32.xlu0 %v1202, 32
        %v3913 = vpop.permute.xlu0 %3912
        %3914 = vrot.lane.b32.xlu0 %v1207, 32
        %v3915 = vpop.permute.xlu0 %3914
        %v3916 = vsel %vm1362, %v3905, 0
        %v3918 = vsel %vm1362, %v3907, 0
        %v3920 = vsel %vm1362, %v3909, 0
        %v3922 = vsel %vm1362, %v3911, 0
        %v3924 = vsel %vm1362, %v3913, 0
        %v3926 = vsel %vm1362, %v3915, 0
        %3928 = vmatprep.subr.mxu0 0.0
        %3929 = vmatpush1.xpose.msra.mxu0 %v3920
        %3930 = vmatprep.subr.mxu0 0.0
        %3931 = vmatpush1.xpose.msra.mxu0 %v3922
        %3932 = vmatprep.subr.mxu0 0.0
        %3933 = vmatpush1.xpose.msra.mxu0 %v3924
        %3934 = vmatprep.subr.mxu0 0.0
        %3935 = vmatpush1.xpose.msra.mxu0 %v3926
        %3936 = vmatprep.subr.mxu0 0.0
        %3937 = vmatpush1.xpose.msra.mxu0 0.0
        %3938 = vmatprep.subr.mxu0 0.0
        %3939 = vmatpush1.xpose.msra.mxu0 0.0
        %3940 = vmatprep.subr.mxu0 0.0
        %3941 = vmatpush1.xpose.msra.mxu0 0.0
        %3942 = vmatprep.subr.mxu0 0.0
        %3943 = vmatpush1.xpose.msra.mxu0 0.0
        %3944 = vmatprep.subr.mxu0 0.0
        %3945 = vmatpush1.xpose.msra.mxu0 0.0
        %3946 = vmatprep.subr.mxu0 0.0
        %3947 = vmatpush1.xpose.msra.mxu0 0.0
        %3948 = vmatprep.subr.mxu0 0.0
        %3949 = vmatpush1.xpose.msra.mxu0 0.0
        %3950 = vmatprep.subr.mxu0 0.0
        %3951 = vmatpush1.xpose.msra.mxu0 0.0
        %3952 = vmatprep.subr.mxu0 0.0
        %3953 = vmatpush1.xpose.msra.mxu0 0.0
        %3954 = vmatprep.subr.mxu0 0.0
        %3955 = vmatpush1.xpose.msra.mxu0 0.0
        %3956 = vmatprep.subr.mxu0 0.0
        %3957 = vmatpush1.xpose.msra.mxu0 0.0
        %3958 = vmatprep.subr.mxu0 0.0
        %3959 = vmatpush1.xpose.msra.mxu0 0.0
        %3960 = vmatprep.subr.mxu0 0.0
        %3961 = vmatpush1.xpose.msra.mxu0 0.0
        %3962 = vmatprep.subr.mxu0 0.0
        %3963 = vmatpush1.xpose.msra.mxu0 0.0
        %3964 = vmatprep.subr.mxu0 0.0
        %3965 = vmatpush1.xpose.msra.mxu0 0.0
        %3966 = vmatprep.subr.mxu0 0.0
        %3967 = vmatpush1.xpose.msra.mxu0 0.0
        %3968 = vmatprep.subr.mxu0 0.0
        %3969 = vmatpush1.xpose.msra.mxu0 0.0
        %3970 = vmatprep.subr.mxu0 0.0
        %3971 = vmatpush1.xpose.msra.mxu0 0.0
        %3972 = vmatprep.subr.mxu0 0.0
        %3973 = vmatpush1.xpose.msra.mxu0 0.0
        %3974 = vmatprep.subr.mxu0 0.0
        %3975 = vmatpush1.xpose.msra.mxu0 0.0
        %3976 = vmatprep.subr.mxu0 0.0
        %3977 = vmatpush1.xpose.msra.mxu0 0.0
        %3978 = vmatprep.subr.mxu0 0.0
        %3979 = vmatpush1.xpose.msra.mxu0 0.0
        %3980 = vmatprep.subr.mxu0 0.0
        %3981 = vmatpush1.xpose.msra.mxu0 0.0
        %3982 = vmatprep.subr.mxu0 0.0
        %3983 = vmatpush1.xpose.msra.mxu0 0.0
        %3984 = vmatprep.subr.mxu0 0.0
        %3985 = vmatpush1.xpose.msra.mxu0 0.0
        %3986 = vmatprep.subr.mxu0 0.0
        %3987 = vmatpush1.xpose.msra.mxu0 0.0
        %3988 = vmatprep.subr.mxu0 0.0
        %3989 = vmatpush1.xpose.msra.mxu0 0.0
        %3990 = vmatprep.subr.mxu0 0.0
        %3991 = vmatpush1.xpose.msra.mxu0 0.0
        %3992 = vmatprep.mubr.f32.mxu0 0.0
        %3993 = vmatmul.mubr.f32.gmra.mrb[0].mxu0 %v3916
        %v3994 = vpop.f32.mrb[0].mxu0
        %v3995 = vadd.f32 0.0, %v3994
        %v3996 = vpop.f32.mrb[0].mxu0
        %3997 = vmatprep.mubr.f32.mxu0 0.0
        %3998 = vmatmul.mubr.f32.gmra.mrb[0].mxu0 %v3918
        %v3999 = vpop.f32.mrb[0].mxu0
        %v4000 = vadd.f32 0.0, %v3999
        %v4001 = vpop.f32.mrb[0].mxu0
        %4002 = vdwg.mxu0
        %4003 = vrot.lane.b32.xlu0 %v1360, 32
        %v4004 = vpop.permute.xlu0 %4003
        %4005 = vrot.lane.b32.xlu0 %v1361, 32
        %v4006 = vpop.permute.xlu0 %4005
        %4007 = vrot.lane.b32.xlu0 %v1212, 32
        %v4008 = vpop.permute.xlu0 %4007
        %4009 = vrot.lane.b32.xlu0 %v1217, 32
        %v4010 = vpop.permute.xlu0 %4009
        %4011 = vrot.lane.b32.xlu0 %v1222, 32
        %v4012 = vpop.permute.xlu0 %4011
        %4013 = vrot.lane.b32.xlu0 %v1227, 32
        %v4014 = vpop.permute.xlu0 %4013
        %v4015 = vsel %vm1362, %v4004, 0
        %v4017 = vsel %vm1362, %v4006, 0
        %v4019 = vsel %vm1362, %v4008, 0
        %v4021 = vsel %vm1362, %v4010, 0
        %v4023 = vsel %vm1362, %v4012, 0
        %v4025 = vsel %vm1362, %v4014, 0
        %4027 = vmatprep.subr.mxu0 0.0
        %4028 = vmatpush1.xpose.msra.mxu0 %v4019
        %4029 = vmatprep.subr.mxu0 0.0
        %4030 = vmatpush1.xpose.msra.mxu0 %v4021
        %4031 = vmatprep.subr.mxu0 0.0
        %4032 = vmatpush1.xpose.msra.mxu0 %v4023
        %4033 = vmatprep.subr.mxu0 0.0
        %4034 = vmatpush1.xpose.msra.mxu0 %v4025
        %4035 = vmatprep.subr.mxu0 0.0
        %4036 = vmatpush1.xpose.msra.mxu0 0.0
        %4037 = vmatprep.subr.mxu0 0.0
        %4038 = vmatpush1.xpose.msra.mxu0 0.0
        %4039 = vmatprep.subr.mxu0 0.0
        %4040 = vmatpush1.xpose.msra.mxu0 0.0
        %4041 = vmatprep.subr.mxu0 0.0
        %4042 = vmatpush1.xpose.msra.mxu0 0.0
        %4043 = vmatprep.subr.mxu0 0.0
        %4044 = vmatpush1.xpose.msra.mxu0 0.0
        %4045 = vmatprep.subr.mxu0 0.0
        %4046 = vmatpush1.xpose.msra.mxu0 0.0
        %4047 = vmatprep.subr.mxu0 0.0
        %4048 = vmatpush1.xpose.msra.mxu0 0.0
        %4049 = vmatprep.subr.mxu0 0.0
        %4050 = vmatpush1.xpose.msra.mxu0 0.0
        %4051 = vmatprep.subr.mxu0 0.0
        %4052 = vmatpush1.xpose.msra.mxu0 0.0
        %4053 = vmatprep.subr.mxu0 0.0
        %4054 = vmatpush1.xpose.msra.mxu0 0.0
        %4055 = vmatprep.subr.mxu0 0.0
        %4056 = vmatpush1.xpose.msra.mxu0 0.0
        %4057 = vmatprep.subr.mxu0 0.0
        %4058 = vmatpush1.xpose.msra.mxu0 0.0
        %4059 = vmatprep.subr.mxu0 0.0
        %4060 = vmatpush1.xpose.msra.mxu0 0.0
        %4061 = vmatprep.subr.mxu0 0.0
        %4062 = vmatpush1.xpose.msra.mxu0 0.0
        %4063 = vmatprep.subr.mxu0 0.0
        %4064 = vmatpush1.xpose.msra.mxu0 0.0
        %4065 = vmatprep.subr.mxu0 0.0
        %4066 = vmatpush1.xpose.msra.mxu0 0.0
        %4067 = vmatprep.subr.mxu0 0.0
        %4068 = vmatpush1.xpose.msra.mxu0 0.0
        %4069 = vmatprep.subr.mxu0 0.0
        %4070 = vmatpush1.xpose.msra.mxu0 0.0
        %4071 = vmatprep.subr.mxu0 0.0
        %4072 = vmatpush1.xpose.msra.mxu0 0.0
        %4073 = vmatprep.subr.mxu0 0.0
        %4074 = vmatpush1.xpose.msra.mxu0 0.0
        %4075 = vmatprep.subr.mxu0 0.0
        %4076 = vmatpush1.xpose.msra.mxu0 0.0
        %4077 = vmatprep.subr.mxu0 0.0
        %4078 = vmatpush1.xpose.msra.mxu0 0.0
        %4079 = vmatprep.subr.mxu0 0.0
        %4080 = vmatpush1.xpose.msra.mxu0 0.0
        %4081 = vmatprep.subr.mxu0 0.0
        %4082 = vmatpush1.xpose.msra.mxu0 0.0
        %4083 = vmatprep.subr.mxu0 0.0
        %4084 = vmatpush1.xpose.msra.mxu0 0.0
        %4085 = vmatprep.subr.mxu0 0.0
        %4086 = vmatpush1.xpose.msra.mxu0 0.0
        %4087 = vmatprep.subr.mxu0 0.0
        %4088 = vmatpush1.xpose.msra.mxu0 0.0
        %4089 = vmatprep.subr.mxu0 0.0
        %4090 = vmatpush1.xpose.msra.mxu0 0.0
        %4091 = vmatprep.mubr.f32.mxu0 0.0
        %4092 = vmatmul.mubr.f32.gmra.mrb[0].mxu0 %v4015
        %v4093 = vpop.f32.mrb[0].mxu0
        %v4094 = vadd.f32 0.0, %v4093
        %v4095 = vpop.f32.mrb[0].mxu0
        %4096 = vmatprep.mubr.f32.mxu0 0.0
        %4097 = vmatmul.mubr.f32.gmra.mrb[0].mxu0 %v4017
        %v4098 = vpop.f32.mrb[0].mxu0
        %v4099 = vadd.f32 0.0, %v4098
        %v4100 = vpop.f32.mrb[0].mxu0
        %4101 = vdwg.mxu0
        %v4102 = vsel %vm1549, %v3995, -inf
        %4103 = vmax.xlane.f32.xlu0 %v4102
        %v4104 = vpop.xlane.xlu0 %4103
        %v4105 = vsel %vm1549, %v4000, -inf
        %4106 = vmax.xlane.f32.xlu0 %v4105
        %v4107 = vpop.xlane.xlu0 %4106
        %v4108 = vsel %vm1549, %v4094, -inf
        %4109 = vmax.xlane.f32.xlu0 %v4108
        %v4110 = vpop.xlane.xlu0 %4109
        %v4111 = vsel %vm1549, %v4099, -inf
        %4112 = vmax.xlane.f32.xlu0 %v4111
        %v4113 = vpop.xlane.xlu0 %4112
        %v4114 = vsub.f32 %v3995, %v4104
        %v4115 = vsub.f32 %v4000, %v4107
        %v4116 = vsub.f32 %v4094, %v4110
        %v4117 = vsub.f32 %v4099, %v4113
        %v4118 = vmul.f32 %v4114, 1.442695
        %v4119 = vpow.pop %v4118
        %v4120 = vmul.f32 %v4115, 1.442695
        %v4121 = vpow.pop %v4120
        %v4122 = vmul.f32 %v4116, 1.442695
        %v4123 = vpow.pop %v4122
        %v4124 = vmul.f32 %v4117, 1.442695
        %v4125 = vpow.pop %v4124
        %v4126 = vsel %vm1549, %v4119, 0.0
        %4127 = vadd.xlane.f32.xlu0 %v4126
        %v4128 = vpop.xlane.xlu0 %4127
        %v4129 = vsel %vm1549, %v4121, 0.0
        %4130 = vadd.xlane.f32.xlu0 %v4129
        %v4131 = vpop.xlane.xlu0 %4130
        %v4132 = vsel %vm1549, %v4123, 0.0
        %4133 = vadd.xlane.f32.xlu0 %v4132
        %v4134 = vpop.xlane.xlu0 %4133
        %v4135 = vsel %vm1549, %v4125, 0.0
        %4136 = vadd.xlane.f32.xlu0 %v4135
        %v4137 = vpop.xlane.xlu0 %4136
        %v4138 = vrcp.pop %v4128
        %v4139 = vrcp.pop %v4131
        %v4140 = vrcp.pop %v4134
        %v4141 = vrcp.pop %v4137
        %v4142 = vmul.f32 %v4119, %v4138
        %v4143 = vmul.f32 %v4121, %v4139
        %v4144 = vmul.f32 %v4123, %v4140
        %v4145 = vmul.f32 %v4125, %v4141
        %4146 = vrot.lane.b32.xlu0 %v1320, 32
        %v4147 = vpop.permute.xlu0 %4146
        %4148 = vrot.lane.b32.xlu0 %v1325, 32
        %v4149 = vpop.permute.xlu0 %4148
        %4150 = vrot.lane.b32.xlu0 %v1330, 32
        %v4151 = vpop.permute.xlu0 %4150
        %4152 = vrot.lane.b32.xlu0 %v1335, 32
        %v4153 = vpop.permute.xlu0 %4152
        %v4159 = vsel %vm1549, %v4142, 0
        %v4162 = vsel %vm1549, %v4143, 0
        %4164 = vmatprep.subr.mxu0 0.0
        %4165 = vmatpush1.msra.mxu0 %v4147
        %4166 = vmatprep.subr.mxu0 0.0
        %4167 = vmatpush1.msra.mxu0 %v4149
        %4168 = vmatprep.subr.mxu0 0.0
        %4169 = vmatpush1.msra.mxu0 %v4151
        %4170 = vmatprep.subr.mxu0 0.0
        %4171 = vmatpush1.msra.mxu0 %v4153
        %4172 = vmatprep.subr.mxu0 0.0
        %4173 = vmatpush1.msra.mxu0 0.0
        %4174 = vmatprep.subr.mxu0 0.0
        %4175 = vmatpush1.msra.mxu0 0.0
        %4176 = vmatprep.subr.mxu0 0.0
        %4177 = vmatpush1.msra.mxu0 0.0
        %4178 = vmatprep.subr.mxu0 0.0
        %4179 = vmatpush1.msra.mxu0 0.0
        %4180 = vmatprep.subr.mxu0 0.0
        %4181 = vmatpush1.msra.mxu0 0.0
        %4182 = vmatprep.subr.mxu0 0.0
        %4183 = vmatpush1.msra.mxu0 0.0
        %4184 = vmatprep.subr.mxu0 0.0
        %4185 = vmatpush1.msra.mxu0 0.0
        %4186 = vmatprep.subr.mxu0 0.0
        %4187 = vmatpush1.msra.mxu0 0.0
        %4188 = vmatprep.subr.mxu0 0.0
        %4189 = vmatpush1.msra.mxu0 0.0
        %4190 = vmatprep.subr.mxu0 0.0
        %4191 = vmatpush1.msra.mxu0 0.0
        %4192 = vmatprep.subr.mxu0 0.0
        %4193 = vmatpush1.msra.mxu0 0.0
        %4194 = vmatprep.subr.mxu0 0.0
        %4195 = vmatpush1.msra.mxu0 0.0
        %4196 = vmatprep.subr.mxu0 0.0
        %4197 = vmatpush1.msra.mxu0 0.0
        %4198 = vmatprep.subr.mxu0 0.0
        %4199 = vmatpush1.msra.mxu0 0.0
        %4200 = vmatprep.subr.mxu0 0.0
        %4201 = vmatpush1.msra.mxu0 0.0
        %4202 = vmatprep.subr.mxu0 0.0
        %4203 = vmatpush1.msra.mxu0 0.0
        %4204 = vmatprep.subr.mxu0 0.0
        %4205 = vmatpush1.msra.mxu0 0.0
        %4206 = vmatprep.subr.mxu0 0.0
        %4207 = vmatpush1.msra.mxu0 0.0
        %4208 = vmatprep.subr.mxu0 0.0
        %4209 = vmatpush1.msra.mxu0 0.0
        %4210 = vmatprep.subr.mxu0 0.0
        %4211 = vmatpush1.msra.mxu0 0.0
        %4212 = vmatprep.subr.mxu0 0.0
        %4213 = vmatpush1.msra.mxu0 0.0
        %4214 = vmatprep.subr.mxu0 0.0
        %4215 = vmatpush1.msra.mxu0 0.0
        %4216 = vmatprep.subr.mxu0 0.0
        %4217 = vmatpush1.msra.mxu0 0.0
        %4218 = vmatprep.subr.mxu0 0.0
        %4219 = vmatpush1.msra.mxu0 0.0
        %4220 = vmatprep.subr.mxu0 0.0
        %4221 = vmatpush1.msra.mxu0 0.0
        %4222 = vmatprep.subr.mxu0 0.0
        %4223 = vmatpush1.msra.mxu0 0.0
        %4224 = vmatprep.subr.mxu0 0.0
        %4225 = vmatpush1.msra.mxu0 0.0
        %4226 = vmatprep.subr.mxu0 0.0
        %4227 = vmatpush1.msra.mxu0 0.0
        %4228 = vmatprep.mubr.f32.mxu0 0.0
        %4229 = vmatmul.mubr.f32.gmra.mrb[0].mxu0 %v4159
        %v4230 = vpop.f32.mrb[0].mxu0
        %v4231 = vadd.f32 0.0, %v4230
        %v4232 = vpop.f32.mrb[0].mxu0
        %4233 = vmatprep.mubr.f32.mxu0 0.0
        %4234 = vmatmul.mubr.f32.gmra.mrb[0].mxu0 %v4162
        %v4235 = vpop.f32.mrb[0].mxu0
        %v4236 = vadd.f32 0.0, %v4235
        %v4237 = vpop.f32.mrb[0].mxu0
        %4238 = vdwg.mxu0
        %4239 = vrot.lane.b32.xlu0 %v1340, 32
        %v4240 = vpop.permute.xlu0 %4239
        %4241 = vrot.lane.b32.xlu0 %v1345, 32
        %v4242 = vpop.permute.xlu0 %4241
        %4243 = vrot.lane.b32.xlu0 %v1350, 32
        %v4244 = vpop.permute.xlu0 %4243
        %4245 = vrot.lane.b32.xlu0 %v1355, 32
        %v4246 = vpop.permute.xlu0 %4245
        %v4252 = vsel %vm1549, %v4144, 0
        %v4255 = vsel %vm1549, %v4145, 0
        %4257 = vmatprep.subr.mxu0 0.0
        %4258 = vmatpush1.msra.mxu0 %v4240
        %4259 = vmatprep.subr.mxu0 0.0
        %4260 = vmatpush1.msra.mxu0 %v4242
        %4261 = vmatprep.subr.mxu0 0.0
        %4262 = vmatpush1.msra.mxu0 %v4244
        %4263 = vmatprep.subr.mxu0 0.0
        %4264 = vmatpush1.msra.mxu0 %v4246
        %4265 = vmatprep.subr.mxu0 0.0
        %4266 = vmatpush1.msra.mxu0 0.0
        %4267 = vmatprep.subr.mxu0 0.0
        %4268 = vmatpush1.msra.mxu0 0.0
        %4269 = vmatprep.subr.mxu0 0.0
        %4270 = vmatpush1.msra.mxu0 0.0
        %4271 = vmatprep.subr.mxu0 0.0
        %4272 = vmatpush1.msra.mxu0 0.0
        %4273 = vmatprep.subr.mxu0 0.0
        %4274 = vmatpush1.msra.mxu0 0.0
        %4275 = vmatprep.subr.mxu0 0.0
        %4276 = vmatpush1.msra.mxu0 0.0
        %4277 = vmatprep.subr.mxu0 0.0
        %4278 = vmatpush1.msra.mxu0 0.0
        %4279 = vmatprep.subr.mxu0 0.0
        %4280 = vmatpush1.msra.mxu0 0.0
        %4281 = vmatprep.subr.mxu0 0.0
        %4282 = vmatpush1.msra.mxu0 0.0
        %4283 = vmatprep.subr.mxu0 0.0
        %4284 = vmatpush1.msra.mxu0 0.0
        %4285 = vmatprep.subr.mxu0 0.0
        %4286 = vmatpush1.msra.mxu0 0.0
        %4287 = vmatprep.subr.mxu0 0.0
        %4288 = vmatpush1.msra.mxu0 0.0
        %4289 = vmatprep.subr.mxu0 0.0
        %4290 = vmatpush1.msra.mxu0 0.0
        %4291 = vmatprep.subr.mxu0 0.0
        %4292 = vmatpush1.msra.mxu0 0.0
        %4293 = vmatprep.subr.mxu0 0.0
        %4294 = vmatpush1.msra.mxu0 0.0
        %4295 = vmatprep.subr.mxu0 0.0
        %4296 = vmatpush1.msra.mxu0 0.0
        %4297 = vmatprep.subr.mxu0 0.0
        %4298 = vmatpush1.msra.mxu0 0.0
        %4299 = vmatprep.subr.mxu0 0.0
        %4300 = vmatpush1.msra.mxu0 0.0
        %4301 = vmatprep.subr.mxu0 0.0
        %4302 = vmatpush1.msra.mxu0 0.0
        %4303 = vmatprep.subr.mxu0 0.0
        %4304 = vmatpush1.msra.mxu0 0.0
        %4305 = vmatprep.subr.mxu0 0.0
        %4306 = vmatpush1.msra.mxu0 0.0
        %4307 = vmatprep.subr.mxu0 0.0
        %4308 = vmatpush1.msra.mxu0 0.0
        %4309 = vmatprep.subr.mxu0 0.0
        %4310 = vmatpush1.msra.mxu0 0.0
        %4311 = vmatprep.subr.mxu0 0.0
        %4312 = vmatpush1.msra.mxu0 0.0
        %4313 = vmatprep.subr.mxu0 0.0
        %4314 = vmatpush1.msra.mxu0 0.0
        %4315 = vmatprep.subr.mxu0 0.0
        %4316 = vmatpush1.msra.mxu0 0.0
        %4317 = vmatprep.subr.mxu0 0.0
        %4318 = vmatpush1.msra.mxu0 0.0
        %4319 = vmatprep.subr.mxu0 0.0
        %4320 = vmatpush1.msra.mxu0 0.0
        %4321 = vmatprep.mubr.f32.mxu0 0.0
        %4322 = vmatmul.mubr.f32.gmra.mrb[0].mxu0 %v4252
        %v4323 = vpop.f32.mrb[0].mxu0
        %v4324 = vadd.f32 0.0, %v4323
        %v4325 = vpop.f32.mrb[0].mxu0
        %4326 = vmatprep.mubr.f32.mxu0 0.0
        %4327 = vmatmul.mubr.f32.gmra.mrb[0].mxu0 %v4255
        %v4328 = vpop.f32.mrb[0].mxu0
        %v4329 = vadd.f32 0.0, %v4328
        %v4330 = vpop.f32.mrb[0].mxu0
        %4331 = vdwg.mxu0
        %4332 = vrot.lane.b32.xlu0 %v1358, 16
        %v4333 = vpop.permute.xlu0 %4332
        %4334 = vrot.lane.b32.xlu0 %v1359, 16
        %v4335 = vpop.permute.xlu0 %4334
        %4336 = vrot.lane.b32.xlu0 %v1192, 16
        %v4337 = vpop.permute.xlu0 %4336
        %4338 = vrot.lane.b32.xlu0 %v1197, 16
        %v4339 = vpop.permute.xlu0 %4338
        %4340 = vrot.lane.b32.xlu0 %v1202, 16
        %v4341 = vpop.permute.xlu0 %4340
        %4342 = vrot.lane.b32.xlu0 %v1207, 16
        %v4343 = vpop.permute.xlu0 %4342
        %v4344 = vsel %vm1362, %v4333, 0
        %v4346 = vsel %vm1362, %v4335, 0
        %v4348 = vsel %vm1362, %v4337, 0
        %v4350 = vsel %vm1362, %v4339, 0
        %v4352 = vsel %vm1362, %v4341, 0
        %v4354 = vsel %vm1362, %v4343, 0
        %4356 = vmatprep.subr.mxu0 0.0
        %4357 = vmatpush1.xpose.msra.mxu0 %v4348
        %4358 = vmatprep.subr.mxu0 0.0
        %4359 = vmatpush1.xpose.msra.mxu0 %v4350
        %4360 = vmatprep.subr.mxu0 0.0
        %4361 = vmatpush1.xpose.msra.mxu0 %v4352
        %4362 = vmatprep.subr.mxu0 0.0
        %4363 = vmatpush1.xpose.msra.mxu0 %v4354
        %4364 = vmatprep.subr.mxu0 0.0
        %4365 = vmatpush1.xpose.msra.mxu0 0.0
        %4366 = vmatprep.subr.mxu0 0.0
        %4367 = vmatpush1.xpose.msra.mxu0 0.0
        %4368 = vmatprep.subr.mxu0 0.0
        %4369 = vmatpush1.xpose.msra.mxu0 0.0
        %4370 = vmatprep.subr.mxu0 0.0
        %4371 = vmatpush1.xpose.msra.mxu0 0.0
        %4372 = vmatprep.subr.mxu0 0.0
        %4373 = vmatpush1.xpose.msra.mxu0 0.0
        %4374 = vmatprep.subr.mxu0 0.0
        %4375 = vmatpush1.xpose.msra.mxu0 0.0
        %4376 = vmatprep.subr.mxu0 0.0
        %4377 = vmatpush1.xpose.msra.mxu0 0.0
        %4378 = vmatprep.subr.mxu0 0.0
        %4379 = vmatpush1.xpose.msra.mxu0 0.0
        %4380 = vmatprep.subr.mxu0 0.0
        %4381 = vmatpush1.xpose.msra.mxu0 0.0
        %4382 = vmatprep.subr.mxu0 0.0
        %4383 = vmatpush1.xpose.msra.mxu0 0.0
        %4384 = vmatprep.subr.mxu0 0.0
        %4385 = vmatpush1.xpose.msra.mxu0 0.0
        %4386 = vmatprep.subr.mxu0 0.0
        %4387 = vmatpush1.xpose.msra.mxu0 0.0
        %4388 = vmatprep.subr.mxu0 0.0
        %4389 = vmatpush1.xpose.msra.mxu0 0.0
        %4390 = vmatprep.subr.mxu0 0.0
        %4391 = vmatpush1.xpose.msra.mxu0 0.0
        %4392 = vmatprep.subr.mxu0 0.0
        %4393 = vmatpush1.xpose.msra.mxu0 0.0
        %4394 = vmatprep.subr.mxu0 0.0
        %4395 = vmatpush1.xpose.msra.mxu0 0.0
        %4396 = vmatprep.subr.mxu0 0.0
        %4397 = vmatpush1.xpose.msra.mxu0 0.0
        %4398 = vmatprep.subr.mxu0 0.0
        %4399 = vmatpush1.xpose.msra.mxu0 0.0
        %4400 = vmatprep.subr.mxu0 0.0
        %4401 = vmatpush1.xpose.msra.mxu0 0.0
        %4402 = vmatprep.subr.mxu0 0.0
        %4403 = vmatpush1.xpose.msra.mxu0 0.0
        %4404 = vmatprep.subr.mxu0 0.0
        %4405 = vmatpush1.xpose.msra.mxu0 0.0
        %4406 = vmatprep.subr.mxu0 0.0
        %4407 = vmatpush1.xpose.msra.mxu0 0.0
        %4408 = vmatprep.subr.mxu0 0.0
        %4409 = vmatpush1.xpose.msra.mxu0 0.0
        %4410 = vmatprep.subr.mxu0 0.0
        %4411 = vmatpush1.xpose.msra.mxu0 0.0
        %4412 = vmatprep.subr.mxu0 0.0
        %4413 = vmatpush1.xpose.msra.mxu0 0.0
        %4414 = vmatprep.subr.mxu0 0.0
        %4415 = vmatpush1.xpose.msra.mxu0 0.0
        %4416 = vmatprep.subr.mxu0 0.0
        %4417 = vmatpush1.xpose.msra.mxu0 0.0
        %4418 = vmatprep.subr.mxu0 0.0
        %4419 = vmatpush1.xpose.msra.mxu0 0.0
        %4420 = vmatprep.mubr.f32.mxu0 0.0
        %4421 = vmatmul.mubr.f32.gmra.mrb[0].mxu0 %v4344
        %v4422 = vpop.f32.mrb[0].mxu0
        %v4423 = vadd.f32 0.0, %v4422
        %v4424 = vpop.f32.mrb[0].mxu0
        %4425 = vmatprep.mubr.f32.mxu0 0.0
        %4426 = vmatmul.mubr.f32.gmra.mrb[0].mxu0 %v4346
        %v4427 = vpop.f32.mrb[0].mxu0
        %v4428 = vadd.f32 0.0, %v4427
        %v4429 = vpop.f32.mrb[0].mxu0
        %4430 = vdwg.mxu0
        %4431 = vrot.lane.b32.xlu0 %v1360, 16
        %v4432 = vpop.permute.xlu0 %4431
        %4433 = vrot.lane.b32.xlu0 %v1361, 16
        %v4434 = vpop.permute.xlu0 %4433
        %4435 = vrot.lane.b32.xlu0 %v1212, 16
        %v4436 = vpop.permute.xlu0 %4435
        %4437 = vrot.lane.b32.xlu0 %v1217, 16
        %v4438 = vpop.permute.xlu0 %4437
        %4439 = vrot.lane.b32.xlu0 %v1222, 16
        %v4440 = vpop.permute.xlu0 %4439
        %4441 = vrot.lane.b32.xlu0 %v1227, 16
        %v4442 = vpop.permute.xlu0 %4441
        %v4443 = vsel %vm1362, %v4432, 0
        %v4445 = vsel %vm1362, %v4434, 0
        %v4447 = vsel %vm1362, %v4436, 0
        %v4449 = vsel %vm1362, %v4438, 0
        %v4451 = vsel %vm1362, %v4440, 0
        %v4453 = vsel %vm1362, %v4442, 0
        %4455 = vmatprep.subr.mxu0 0.0
        %4456 = vmatpush1.xpose.msra.mxu0 %v4447
        %4457 = vmatprep.subr.mxu0 0.0
        %4458 = vmatpush1.xpose.msra.mxu0 %v4449
        %4459 = vmatprep.subr.mxu0 0.0
        %4460 = vmatpush1.xpose.msra.mxu0 %v4451
        %4461 = vmatprep.subr.mxu0 0.0
        %4462 = vmatpush1.xpose.msra.mxu0 %v4453
        %4463 = vmatprep.subr.mxu0 0.0
        %4464 = vmatpush1.xpose.msra.mxu0 0.0
        %4465 = vmatprep.subr.mxu0 0.0
        %4466 = vmatpush1.xpose.msra.mxu0 0.0
        %4467 = vmatprep.subr.mxu0 0.0
        %4468 = vmatpush1.xpose.msra.mxu0 0.0
        %4469 = vmatprep.subr.mxu0 0.0
        %4470 = vmatpush1.xpose.msra.mxu0 0.0
        %4471 = vmatprep.subr.mxu0 0.0
        %4472 = vmatpush1.xpose.msra.mxu0 0.0
        %4473 = vmatprep.subr.mxu0 0.0
        %4474 = vmatpush1.xpose.msra.mxu0 0.0
        %4475 = vmatprep.subr.mxu0 0.0
        %4476 = vmatpush1.xpose.msra.mxu0 0.0
        %4477 = vmatprep.subr.mxu0 0.0
        %4478 = vmatpush1.xpose.msra.mxu0 0.0
        %4479 = vmatprep.subr.mxu0 0.0
        %4480 = vmatpush1.xpose.msra.mxu0 0.0
        %4481 = vmatprep.subr.mxu0 0.0
        %4482 = vmatpush1.xpose.msra.mxu0 0.0
        %4483 = vmatprep.subr.mxu0 0.0
        %4484 = vmatpush1.xpose.msra.mxu0 0.0
        %4485 = vmatprep.subr.mxu0 0.0
        %4486 = vmatpush1.xpose.msra.mxu0 0.0
        %4487 = vmatprep.subr.mxu0 0.0
        %4488 = vmatpush1.xpose.msra.mxu0 0.0
        %4489 = vmatprep.subr.mxu0 0.0
        %4490 = vmatpush1.xpose.msra.mxu0 0.0
        %4491 = vmatprep.subr.mxu0 0.0
        %4492 = vmatpush1.xpose.msra.mxu0 0.0
        %4493 = vmatprep.subr.mxu0 0.0
        %4494 = vmatpush1.xpose.msra.mxu0 0.0
        %4495 = vmatprep.subr.mxu0 0.0
        %4496 = vmatpush1.xpose.msra.mxu0 0.0
        %4497 = vmatprep.subr.mxu0 0.0
        %4498 = vmatpush1.xpose.msra.mxu0 0.0
        %4499 = vmatprep.subr.mxu0 0.0
        %4500 = vmatpush1.xpose.msra.mxu0 0.0
        %4501 = vmatprep.subr.mxu0 0.0
        %4502 = vmatpush1.xpose.msra.mxu0 0.0
        %4503 = vmatprep.subr.mxu0 0.0
        %4504 = vmatpush1.xpose.msra.mxu0 0.0
        %4505 = vmatprep.subr.mxu0 0.0
        %4506 = vmatpush1.xpose.msra.mxu0 0.0
        %4507 = vmatprep.subr.mxu0 0.0
        %4508 = vmatpush1.xpose.msra.mxu0 0.0
        %4509 = vmatprep.subr.mxu0 0.0
        %4510 = vmatpush1.xpose.msra.mxu0 0.0
        %4511 = vmatprep.subr.mxu0 0.0
        %4512 = vmatpush1.xpose.msra.mxu0 0.0
        %4513 = vmatprep.subr.mxu0 0.0
        %4514 = vmatpush1.xpose.msra.mxu0 0.0
        %4515 = vmatprep.subr.mxu0 0.0
        %4516 = vmatpush1.xpose.msra.mxu0 0.0
        %4517 = vmatprep.subr.mxu0 0.0
        %4518 = vmatpush1.xpose.msra.mxu0 0.0
        %4519 = vmatprep.mubr.f32.mxu0 0.0
        %4520 = vmatmul.mubr.f32.gmra.mrb[0].mxu0 %v4443
        %v4521 = vpop.f32.mrb[0].mxu0
        %v4522 = vadd.f32 0.0, %v4521
        %v4523 = vpop.f32.mrb[0].mxu0
        %4524 = vmatprep.mubr.f32.mxu0 0.0
        %4525 = vmatmul.mubr.f32.gmra.mrb[0].mxu0 %v4445
        %v4526 = vpop.f32.mrb[0].mxu0
        %v4527 = vadd.f32 0.0, %v4526
        %v4528 = vpop.f32.mrb[0].mxu0
        %4529 = vdwg.mxu0
        %v4530 = vsel %vm1549, %v4423, -inf
        %4531 = vmax.xlane.f32.xlu0 %v4530
        %v4532 = vpop.xlane.xlu0 %4531
        %v4533 = vsel %vm1549, %v4428, -inf
        %4534 = vmax.xlane.f32.xlu0 %v4533
        %v4535 = vpop.xlane.xlu0 %4534
        %v4536 = vsel %vm1549, %v4522, -inf
        %4537 = vmax.xlane.f32.xlu0 %v4536
        %v4538 = vpop.xlane.xlu0 %4537
        %v4539 = vsel %vm1549, %v4527, -inf
        %4540 = vmax.xlane.f32.xlu0 %v4539
        %v4541 = vpop.xlane.xlu0 %4540
        %v4542 = vsub.f32 %v4423, %v4532
        %v4543 = vsub.f32 %v4428, %v4535
        %v4544 = vsub.f32 %v4522, %v4538
        %v4545 = vsub.f32 %v4527, %v4541
        %v4546 = vmul.f32 %v4542, 1.442695
        %v4547 = vpow.pop %v4546
        %v4548 = vmul.f32 %v4543, 1.442695
        %v4549 = vpow.pop %v4548
        %v4550 = vmul.f32 %v4544, 1.442695
        %v4551 = vpow.pop %v4550
        %v4552 = vmul.f32 %v4545, 1.442695
        %v4553 = vpow.pop %v4552
        %v4554 = vsel %vm1549, %v4547, 0.0
        %4555 = vadd.xlane.f32.xlu0 %v4554
        %v4556 = vpop.xlane.xlu0 %4555
        %v4557 = vsel %vm1549, %v4549, 0.0
        %4558 = vadd.xlane.f32.xlu0 %v4557
        %v4559 = vpop.xlane.xlu0 %4558
        %v4560 = vsel %vm1549, %v4551, 0.0
        %4561 = vadd.xlane.f32.xlu0 %v4560
        %v4562 = vpop.xlane.xlu0 %4561
        %v4563 = vsel %vm1549, %v4553, 0.0
        %4564 = vadd.xlane.f32.xlu0 %v4563
        %v4565 = vpop.xlane.xlu0 %4564
        %v4566 = vrcp.pop %v4556
        %v4567 = vrcp.pop %v4559
        %v4568 = vrcp.pop %v4562
        %v4569 = vrcp.pop %v4565
        %v4570 = vmul.f32 %v4547, %v4566
        %v4571 = vmul.f32 %v4549, %v4567
        %v4572 = vmul.f32 %v4551, %v4568
        %v4573 = vmul.f32 %v4553, %v4569
        %4574 = vrot.lane.b32.xlu0 %v1320, 16
        %v4575 = vpop.permute.xlu0 %4574
        %4576 = vrot.lane.b32.xlu0 %v1325, 16
        %v4577 = vpop.permute.xlu0 %4576
        %4578 = vrot.lane.b32.xlu0 %v1330, 16
        %v4579 = vpop.permute.xlu0 %4578
        %4580 = vrot.lane.b32.xlu0 %v1335, 16
        %v4581 = vpop.permute.xlu0 %4580
        %v4587 = vsel %vm1549, %v4570, 0
        %v4590 = vsel %vm1549, %v4571, 0
        %4592 = vmatprep.subr.mxu0 0.0
        %4593 = vmatpush1.msra.mxu0 %v4575
        %4594 = vmatprep.subr.mxu0 0.0
        %4595 = vmatpush1.msra.mxu0 %v4577
        %4596 = vmatprep.subr.mxu0 0.0
        %4597 = vmatpush1.msra.mxu0 %v4579
        %4598 = vmatprep.subr.mxu0 0.0
        %4599 = vmatpush1.msra.mxu0 %v4581
        %4600 = vmatprep.subr.mxu0 0.0
        %4601 = vmatpush1.msra.mxu0 0.0
        %4602 = vmatprep.subr.mxu0 0.0
        %4603 = vmatpush1.msra.mxu0 0.0
        %4604 = vmatprep.subr.mxu0 0.0
        %4605 = vmatpush1.msra.mxu0 0.0
        %4606 = vmatprep.subr.mxu0 0.0
        %4607 = vmatpush1.msra.mxu0 0.0
        %4608 = vmatprep.subr.mxu0 0.0
        %4609 = vmatpush1.msra.mxu0 0.0
        %4610 = vmatprep.subr.mxu0 0.0
        %4611 = vmatpush1.msra.mxu0 0.0
        %4612 = vmatprep.subr.mxu0 0.0
        %4613 = vmatpush1.msra.mxu0 0.0
        %4614 = vmatprep.subr.mxu0 0.0
        %4615 = vmatpush1.msra.mxu0 0.0
        %4616 = vmatprep.subr.mxu0 0.0
        %4617 = vmatpush1.msra.mxu0 0.0
        %4618 = vmatprep.subr.mxu0 0.0
        %4619 = vmatpush1.msra.mxu0 0.0
        %4620 = vmatprep.subr.mxu0 0.0
        %4621 = vmatpush1.msra.mxu0 0.0
        %4622 = vmatprep.subr.mxu0 0.0
        %4623 = vmatpush1.msra.mxu0 0.0
        %4624 = vmatprep.subr.mxu0 0.0
        %4625 = vmatpush1.msra.mxu0 0.0
        %4626 = vmatprep.subr.mxu0 0.0
        %4627 = vmatpush1.msra.mxu0 0.0
        %4628 = vmatprep.subr.mxu0 0.0
        %4629 = vmatpush1.msra.mxu0 0.0
        %4630 = vmatprep.subr.mxu0 0.0
        %4631 = vmatpush1.msra.mxu0 0.0
        %4632 = vmatprep.subr.mxu0 0.0
        %4633 = vmatpush1.msra.mxu0 0.0
        %4634 = vmatprep.subr.mxu0 0.0
        %4635 = vmatpush1.msra.mxu0 0.0
        %4636 = vmatprep.subr.mxu0 0.0
        %4637 = vmatpush1.msra.mxu0 0.0
        %4638 = vmatprep.subr.mxu0 0.0
        %4639 = vmatpush1.msra.mxu0 0.0
        %4640 = vmatprep.subr.mxu0 0.0
        %4641 = vmatpush1.msra.mxu0 0.0
        %4642 = vmatprep.subr.mxu0 0.0
        %4643 = vmatpush1.msra.mxu0 0.0
        %4644 = vmatprep.subr.mxu0 0.0
        %4645 = vmatpush1.msra.mxu0 0.0
        %4646 = vmatprep.subr.mxu0 0.0
        %4647 = vmatpush1.msra.mxu0 0.0
        %4648 = vmatprep.subr.mxu0 0.0
        %4649 = vmatpush1.msra.mxu0 0.0
        %4650 = vmatprep.subr.mxu0 0.0
        %4651 = vmatpush1.msra.mxu0 0.0
        %4652 = vmatprep.subr.mxu0 0.0
        %4653 = vmatpush1.msra.mxu0 0.0
        %4654 = vmatprep.subr.mxu0 0.0
        %4655 = vmatpush1.msra.mxu0 0.0
        %4656 = vmatprep.mubr.f32.mxu0 0.0
        %4657 = vmatmul.mubr.f32.gmra.mrb[0].mxu0 %v4587
        %v4658 = vpop.f32.mrb[0].mxu0
        %v4659 = vadd.f32 0.0, %v4658
        %v4660 = vpop.f32.mrb[0].mxu0
        %4661 = vmatprep.mubr.f32.mxu0 0.0
        %4662 = vmatmul.mubr.f32.gmra.mrb[0].mxu0 %v4590
        %v4663 = vpop.f32.mrb[0].mxu0
        %v4664 = vadd.f32 0.0, %v4663
        %v4665 = vpop.f32.mrb[0].mxu0
        %4666 = vdwg.mxu0
        %4667 = vrot.lane.b32.xlu0 %v1340, 16
        %v4668 = vpop.permute.xlu0 %4667
        %4669 = vrot.lane.b32.xlu0 %v1345, 16
        %v4670 = vpop.permute.xlu0 %4669
        %4671 = vrot.lane.b32.xlu0 %v1350, 16
        %v4672 = vpop.permute.xlu0 %4671
        %4673 = vrot.lane.b32.xlu0 %v1355, 16
        %v4674 = vpop.permute.xlu0 %4673
        %v4680 = vsel %vm1549, %v4572, 0
        %v4683 = vsel %vm1549, %v4573, 0
        %4685 = vmatprep.subr.mxu0 0.0
        %4686 = vmatpush1.msra.mxu0 %v4668
        %4687 = vmatprep.subr.mxu0 0.0
        %4688 = vmatpush1.msra.mxu0 %v4670
        %4689 = vmatprep.subr.mxu0 0.0
        %4690 = vmatpush1.msra.mxu0 %v4672
        %4691 = vmatprep.subr.mxu0 0.0
        %4692 = vmatpush1.msra.mxu0 %v4674
        %4693 = vmatprep.subr.mxu0 0.0
        %4694 = vmatpush1.msra.mxu0 0.0
        %4695 = vmatprep.subr.mxu0 0.0
        %4696 = vmatpush1.msra.mxu0 0.0
        %4697 = vmatprep.subr.mxu0 0.0
        %4698 = vmatpush1.msra.mxu0 0.0
        %4699 = vmatprep.subr.mxu0 0.0
        %4700 = vmatpush1.msra.mxu0 0.0
        %4701 = vmatprep.subr.mxu0 0.0
        %4702 = vmatpush1.msra.mxu0 0.0
        %4703 = vmatprep.subr.mxu0 0.0
        %4704 = vmatpush1.msra.mxu0 0.0
        %4705 = vmatprep.subr.mxu0 0.0
        %4706 = vmatpush1.msra.mxu0 0.0
        %4707 = vmatprep.subr.mxu0 0.0
        %4708 = vmatpush1.msra.mxu0 0.0
        %4709 = vmatprep.subr.mxu0 0.0
        %4710 = vmatpush1.msra.mxu0 0.0
        %4711 = vmatprep.subr.mxu0 0.0
        %4712 = vmatpush1.msra.mxu0 0.0
        %4713 = vmatprep.subr.mxu0 0.0
        %4714 = vmatpush1.msra.mxu0 0.0
        %4715 = vmatprep.subr.mxu0 0.0
        %4716 = vmatpush1.msra.mxu0 0.0
        %4717 = vmatprep.subr.mxu0 0.0
        %4718 = vmatpush1.msra.mxu0 0.0
        %4719 = vmatprep.subr.mxu0 0.0
        %4720 = vmatpush1.msra.mxu0 0.0
        %4721 = vmatprep.subr.mxu0 0.0
        %4722 = vmatpush1.msra.mxu0 0.0
        %4723 = vmatprep.subr.mxu0 0.0
        %4724 = vmatpush1.msra.mxu0 0.0
        %4725 = vmatprep.subr.mxu0 0.0
        %4726 = vmatpush1.msra.mxu0 0.0
        %4727 = vmatprep.subr.mxu0 0.0
        %4728 = vmatpush1.msra.mxu0 0.0
        %4729 = vmatprep.subr.mxu0 0.0
        %4730 = vmatpush1.msra.mxu0 0.0
        %4731 = vmatprep.subr.mxu0 0.0
        %4732 = vmatpush1.msra.mxu0 0.0
        %4733 = vmatprep.subr.mxu0 0.0
        %4734 = vmatpush1.msra.mxu0 0.0
        %4735 = vmatprep.subr.mxu0 0.0
        %4736 = vmatpush1.msra.mxu0 0.0
        %4737 = vmatprep.subr.mxu0 0.0
        %4738 = vmatpush1.msra.mxu0 0.0
        %4739 = vmatprep.subr.mxu0 0.0
        %4740 = vmatpush1.msra.mxu0 0.0
        %4741 = vmatprep.subr.mxu0 0.0
        %4742 = vmatpush1.msra.mxu0 0.0
        %4743 = vmatprep.subr.mxu0 0.0
        %4744 = vmatpush1.msra.mxu0 0.0
        %4745 = vmatprep.subr.mxu0 0.0
        %4746 = vmatpush1.msra.mxu0 0.0
        %4747 = vmatprep.subr.mxu0 0.0
        %4748 = vmatpush1.msra.mxu0 0.0
        %4749 = vmatprep.mubr.f32.mxu0 0.0
        %4750 = vmatmul.mubr.f32.gmra.mrb[0].mxu0 %v4680
        %v4751 = vpop.f32.mrb[0].mxu0
        %v4752 = vadd.f32 0.0, %v4751
        %v4753 = vpop.f32.mrb[0].mxu0
        %4754 = vmatprep.mubr.f32.mxu0 0.0
        %4755 = vmatmul.mubr.f32.gmra.mrb[0].mxu0 %v4683
        %v4756 = vpop.f32.mrb[0].mxu0
        %v4757 = vadd.f32 0.0, %v4756
        %v4758 = vpop.f32.mrb[0].mxu0
        %4759 = vdwg.mxu0
        %4764 = vrot.lane.b32.xlu0 %v2087, 16
        %v4765 = vpop.permute.xlu0 %4764
        %4766 = vrot.lane.b32.xlu0 %v2092, 16
        %v4767 = vpop.permute.xlu0 %4766
        %4768 = vrot.lane.b32.xlu0 %v2184, 16
        %v4769 = vpop.permute.xlu0 %4768
        %4770 = vrot.lane.b32.xlu0 %v2189, 16
        %v4771 = vpop.permute.xlu0 %4770
        %4780 = vrot.lane.b32.xlu0 %v2519, 32
        %v4781 = vpop.permute.xlu0 %4780
        %4782 = vrot.lane.b32.xlu0 %v2524, 32
        %v4783 = vpop.permute.xlu0 %4782
        %4784 = vrot.lane.b32.xlu0 %v2612, 32
        %v4785 = vpop.permute.xlu0 %4784
        %4786 = vrot.lane.b32.xlu0 %v2617, 32
        %v4787 = vpop.permute.xlu0 %4786
        %4796 = vrot.lane.b32.xlu0 %v2947, 48
        %v4797 = vpop.permute.xlu0 %4796
        %4798 = vrot.lane.b32.xlu0 %v2952, 48
        %v4799 = vpop.permute.xlu0 %4798
        %4800 = vrot.lane.b32.xlu0 %v3040, 48
        %v4801 = vpop.permute.xlu0 %4800
        %4802 = vrot.lane.b32.xlu0 %v3045, 48
        %v4803 = vpop.permute.xlu0 %4802
        %4812 = vrot.lane.b32.xlu0 %v3375, 64
        %v4813 = vpop.permute.xlu0 %4812
        %4814 = vrot.lane.b32.xlu0 %v3380, 64
        %v4815 = vpop.permute.xlu0 %4814
        %4816 = vrot.lane.b32.xlu0 %v3468, 64
        %v4817 = vpop.permute.xlu0 %4816
        %4818 = vrot.lane.b32.xlu0 %v3473, 64
        %v4819 = vpop.permute.xlu0 %4818
        %4828 = vrot.lane.b32.xlu0 %v3803, 80
        %v4829 = vpop.permute.xlu0 %4828
        %4830 = vrot.lane.b32.xlu0 %v3808, 80
        %v4831 = vpop.permute.xlu0 %4830
        %4832 = vrot.lane.b32.xlu0 %v3896, 80
        %v4833 = vpop.permute.xlu0 %4832
        %4834 = vrot.lane.b32.xlu0 %v3901, 80
        %v4835 = vpop.permute.xlu0 %4834
        %4844 = vrot.lane.b32.xlu0 %v4231, 96
        %v4845 = vpop.permute.xlu0 %4844
        %4846 = vrot.lane.b32.xlu0 %v4236, 96
        %v4847 = vpop.permute.xlu0 %4846
        %4848 = vrot.lane.b32.xlu0 %v4324, 96
        %v4849 = vpop.permute.xlu0 %4848
        %4850 = vrot.lane.b32.xlu0 %v4329, 96
        %v4851 = vpop.permute.xlu0 %4850
        %4860 = vrot.lane.b32.xlu0 %v4659, 112
        %v4861 = vpop.permute.xlu0 %4860
        %4862 = vrot.lane.b32.xlu0 %v4664, 112
        %v4863 = vpop.permute.xlu0 %4862
        %4864 = vrot.lane.b32.xlu0 %v4752, 112
        %v4865 = vpop.permute.xlu0 %4864
        %4866 = vrot.lane.b32.xlu0 %v4757, 112
        %v4867 = vpop.permute.xlu0 %4866
        %v4872 = vsel %vm1362, %v1667, %v4765
        %v4873 = vsel %vm1362, %v1672, %v4767
        %v4874 = vsel %vm1362, %v1748, %v4769
        %v4875 = vsel %vm1362, %v1753, %v4771
        %v4876 = vsel %vm1549, %v4872, %v4781
        %v4877 = vsel %vm1549, %v4873, %v4783
        %v4878 = vsel %vm1549, %v4874, %v4785
        %v4879 = vsel %vm1549, %v4875, %v4787
        %vm4880 = vcmask 392192
        %v4881 = vsel %vm4880, %v4876, %v4797
        %v4882 = vsel %vm4880, %v4877, %v4799
        %v4883 = vsel %vm4880, %v4878, %v4801
        %v4884 = vsel %vm4880, %v4879, %v4803
        %vm4885 = vcmask 523264
        %v4886 = vsel %vm4885, %v4881, %v4813
        %v4887 = vsel %vm4885, %v4882, %v4815
        %v4888 = vsel %vm4885, %v4883, %v4817
        %v4889 = vsel %vm4885, %v4884, %v4819
        %vm4890 = vcmask 654336
        %v4891 = vsel %vm4890, %v4886, %v4829
        %v4892 = vsel %vm4890, %v4887, %v4831
        %v4893 = vsel %vm4890, %v4888, %v4833
        %v4894 = vsel %vm4890, %v4889, %v4835
        %vm4895 = vcmask 785408
        %v4896 = vsel %vm4895, %v4891, %v4845
        %v4897 = vsel %vm4895, %v4892, %v4847
        %v4898 = vsel %vm4895, %v4893, %v4849
        %v4899 = vsel %vm4895, %v4894, %v4851
        %vm4900 = vcmask 916480
        %v4901 = vsel %vm4900, %v4896, %v4861
        %v4902 = vsel %vm4900, %v4897, %v4863
        %v4903 = vsel %vm4900, %v4898, %v4865
        %v4904 = vsel %vm4900, %v4899, %v4867
        %v4905 = vld [vmem:[#allocation20] sm:$0xff]
        %v4906 = vld [vmem:[#allocation20 + $0x8] sm:$0xff]
        %v4907 = vld [vmem:[#allocation20 + $0x10] sm:$0xff]
        %v4908 = vld [vmem:[#allocation20 + $0x18] sm:$0xff]
        %v4909 = vld [vmem:[#allocation20 + $0x20] sm:$0xff]
        %v4910 = vld [vmem:[#allocation20 + $0x28] sm:$0xff]
        %v4911 = vld [vmem:[#allocation20 + $0x30] sm:$0xff]
        %v4912 = vld [vmem:[#allocation20 + $0x38] sm:$0xff]
        %v4913 = vld [vmem:[#allocation20 + $0x40] sm:$0xff]
        %v4914 = vld [vmem:[#allocation20 + $0x48] sm:$0xff]
        %v4915 = vld [vmem:[#allocation20 + $0x50] sm:$0xff]
        %v4916 = vld [vmem:[#allocation20 + $0x58] sm:$0xff]
        %v4917 = vld [vmem:[#allocation20 + $0x60] sm:$0xff]
        %v4918 = vld [vmem:[#allocation20 + $0x68] sm:$0xff]
        %v4919 = vld [vmem:[#allocation20 + $0x70] sm:$0xff]
        %v4920 = vld [vmem:[#allocation20 + $0x78] sm:$0xff]
        %v4921 = vld [vmem:[#allocation21] sm:$0x1]
        %v4923 = vlaneseq
        %v4924 = vshrl.u32 %v4923, 7
        %v4925 = vsub.s32 0, %v4924
        %v4926 = vrot.slane %v4921, %v4925
        %4928 = vmatprep.subr.mxu0 0.0
        %4929 = vmatpush1.msra.mxu0 %v4905
        %4930 = vmatprep.subr.mxu0 0.0
        %4931 = vmatpush1.msra.mxu0 %v4906
        %4932 = vmatprep.subr.mxu0 0.0
        %4933 = vmatpush1.msra.mxu0 %v4907
        %4934 = vmatprep.subr.mxu0 0.0
        %4935 = vmatpush1.msra.mxu0 %v4908
        %4936 = vmatprep.subr.mxu0 0.0
        %4937 = vmatpush1.msra.mxu0 %v4909
        %4938 = vmatprep.subr.mxu0 0.0
        %4939 = vmatpush1.msra.mxu0 %v4910
        %4940 = vmatprep.subr.mxu0 0.0
        %4941 = vmatpush1.msra.mxu0 %v4911
        %4942 = vmatprep.subr.mxu0 0.0
        %4943 = vmatpush1.msra.mxu0 %v4912
        %4944 = vmatprep.subr.mxu0 0.0
        %4945 = vmatpush1.msra.mxu0 %v4913
        %4946 = vmatprep.subr.mxu0 0.0
        %4947 = vmatpush1.msra.mxu0 %v4914
        %4948 = vmatprep.subr.mxu0 0.0
        %4949 = vmatpush1.msra.mxu0 %v4915
        %4950 = vmatprep.subr.mxu0 0.0
        %4951 = vmatpush1.msra.mxu0 %v4916
        %4952 = vmatprep.subr.mxu0 0.0
        %4953 = vmatpush1.msra.mxu0 %v4917
        %4954 = vmatprep.subr.mxu0 0.0
        %4955 = vmatpush1.msra.mxu0 %v4918
        %4956 = vmatprep.subr.mxu0 0.0
        %4957 = vmatpush1.msra.mxu0 %v4919
        %4958 = vmatprep.subr.mxu0 0.0
        %4959 = vmatpush1.msra.mxu0 %v4920
        %4960 = vmatprep.subr.mxu0 0.0
        %4961 = vmatpush1.msra.mxu0 0.0
        %4962 = vmatprep.subr.mxu0 0.0
        %4963 = vmatpush1.msra.mxu0 0.0
        %4964 = vmatprep.subr.mxu0 0.0
        %4965 = vmatpush1.msra.mxu0 0.0
        %4966 = vmatprep.subr.mxu0 0.0
        %4967 = vmatpush1.msra.mxu0 0.0
        %4968 = vmatprep.subr.mxu0 0.0
        %4969 = vmatpush1.msra.mxu0 0.0
        %4970 = vmatprep.subr.mxu0 0.0
        %4971 = vmatpush1.msra.mxu0 0.0
        %4972 = vmatprep.subr.mxu0 0.0
        %4973 = vmatpush1.msra.mxu0 0.0
        %4974 = vmatprep.subr.mxu0 0.0
        %4975 = vmatpush1.msra.mxu0 0.0
        %4976 = vmatprep.subr.mxu0 0.0
        %4977 = vmatpush1.msra.mxu0 0.0
        %4978 = vmatprep.subr.mxu0 0.0
        %4979 = vmatpush1.msra.mxu0 0.0
        %4980 = vmatprep.subr.mxu0 0.0
        %4981 = vmatpush1.msra.mxu0 0.0
        %4982 = vmatprep.subr.mxu0 0.0
        %4983 = vmatpush1.msra.mxu0 0.0
        %4984 = vmatprep.subr.mxu0 0.0
        %4985 = vmatpush1.msra.mxu0 0.0
        %4986 = vmatprep.subr.mxu0 0.0
        %4987 = vmatpush1.msra.mxu0 0.0
        %4988 = vmatprep.subr.mxu0 0.0
        %4989 = vmatpush1.msra.mxu0 0.0
        %4990 = vmatprep.subr.mxu0 0.0
        %4991 = vmatpush1.msra.mxu0 0.0
        %4992 = vmatprep.mubr.f32.mxu0 0.0
        %4993 = vmatmul.mubr.f32.gmra.mrb[0].mxu0 %v4901
        %v4994 = vpop.f32.mrb[0].mxu0
        %v4995 = vadd.f32 %v4926, %v4994
        %v4996 = vpop.f32.mrb[0].mxu0
        %4997 = vmatprep.mubr.f32.mxu0 0.0
        %4998 = vmatmul.mubr.f32.gmra.mrb[0].mxu0 %v4902
        %v4999 = vpop.f32.mrb[0].mxu0
        %v5000 = vadd.f32 %v4926, %v4999
        %v5001 = vpop.f32.mrb[0].mxu0
        %5002 = vmatprep.mubr.f32.mxu0 0.0
        %5003 = vmatmul.mubr.f32.gmra.mrb[0].mxu0 %v4903
        %v5004 = vpop.f32.mrb[0].mxu0
        %v5005 = vadd.f32 %v4926, %v5004
        %v5006 = vpop.f32.mrb[0].mxu0
        %5007 = vmatprep.mubr.f32.mxu0 0.0
        %5008 = vmatmul.mubr.f32.gmra.mrb[0].mxu0 %v4904
        %v5009 = vpop.f32.mrb[0].mxu0
        %v5010 = vadd.f32 %v4926, %v5009
        %v5011 = vpop.f32.mrb[0].mxu0
        %5012 = vdwg.mxu0
        %5013 = vadd.xlane.f32.xlu0 %v4995
        %v5014 = vpop.xlane.xlu0 %5013
        %5015 = vadd.xlane.f32.xlu0 %v5000
        %v5016 = vpop.xlane.xlu0 %5015
        %5017 = vadd.xlane.f32.xlu0 %v5005
        %v5018 = vpop.xlane.xlu0 %5017
        %5019 = vadd.xlane.f32.xlu0 %v5010
        %v5020 = vpop.xlane.xlu0 %5019
        %v5021 = vmul.f32 %v5014, %v891
        %v5022 = vmul.f32 %v5016, %v891
        %v5023 = vmul.f32 %v5018, %v891
        %v5024 = vmul.f32 %v5020, %v891
        %v5025 = vsub.f32 %v4995, %v5021
        %v5026 = vsub.f32 %v5000, %v5022
        %v5027 = vsub.f32 %v5005, %v5023
        %v5028 = vsub.f32 %v5010, %v5024
        %v5029 = vmul.f32 %v5025, %v5025
        %v5030 = vmul.f32 %v5026, %v5026
        %v5031 = vmul.f32 %v5027, %v5027
        %v5032 = vmul.f32 %v5028, %v5028
        %5033 = vadd.xlane.f32.xlu0 %v5029
        %v5034 = vpop.xlane.xlu0 %5033
        %5035 = vadd.xlane.f32.xlu0 %v5030
        %v5036 = vpop.xlane.xlu0 %5035
        %5037 = vadd.xlane.f32.xlu0 %v5031
        %v5038 = vpop.xlane.xlu0 %5037
        %5039 = vadd.xlane.f32.xlu0 %v5032
        %v5040 = vpop.xlane.xlu0 %5039
        %v5041 = vmul.f32 %v5034, %v891
        %v5042 = vmul.f32 %v5036, %v891
        %v5043 = vmul.f32 %v5038, %v891
        %v5044 = vmul.f32 %v5040, %v891
        %v5045 = vadd.f32 %v5041, 1e-05
        %v5046 = vadd.f32 %v5042, 1e-05
        %v5047 = vadd.f32 %v5043, 1e-05
        %v5048 = vadd.f32 %v5044, 1e-05
        %v5049 = vrsqrt.pop %v5045
        %v5050 = vrsqrt.pop %v5046
        %v5051 = vrsqrt.pop %v5047
        %v5052 = vrsqrt.pop %v5048
        %v5053 = vmul.f32 %v5025, %v5049
        %v5054 = vmul.f32 %v5026, %v5050
        %v5055 = vmul.f32 %v5027, %v5051
        %v5056 = vmul.f32 %v5028, %v5052
        %v5057 = vld [vmem:[#allocation23] sm:$0x1]
        %v5059 = vlaneseq
        %v5060 = vshrl.u32 %v5059, 7
        %v5061 = vsub.s32 0, %v5060
        %v5062 = vrot.slane %v5057, %v5061
        %v5064 = vmul.f32 %v5053, %v5062
        %v5065 = vmul.f32 %v5054, %v5062
        %v5066 = vmul.f32 %v5055, %v5062
        %v5067 = vmul.f32 %v5056, %v5062
        %v5068 = vld [vmem:[#allocation24] sm:$0x1]
        %v5070 = vlaneseq
        %v5071 = vshrl.u32 %v5070, 7
        %v5072 = vsub.s32 0, %v5071
        %v5073 = vrot.slane %v5068, %v5072
        %v5075 = vadd.f32 %v5064, %v5073
        %v5076 = vadd.f32 %v5065, %v5073
        %v5077 = vadd.f32 %v5066, %v5073
        %v5078 = vadd.f32 %v5067, %v5073
        %v5079 = vld [vmem:[#allocation26] sm:$0xff]
        %v5080 = vld [vmem:[#allocation26 + $0x8] sm:$0xff]
        %v5081 = vld [vmem:[#allocation26 + $0x10] sm:$0xff]
        %v5082 = vld [vmem:[#allocation26 + $0x18] sm:$0xff]
        %v5083 = vld [vmem:[#allocation26 + $0x20] sm:$0xff]
        %v5084 = vld [vmem:[#allocation26 + $0x28] sm:$0xff]
        %v5085 = vld [vmem:[#allocation26 + $0x30] sm:$0xff]
        %v5086 = vld [vmem:[#allocation26 + $0x38] sm:$0xff]
        %v5087 = vld [vmem:[#allocation26 + $0x40] sm:$0xff]
        %v5088 = vld [vmem:[#allocation26 + $0x48] sm:$0xff]
        %v5089 = vld [vmem:[#allocation26 + $0x50] sm:$0xff]
        %v5090 = vld [vmem:[#allocation26 + $0x58] sm:$0xff]
        %v5091 = vld [vmem:[#allocation26 + $0x60] sm:$0xff]
        %v5092 = vld [vmem:[#allocation26 + $0x68] sm:$0xff]
        %v5093 = vld [vmem:[#allocation26 + $0x70] sm:$0xff]
        %v5094 = vld [vmem:[#allocation26 + $0x78] sm:$0xff]
        %v5095 = vld [vmem:[#allocation26 + $0x80] sm:$0xff]
        %v5096 = vld [vmem:[#allocation26 + $0x88] sm:$0xff]
        %v5097 = vld [vmem:[#allocation26 + $0x90] sm:$0xff]
        %v5098 = vld [vmem:[#allocation26 + $0x98] sm:$0xff]
        %v5099 = vld [vmem:[#allocation26 + $0xa0] sm:$0xff]
        %v5100 = vld [vmem:[#allocation26 + $0xa8] sm:$0xff]
        %v5101 = vld [vmem:[#allocation26 + $0xb0] sm:$0xff]
        %v5102 = vld [vmem:[#allocation26 + $0xb8] sm:$0xff]
        %v5103 = vld [vmem:[#allocation26 + $0xc0] sm:$0xff]
        %v5104 = vld [vmem:[#allocation26 + $0xc8] sm:$0xff]
        %v5105 = vld [vmem:[#allocation26 + $0xd0] sm:$0xff]
        %v5106 = vld [vmem:[#allocation26 + $0xd8] sm:$0xff]
        %v5107 = vld [vmem:[#allocation26 + $0xe0] sm:$0xff]
        %v5108 = vld [vmem:[#allocation26 + $0xe8] sm:$0xff]
        %v5109 = vld [vmem:[#allocation26 + $0xf0] sm:$0xff]
        %v5110 = vld [vmem:[#allocation26 + $0xf8] sm:$0xff]
        %v5111 = vld [vmem:[#allocation27] sm:$0x3]
        %v5113 = vlaneseq
        %v5114 = vshrl.u32 %v5113, 7
        %v5115 = vsub.s32 0, %v5114
        %v5116 = vrot.slane %v5111, %v5115
        %v5117 = vlaneseq
        %v5118 = vshrl.u32 %v5117, 7
        %v5119 = vsub.s32 1, %v5118
        %v5120 = vrot.slane %v5111, %v5119
        %5123 = vmatprep.subr.mxu0 %v5080
        %5124 = vmatpush1.msra.mxu0 %v5079
        %5125 = vmatprep.subr.mxu0 %v5082
        %5126 = vmatpush1.msra.mxu0 %v5081
        %5127 = vmatprep.subr.mxu0 %v5084
        %5128 = vmatpush1.msra.mxu0 %v5083
        %5129 = vmatprep.subr.mxu0 %v5086
        %5130 = vmatpush1.msra.mxu0 %v5085
        %5131 = vmatprep.subr.mxu0 %v5088
        %5132 = vmatpush1.msra.mxu0 %v5087
        %5133 = vmatprep.subr.mxu0 %v5090
        %5134 = vmatpush1.msra.mxu0 %v5089
        %5135 = vmatprep.subr.mxu0 %v5092
        %5136 = vmatpush1.msra.mxu0 %v5091
        %5137 = vmatprep.subr.mxu0 %v5094
        %5138 = vmatpush1.msra.mxu0 %v5093
        %5139 = vmatprep.subr.mxu0 %v5096
        %5140 = vmatpush1.msra.mxu0 %v5095
        %5141 = vmatprep.subr.mxu0 %v5098
        %5142 = vmatpush1.msra.mxu0 %v5097
        %5143 = vmatprep.subr.mxu0 %v5100
        %5144 = vmatpush1.msra.mxu0 %v5099
        %5145 = vmatprep.subr.mxu0 %v5102
        %5146 = vmatpush1.msra.mxu0 %v5101
        %5147 = vmatprep.subr.mxu0 %v5104
        %5148 = vmatpush1.msra.mxu0 %v5103
        %5149 = vmatprep.subr.mxu0 %v5106
        %5150 = vmatpush1.msra.mxu0 %v5105
        %5151 = vmatprep.subr.mxu0 %v5108
        %5152 = vmatpush1.msra.mxu0 %v5107
        %5153 = vmatprep.subr.mxu0 %v5110
        %5154 = vmatpush1.msra.mxu0 %v5109
        %5155 = vmatprep.subr.mxu0 0.0
        %5156 = vmatpush1.msra.mxu0 0.0
        %5157 = vmatprep.subr.mxu0 0.0
        %5158 = vmatpush1.msra.mxu0 0.0
        %5159 = vmatprep.subr.mxu0 0.0
        %5160 = vmatpush1.msra.mxu0 0.0
        %5161 = vmatprep.subr.mxu0 0.0
        %5162 = vmatpush1.msra.mxu0 0.0
        %5163 = vmatprep.subr.mxu0 0.0
        %5164 = vmatpush1.msra.mxu0 0.0
        %5165 = vmatprep.subr.mxu0 0.0
        %5166 = vmatpush1.msra.mxu0 0.0
        %5167 = vmatprep.subr.mxu0 0.0
        %5168 = vmatpush1.msra.mxu0 0.0
        %5169 = vmatprep.subr.mxu0 0.0
        %5170 = vmatpush1.msra.mxu0 0.0
        %5171 = vmatprep.subr.mxu0 0.0
        %5172 = vmatpush1.msra.mxu0 0.0
        %5173 = vmatprep.subr.mxu0 0.0
        %5174 = vmatpush1.msra.mxu0 0.0
        %5175 = vmatprep.subr.mxu0 0.0
        %5176 = vmatpush1.msra.mxu0 0.0
        %5177 = vmatprep.subr.mxu0 0.0
        %5178 = vmatpush1.msra.mxu0 0.0
        %5179 = vmatprep.subr.mxu0 0.0
        %5180 = vmatpush1.msra.mxu0 0.0
        %5181 = vmatprep.subr.mxu0 0.0
        %5182 = vmatpush1.msra.mxu0 0.0
        %5183 = vmatprep.subr.mxu0 0.0
        %5184 = vmatpush1.msra.mxu0 0.0
        %5185 = vmatprep.subr.mxu0 0.0
        %5186 = vmatpush1.msra.mxu0 0.0
        %5187 = vmatprep.mubr.f32.mxu0 0.0
        %5188 = vmatmul.mubr.f32.gmra.mrb[0].mxu0 %v5075
        %v5189 = vpop.f32.mrb[0].mxu0
        %v5190 = vadd.f32 %v5116, %v5189
        %v5191 = vpop.f32.mrb[0].mxu0
        %v5192 = vadd.f32 %v5120, %v5191
        %5193 = vmatprep.mubr.f32.mxu0 0.0
        %5194 = vmatmul.mubr.f32.gmra.mrb[0].mxu0 %v5076
        %v5195 = vpop.f32.mrb[0].mxu0
        %v5196 = vadd.f32 %v5116, %v5195
        %v5197 = vpop.f32.mrb[0].mxu0
        %v5198 = vadd.f32 %v5120, %v5197
        %5199 = vmatprep.mubr.f32.mxu0 0.0
        %5200 = vmatmul.mubr.f32.gmra.mrb[0].mxu0 %v5077
        %v5201 = vpop.f32.mrb[0].mxu0
        %v5202 = vadd.f32 %v5116, %v5201
        %v5203 = vpop.f32.mrb[0].mxu0
        %v5204 = vadd.f32 %v5120, %v5203
        %5205 = vmatprep.mubr.f32.mxu0 0.0
        %5206 = vmatmul.mubr.f32.gmra.mrb[0].mxu0 %v5078
        %v5207 = vpop.f32.mrb[0].mxu0
        %v5208 = vadd.f32 %v5116, %v5207
        %v5209 = vpop.f32.mrb[0].mxu0
        %v5210 = vadd.f32 %v5120, %v5209
        %5211 = vdwg.mxu0
        %v5212 = vmul.f32 %v5190, 0.5
        %v5213 = vmul.f32 %v5192, 0.5
        %v5214 = vmul.f32 %v5196, 0.5
        %v5215 = vmul.f32 %v5198, 0.5
        %v5216 = vmul.f32 %v5202, 0.5
        %v5217 = vmul.f32 %v5204, 0.5
        %v5218 = vmul.f32 %v5208, 0.5
        %v5219 = vmul.f32 %v5210, 0.5
        %v5220 = vmul.f32 %v5190, 0.70710677
        %v5221 = vmul.f32 %v5192, 0.70710677
        %v5222 = vmul.f32 %v5196, 0.70710677
        %v5223 = vmul.f32 %v5198, 0.70710677
        %v5224 = vmul.f32 %v5202, 0.70710677
        %v5225 = vmul.f32 %v5204, 0.70710677
        %v5226 = vmul.f32 %v5208, 0.70710677
        %v5227 = vmul.f32 %v5210, 0.70710677
        %v5228 = verf.f32.pop %v5220
        %v5229 = verf.f32.pop %v5221
        %v5230 = verf.f32.pop %v5222
        %v5231 = verf.f32.pop %v5223
        %v5232 = verf.f32.pop %v5224
        %v5233 = verf.f32.pop %v5225
        %v5234 = verf.f32.pop %v5226
        %v5235 = verf.f32.pop %v5227
        %v5236 = vadd.f32 %v5228, 1.0
        %v5237 = vadd.f32 %v5229, 1.0
        %v5238 = vadd.f32 %v5230, 1.0
        %v5239 = vadd.f32 %v5231, 1.0
        %v5240 = vadd.f32 %v5232, 1.0
        %v5241 = vadd.f32 %v5233, 1.0
        %v5242 = vadd.f32 %v5234, 1.0
        %v5243 = vadd.f32 %v5235, 1.0
        %v5244 = vmul.f32 %v5212, %v5236
        %v5245 = vmul.f32 %v5213, %v5237
        %v5246 = vmul.f32 %v5214, %v5238
        %v5247 = vmul.f32 %v5215, %v5239
        %v5248 = vmul.f32 %v5216, %v5240
        %v5249 = vmul.f32 %v5217, %v5241
        %v5250 = vmul.f32 %v5218, %v5242
        %v5251 = vmul.f32 %v5219, %v5243
        %v5252 = vld [vmem:[#allocation29] sm:$0xff]
        %v5253 = vld [vmem:[#allocation29 + $0x8] sm:$0xff]
        %v5254 = vld [vmem:[#allocation29 + $0x10] sm:$0xff]
        %v5255 = vld [vmem:[#allocation29 + $0x18] sm:$0xff]
        %v5256 = vld [vmem:[#allocation29 + $0x20] sm:$0xff]
        %v5257 = vld [vmem:[#allocation29 + $0x28] sm:$0xff]
        %v5258 = vld [vmem:[#allocation29 + $0x30] sm:$0xff]
        %v5259 = vld [vmem:[#allocation29 + $0x38] sm:$0xff]
        %v5260 = vld [vmem:[#allocation29 + $0x40] sm:$0xff]
        %v5261 = vld [vmem:[#allocation29 + $0x48] sm:$0xff]
        %v5262 = vld [vmem:[#allocation29 + $0x50] sm:$0xff]
        %v5263 = vld [vmem:[#allocation29 + $0x58] sm:$0xff]
        %v5264 = vld [vmem:[#allocation29 + $0x60] sm:$0xff]
        %v5265 = vld [vmem:[#allocation29 + $0x68] sm:$0xff]
        %v5266 = vld [vmem:[#allocation29 + $0x70] sm:$0xff]
        %v5267 = vld [vmem:[#allocation29 + $0x78] sm:$0xff]
        %v5268 = vld [vmem:[#allocation29 + $0x80] sm:$0xff]
        %v5269 = vld [vmem:[#allocation29 + $0x88] sm:$0xff]
        %v5270 = vld [vmem:[#allocation29 + $0x90] sm:$0xff]
        %v5271 = vld [vmem:[#allocation29 + $0x98] sm:$0xff]
        %v5272 = vld [vmem:[#allocation29 + $0xa0] sm:$0xff]
        %v5273 = vld [vmem:[#allocation29 + $0xa8] sm:$0xff]
        %v5274 = vld [vmem:[#allocation29 + $0xb0] sm:$0xff]
        %v5275 = vld [vmem:[#allocation29 + $0xb8] sm:$0xff]
        %v5276 = vld [vmem:[#allocation29 + $0xc0] sm:$0xff]
        %v5277 = vld [vmem:[#allocation29 + $0xc8] sm:$0xff]
        %v5278 = vld [vmem:[#allocation29 + $0xd0] sm:$0xff]
        %v5279 = vld [vmem:[#allocation29 + $0xd8] sm:$0xff]
        %v5280 = vld [vmem:[#allocation29 + $0xe0] sm:$0xff]
        %v5281 = vld [vmem:[#allocation29 + $0xe8] sm:$0xff]
        %v5282 = vld [vmem:[#allocation29 + $0xf0] sm:$0xff]
        %v5283 = vld [vmem:[#allocation29 + $0xf8] sm:$0xff]
        %v5284 = vld [vmem:[#allocation30] sm:$0x1]
        %v5286 = vlaneseq
        %v5287 = vshrl.u32 %v5286, 7
        %v5288 = vsub.s32 0, %v5287
        %v5289 = vrot.slane %v5284, %v5288
        %5291 = vmatprep.subr.mxu0 0.0
        %5292 = vmatpush1.msra.mxu0 %v5252
        %5293 = vmatprep.subr.mxu0 0.0
        %5294 = vmatpush1.msra.mxu0 %v5253
        %5295 = vmatprep.subr.mxu0 0.0
        %5296 = vmatpush1.msra.mxu0 %v5254
        %5297 = vmatprep.subr.mxu0 0.0
        %5298 = vmatpush1.msra.mxu0 %v5255
        %5299 = vmatprep.subr.mxu0 0.0
        %5300 = vmatpush1.msra.mxu0 %v5256
        %5301 = vmatprep.subr.mxu0 0.0
        %5302 = vmatpush1.msra.mxu0 %v5257
        %5303 = vmatprep.subr.mxu0 0.0
        %5304 = vmatpush1.msra.mxu0 %v5258
        %5305 = vmatprep.subr.mxu0 0.0
        %5306 = vmatpush1.msra.mxu0 %v5259
        %5307 = vmatprep.subr.mxu0 0.0
        %5308 = vmatpush1.msra.mxu0 %v5260
        %5309 = vmatprep.subr.mxu0 0.0
        %5310 = vmatpush1.msra.mxu0 %v5261
        %5311 = vmatprep.subr.mxu0 0.0
        %5312 = vmatpush1.msra.mxu0 %v5262
        %5313 = vmatprep.subr.mxu0 0.0
        %5314 = vmatpush1.msra.mxu0 %v5263
        %5315 = vmatprep.subr.mxu0 0.0
        %5316 = vmatpush1.msra.mxu0 %v5264
        %5317 = vmatprep.subr.mxu0 0.0
        %5318 = vmatpush1.msra.mxu0 %v5265
        %5319 = vmatprep.subr.mxu0 0.0
        %5320 = vmatpush1.msra.mxu0 %v5266
        %5321 = vmatprep.subr.mxu0 0.0
        %5322 = vmatpush1.msra.mxu0 %v5267
        %5323 = vmatprep.subr.mxu0 0.0
        %5324 = vmatpush1.msra.mxu0 %v5268
        %5325 = vmatprep.subr.mxu0 0.0
        %5326 = vmatpush1.msra.mxu0 %v5269
        %5327 = vmatprep.subr.mxu0 0.0
        %5328 = vmatpush1.msra.mxu0 %v5270
        %5329 = vmatprep.subr.mxu0 0.0
        %5330 = vmatpush1.msra.mxu0 %v5271
        %5331 = vmatprep.subr.mxu0 0.0
        %5332 = vmatpush1.msra.mxu0 %v5272
        %5333 = vmatprep.subr.mxu0 0.0
        %5334 = vmatpush1.msra.mxu0 %v5273
        %5335 = vmatprep.subr.mxu0 0.0
        %5336 = vmatpush1.msra.mxu0 %v5274
        %5337 = vmatprep.subr.mxu0 0.0
        %5338 = vmatpush1.msra.mxu0 %v5275
        %5339 = vmatprep.subr.mxu0 0.0
        %5340 = vmatpush1.msra.mxu0 %v5276
        %5341 = vmatprep.subr.mxu0 0.0
        %5342 = vmatpush1.msra.mxu0 %v5277
        %5343 = vmatprep.subr.mxu0 0.0
        %5344 = vmatpush1.msra.mxu0 %v5278
        %5345 = vmatprep.subr.mxu0 0.0
        %5346 = vmatpush1.msra.mxu0 %v5279
        %5347 = vmatprep.subr.mxu0 0.0
        %5348 = vmatpush1.msra.mxu0 %v5280
        %5349 = vmatprep.subr.mxu0 0.0
        %5350 = vmatpush1.msra.mxu0 %v5281
        %5351 = vmatprep.subr.mxu0 0.0
        %5352 = vmatpush1.msra.mxu0 %v5282
        %5353 = vmatprep.subr.mxu0 0.0
        %5354 = vmatpush1.msra.mxu0 %v5283
        %5355 = vmatprep.mubr.f32.mxu0 %v5245
        %5356 = vmatmul.mubr.f32.gmra.mrb[0].mxu0 %v5244
        %v5357 = vpop.f32.mrb[0].mxu0
        %v5358 = vadd.f32 %v5289, %v5357
        %v5359 = vpop.f32.mrb[0].mxu0
        %5360 = vmatprep.mubr.f32.mxu0 %v5247
        %5361 = vmatmul.mubr.f32.gmra.mrb[0].mxu0 %v5246
        %v5362 = vpop.f32.mrb[0].mxu0
        %v5363 = vadd.f32 %v5289, %v5362
        %v5364 = vpop.f32.mrb[0].mxu0
        %5365 = vmatprep.mubr.f32.mxu0 %v5249
        %5366 = vmatmul.mubr.f32.gmra.mrb[0].mxu0 %v5248
        %v5367 = vpop.f32.mrb[0].mxu0
        %v5368 = vadd.f32 %v5289, %v5367
        %v5369 = vpop.f32.mrb[0].mxu0
        %5370 = vmatprep.mubr.f32.mxu0 %v5251
        %5371 = vmatmul.mubr.f32.gmra.mrb[0].mxu0 %v5250
        %v5372 = vpop.f32.mrb[0].mxu0
        %v5373 = vadd.f32 %v5289, %v5372
        %v5374 = vpop.f32.mrb[0].mxu0
        %5375 = vdwg.mxu0
        %v5376 = vadd.f32 %v5358, %v4995
        %v5377 = vadd.f32 %v5363, %v5000
        %v5378 = vadd.f32 %v5368, %v5005
        %v5379 = vadd.f32 %v5373, %v5010
        %5380 = vst [vmem:[%s847] sm:$0xff] %v5376
        %5381 = vst [vmem:[%s847 + $0x8] sm:$0xff] %v5377
        %5382 = vst [vmem:[%s847 + $0x10] sm:$0xff] %v5378
        %5383 = vst [vmem:[%s847 + $0x18] sm:$0xff] %v5379
        %s5384 = sand.u32 %s442, 1
        %s5385 = scalar_lea.sflag [#allocation5], %s5384
        %s5386 = sand.u32 %s442, 1
        %s5387 = smul.addr %s5386, 32
        %s5388 = scalar_lea.vmem [#allocation32], %s5387
        // Predicated region
        $region165: #{tpu_custom_call.1} parent=91 // pred_check
          %p5389 = pneg %p452
        $region166: #{tpu_custom_call.1} parent=91 // pred_check_branch
          %5391 = sbr.rel (%p5389) target = $region168
        $region167: #{tpu_custom_call.1} parent=91 // pred_region
          %s5392 = smul.u32 2, %s46
          %s5394 = ssub.s32 512, 512
          %5395 = vsyncadd %s5385, %s5394
          %s5396 = smul.addr %s5392, 2
          %s5397 = smul.addr %s5396, 128
          %s5398 = scalar_lea.hbm %s18, %s5397
          %s5399 = sshll.u32 %s5388, 4
          %s5400 = int_to_ptr.vmem [resolvable:$true] %s5399
          %5405 = dma.vmem_to_hbm [thread:$0]  %s5400, 512, %s5398, %s5385, 128, 128, 8
        $region168: #{tpu_custom_call.1} parent=91 // pred_fallthru
          _
      $region92: #{tpu_custom_call.1} parent=5 // pred_fallthru
        _
      %p5406 = scmp.le.s32.totalorder 2, %s41
      // Predicated region
      $region169: #{tpu_custom_call.1} parent=5 // pred_check
        %p5407 = pneg %p5406
      $region170: #{tpu_custom_call.1} parent=5 // pred_check_branch
        %5409 = sbr.rel (%p5407) target = $region172
      $region171: #{tpu_custom_call.1} parent=5 // pred_region
        %s5410 = ssub.s32 %s41, 2
        // Predicated region
        $region173: #{tpu_custom_call.1} parent=171 // pred_check
          %p5411 = pneg %p458
        $region174: #{tpu_custom_call.1} parent=171 // pred_check_branch
          %5413 = sbr.rel (%p5411) target = $region176
        $region175: #{tpu_custom_call.1} parent=171 // pred_region
          %s5414 = sand.u32 %s443, 1
          %s5415 = scalar_lea.sflag [#allocation5], %s5414
          %s5416 = sand.u32 %s443, 1
          %s5417 = smul.addr %s5416, 32
          %s5418 = scalar_lea.vmem [#allocation32], %s5417
          %5419 = dma.done %s5415, 512
        $region176: #{tpu_custom_call.1} parent=171 // pred_fallthru
          _
      $region172: #{tpu_custom_call.1} parent=5 // pred_fallthru
        _
    $region6: #{tpu_custom_call.1} parent=1 // loop_footer
      %s45 = sadd.s32 1, %s41
    $region7: #{tpu_custom_call.1} parent=1 // loop_footer_branch
      %40 = sbr.rel target = $region3
    $region8: #{tpu_custom_call.1} parent=1 // loop_exit
      _
    %5420 = vsyncpa [#allocation4], 1
    %s5421 = scalar_lea.sflag [#allocation4], 1
    %5422 = vsyncpa %s5421, 1
    %5423 = vsyncpa [#allocation7], 1
    %s5424 = scalar_lea.sflag [#allocation7], 1
    %5425 = vsyncpa %s5424, 1
    %5426 = vsyncpa [#allocation10], 1
    %5427 = vsyncpa [#allocation13], 1
    %5428 = vsyncpa [#allocation16], 1
    %5429 = vsyncpa [#allocation19], 1
    %5430 = vsyncpa [#allocation22], 1
    %5431 = vsyncpa [#allocation25], 1
    %5432 = vsyncpa [#allocation28], 1
    %5433 = vsyncpa [#allocation31], 1
    %5434 = vsyncpa [#allocation5], 1
    %s5435 = scalar_lea.sflag [#allocation5], 1
    %5436 = vsyncpa %s5435, 1

</llo_original>
